<compile_context>
chip_gen: v7x
topology: tpu7x:2x2x1
jax: 0.10.0
libtpu: 0.0.40
codegen_flags: <defaults>
</compile_context>

<pallas_src>
import math
import functools

import jax
import jax.numpy as jnp
import numpy as np
from jax.experimental import pallas as pl
from jax.experimental.pallas import tpu as pltpu


def _mha_kernel(n_head, self_attn, return_attn, compute_dtype, *refs):
    """One grid step: the full MHA forward for `block_b` batch elements."""
    if self_attn:
        (x_ref, mask_ref, wqkv_ref, bqkv_ref,
         wf_ref, bf_ref, g_ref, beta_ref, *out_refs) = refs
        lead_ref = x_ref
    else:
        (q_ref, k_ref, v_ref, mask_ref, wqkv_ref, bqkv_ref,
         wf_ref, bf_ref, g_ref, beta_ref, *out_refs) = refs
        lead_ref = q_ref
    out_ref = out_refs[0]
    attn_ref = out_refs[1] if return_attn else None

    bb, S, D = lead_ref.shape
    H = n_head
    d_k = D // H
    M = bb * S
    neg_inf = jnp.float32(-1e9)

    wqkv = wqkv_ref[...]        # (D, 3D), compute dtype; W_K pre-scaled
    bqkv = bqkv_ref[...]        # (1, 3D), f32; b_K pre-scaled

    # ---- fused QKV projection on the whole (bb*S, D) slab ----
    if self_attn:
        x = x_ref[...].reshape(M, D).astype(compute_dtype)
        proj = jnp.dot(x, wqkv, preferred_element_type=jnp.float32) + bqkv
    else:
        xq = q_ref[...].reshape(M, D).astype(compute_dtype)
        xk = k_ref[...].reshape(M, D).astype(compute_dtype)
        xv = v_ref[...].reshape(M, D).astype(compute_dtype)
        proj = jnp.concatenate(
            [jnp.dot(xq, wqkv[:, 0:D], preferred_element_type=jnp.float32),
             jnp.dot(xk, wqkv[:, D:2 * D], preferred_element_type=jnp.float32),
             jnp.dot(xv, wqkv[:, 2 * D:3 * D], preferred_element_type=jnp.float32)],
            axis=-1) + bqkv                                          # (M, 3D)

    q_proj_f32 = proj[:, 0:D]            # residual path uses W_Q(Q), keep f32
    proj_c = proj.astype(compute_dtype).reshape(bb, S, 3 * D)

    # ---- head split: (bb, S, 3D) -> three (bb*H, S, d_k) head batches ----
    def split_heads(col_off):
        parts = [proj_c[:, :, col_off + h * d_k: col_off + (h + 1) * d_k]
                 for h in range(H)]
        return jnp.stack(parts, axis=1).reshape(bb * H, S, d_k)

    qh = split_heads(0)
    kh = split_heads(D)                  # 1/sqrt(d_k) folded into the weights
    vh = split_heads(2 * D)

    # ---- one batched score einsum over all bb*H heads ----
    s = jnp.einsum("bqd,bkd->bqk", qh, kh,
                   preferred_element_type=jnp.float32)               # (bb*H,S,S)
    s = s.reshape(bb, H, S, S)

    # exact masked_fill semantics (int8 mask, nonzero == masked)
    masked = mask_ref[...] != 0                                       # (bb,1,S,S)
    s = jnp.where(masked, neg_inf, s)

    # ---- numerically stable softmax over keys (f32 elementwise) ----
    s = s - jnp.max(s, axis=-1, keepdims=True)
    e = jnp.exp(s)
    denom = jnp.sum(e, axis=-1, keepdims=True)
    # attn is a user-visible output: use the exact reciprocal when returned.
    attn = e * pl.reciprocal(denom, approx=not return_attn)

    if return_attn:
        # TODO(synk): lane-dense (block_b, H*S*S) layout for larger S.
        attn_ref[...] = attn                                          # (bb,H,S,S)

    # ---- one batched context einsum + head merge ----
    ctx = jnp.einsum("bqk,bkd->bqd",
                     attn.reshape(bb * H, S, S).astype(compute_dtype), vh,
                     preferred_element_type=jnp.float32)              # (bb*H,S,d_k)
    ctx = ctx.reshape(bb, H, S, d_k)
    context = jnp.concatenate([ctx[:, h] for h in range(H)], axis=-1)  # (bb,S,D)
    context = context.reshape(M, D).astype(compute_dtype)

    # ---- output projection + residual (projected Q) + LayerNorm ----
    out_fc = jnp.dot(context, wf_ref[...],
                     preferred_element_type=jnp.float32) + bf_ref[...]
    resid = out_fc + q_proj_f32

    mean = jnp.mean(resid, axis=-1, keepdims=True)
    var = jnp.mean(jnp.square(resid - mean), axis=-1, keepdims=True)
    normed = (resid - mean) * jax.lax.rsqrt(var + 1e-5)               # torch eps
    out_ref[...] = (normed * g_ref[...] + beta_ref[...]).reshape(bb, S, D)


def _vmem_limit_bytes():
    """Generation-gated VMEM budget: ~3/4 of physical capacity, capped at
    96 MiB (v5e/v6e: 128 MiB -> 96 MiB; v7x: 64 MiB -> 48 MiB)."""
    try:
        cap = int(pltpu.get_tpu_info().vmem_capacity_bytes)
    except Exception:
        cap = 64 * 1024 * 1024          # conservative (v7x-sized) fallback
    return min(cap * 3 // 4, 96 * 1024 * 1024)


def _pick_block_b(B, S, D, H, n_inputs, return_attn, vmem_limit, max_block=64):
    """Largest divisor of B whose double-buffered block footprint fits a
    fraction of the VMEM budget.  No even-grid-length preference: on the
    single-TC chips (v5e/v6e) fewer, fatter grid steps always win; max_block
    bounds in-kernel temporary / vreg pressure."""
    per_elem = 2 * (n_inputs * S * D * 4            # f32 input slab(s)
                    + S * S                          # int8 mask
                    + S * D * 4                      # f32 output slab
                    + (H * S * S * 4 if return_attn else 0))   # attn slab
    budget = vmem_limit // 4                         # headroom for temporaries
    cap = max(1, min(B, max_block, budget // max(per_elem, 1)))
    return max(d for d in range(1, cap + 1) if B % d == 0)


def multi_head_attention(Q, K, V, attn_mask, params, n_head,
                         block_b=None, return_attn=True, use_bf16=True):
    """attn_mask: (B, 1, S, S) or (B, S, S); nonzero/True == masked."""
    B, S, D = Q.shape
    H = n_head
    d_k = D // H
    assert H * d_k == D

    self_attn = (Q is K) and (K is V)
    compute_dtype = jnp.bfloat16 if use_bf16 else jnp.float32

    vmem_limit = _vmem_limit_bytes()
    if block_b is None:
        block_b = _pick_block_b(B, S, D, H, 1 if self_attn else 3,
                                return_attn, vmem_limit)
    assert B % block_b == 0
    grid_b = B // block_b

    # One-time weight transform: fuse W_Q|W_K|W_V into one (D, 3D) RHS and
    # fold the 1/sqrt(d_k) score scale into the K projection columns.
    scale = 1.0 / math.sqrt(d_k)
    wqkv = jnp.concatenate(
        [params["wq"], params["wk"] * scale, params["wv"]], axis=1
    ).astype(compute_dtype)                                           # (D, 3D)
    bqkv = jnp.concatenate(
        [params["bq"], params["bk"] * scale, params["bv"]]
    ).reshape(1, 3 * D).astype(jnp.float32)
    wf = params["wf"].astype(compute_dtype)
    bf = params["bf"].reshape(1, D).astype(jnp.float32)
    g = params["gamma"].reshape(1, D).astype(jnp.float32)
    beta = params["beta"].reshape(1, D).astype(jnp.float32)

    # int8 mask in HBM (4x less read traffic than an f32 bias); expanded to
    # the -1e9 fill inside the kernel with exact masked_fill semantics.
    mask_i8 = (attn_mask.reshape(B, 1, S, S) != 0).astype(jnp.int8)

    kernel = functools.partial(_mha_kernel, H, self_attn, return_attn,
                               compute_dtype)

    seq_spec = pl.BlockSpec((block_b, S, D), lambda b: (b, 0, 0))
    mask_spec = pl.BlockSpec((block_b, 1, S, S), lambda b: (b, 0, 0, 0))
    # TODO(synk): pipeline_mode=pl.Buffered(1) on the constant-index weight
    # specs once their double-buffered footprint matters (D >= 512).
    wqkv_spec = pl.BlockSpec((D, 3 * D), lambda b: (0, 0))
    bqkv_spec = pl.BlockSpec((1, 3 * D), lambda b: (0, 0))
    mat_spec = pl.BlockSpec((D, D), lambda b: (0, 0))
    vec_spec = pl.BlockSpec((1, D), lambda b: (0, 0))

    if self_attn:
        inputs = (Q, mask_i8, wqkv, bqkv, wf, bf, g, beta)
        in_specs = [seq_spec, mask_spec, wqkv_spec, bqkv_spec,
                    mat_spec, vec_spec, vec_spec, vec_spec]
    else:
        inputs = (Q, K, V, mask_i8, wqkv, bqkv, wf, bf, g, beta)
        in_specs = [seq_spec, seq_spec, seq_spec, mask_spec,
                    wqkv_spec, bqkv_spec, mat_spec, vec_spec,
                    vec_spec, vec_spec]

    out_spec_main = pl.BlockSpec((block_b, S, D), lambda b: (b, 0, 0))
    if return_attn:
        out_shapes = (
            jax.ShapeDtypeStruct((B, S, D), jnp.float32),
            jax.ShapeDtypeStruct((B, H, S, S), jnp.float32),
        )
        out_specs = (
            out_spec_main,
            pl.BlockSpec((block_b, H, S, S), lambda b: (b, 0, 0, 0)),
        )
    else:
        out_shapes = jax.ShapeDtypeStruct((B, S, D), jnp.float32)
        out_specs = out_spec_main

    return pl.pallas_call(
        kernel,
        grid=(grid_b,),
        in_specs=in_specs,
        out_specs=out_specs,
        out_shape=out_shapes,
        compiler_params=pltpu.CompilerParams(
            dimension_semantics=("parallel",),
            vmem_limit_bytes=vmem_limit,
        ),
    )(*inputs)


def ref_forward(Q, K, V, mask, p, n_head):
    """Pure-JAX reference matching the PyTorch module (masked_fill semantics)."""
    hp = jax.lax.Precision.HIGHEST
    B, S, D = Q.shape
    d_k = D // n_head
    Qp = jnp.dot(Q, p["wq"], precision=hp) + p["bq"]
    Kp = jnp.dot(K, p["wk"], precision=hp) + p["bk"]
    Vp = jnp.dot(V, p["wv"], precision=hp) + p["bv"]
    Qh = Qp.reshape(B, S, n_head, d_k).transpose(0, 2, 1, 3)
    Kh = Kp.reshape(B, S, n_head, d_k).transpose(0, 2, 1, 3)
    Vh = Vp.reshape(B, S, n_head, d_k).transpose(0, 2, 1, 3)
    scores = jnp.einsum("bhqd,bhkd->bhqk", Qh, Kh, precision=hp) / math.sqrt(d_k)
    scores = jnp.where(mask.reshape(B, 1, S, S), -1000000000.0, scores)
    attn = jax.nn.softmax(scores, axis=-1)
    ctx = jnp.einsum("bhqk,bhkd->bhqd", attn, Vh, precision=hp)
    ctx = ctx.transpose(0, 2, 1, 3).reshape(B, S, D)
    out = jnp.dot(ctx, p["wf"], precision=hp) + p["bf"]
    resid = out + Qp
    mean = resid.mean(-1, keepdims=True)
    var = ((resid - mean) ** 2).mean(-1, keepdims=True)
    normed = (resid - mean) / jnp.sqrt(var + 1e-5)
    return normed * p["gamma"] + p["beta"], attn


if __name__ == "__main__":
    B, S, H, d_k = 8, 8, 4, 8          # d_model = n_head * d_k = n_head * d_v
    D = H * d_k

    key = jax.random.PRNGKey(0)
    ks = jax.random.split(key, 12)

    X = jax.random.normal(ks[0], (B, S, D), jnp.float32)    # self-attn input
    Qx = jax.random.normal(ks[1], (B, S, D), jnp.float32)   # cross-attn inputs
    Kx = jax.random.normal(ks[2], (B, S, D), jnp.float32)
    Vx = jax.random.normal(ks[3], (B, S, D), jnp.float32)

    # boolean mask (True == masked), shared across heads: (B, 1, S, S);
    # include one fully-masked row to exercise exact masked_fill semantics
    # (PyTorch softmax gives a uniform 1/S row there).
    mask = jax.random.uniform(ks[4], (B, 1, S, S)) < 0.2
    mask = mask.at[0, 0, 0, :].set(True)

    w_scale = 1.0 / math.sqrt(D)
    params = {
        "wq": jax.random.normal(ks[5], (D, D), jnp.float32) * w_scale,
        "bq": jax.random.normal(ks[6], (D,), jnp.float32) * w_scale,
        "wk": jax.random.normal(ks[7], (D, D), jnp.float32) * w_scale,
        "bk": jax.random.normal(ks[8], (D,), jnp.float32) * w_scale,
        "wv": jax.random.normal(ks[9], (D, D), jnp.float32) * w_scale,
        "bv": jax.random.normal(ks[10], (D,), jnp.float32) * w_scale,
        "wf": jax.random.normal(ks[11], (D, D), jnp.float32) * w_scale,
        "bf": jax.random.normal(jax.random.PRNGKey(1), (D,), jnp.float32) * w_scale,
        "gamma": jnp.ones((D,), jnp.float32),
        "beta": jnp.zeros((D,), jnp.float32),
    }

    # --- self-attention (fused QKV matmul), bf16 MXU path ---
    out_bf16, attn_bf16 = multi_head_attention(X, X, X, mask, params, n_head=H)
    jax.block_until_ready((out_bf16, attn_bf16))
    out_ref, attn_ref_v = ref_forward(X, X, X, mask, params, H)
    np.testing.assert_allclose(np.asarray(out_bf16), np.asarray(out_ref),
                               atol=5e-2, rtol=5e-2)
    np.testing.assert_allclose(np.asarray(attn_bf16), np.asarray(attn_ref_v),
                               atol=2e-2, rtol=2e-2)

    # --- self-attention, full-f32 path (tight tolerance) ---
    out_f32, attn_f32 = multi_head_attention(X, X, X, mask, params, n_head=H,
                                             use_bf16=False)
    jax.block_until_ready((out_f32, attn_f32))
    np.testing.assert_allclose(np.asarray(out_f32), np.asarray(out_ref),
                               atol=2e-3, rtol=2e-3)
    np.testing.assert_allclose(np.asarray(attn_f32), np.asarray(attn_ref_v),
                               atol=2e-3, rtol=2e-3)

    # --- cross-attention (distinct Q/K/V), attn-less fast path ---
    out_x = multi_head_attention(Qx, Kx, Vx, mask, params, n_head=H,
                                 return_attn=False)
    jax.block_until_ready(out_x)
    out_x_ref, _ = ref_forward(Qx, Kx, Vx, mask, params, H)
    np.testing.assert_allclose(np.asarray(out_x), np.asarray(out_x_ref),
                               atol=5e-2, rtol=5e-2)

    print("KERNEL_OK")
</pallas_src>

<mosaic_0001>
module attributes {stable_mosaic.version = 11 : i64} {
  func.func @_mha_kernel(%arg0: i32, %arg1: memref<8x8x32xf32, #tpu.memory_space<vmem>>, %arg2: memref<8x1x8x8xi8, #tpu.memory_space<vmem>>, %arg3: memref<32x96xbf16, #tpu.memory_space<vmem>>, %arg4: memref<1x96xf32, #tpu.memory_space<vmem>>, %arg5: memref<32x32xbf16, #tpu.memory_space<vmem>>, %arg6: memref<1x32xf32, #tpu.memory_space<vmem>>, %arg7: memref<1x32xf32, #tpu.memory_space<vmem>>, %arg8: memref<1x32xf32, #tpu.memory_space<vmem>>, %arg9: memref<8x8x32xf32, #tpu.memory_space<vmem>>, %arg10: memref<8x4x8x8xf32, #tpu.memory_space<vmem>>) attributes {dimension_semantics = [#tpu.dimension_semantics<parallel>], iteration_bounds = array<i64: 1>, scalar_prefetch = 0 : i64, scratch_operands = 0 : i64, tpu.core_type = #tpu.core_type<tc>, window_params = [{transform_indices = @transform_0, window_bounds = array<i64: 8, 8, 32>}, {transform_indices = @transform_1, window_bounds = array<i64: 8, 1, 8, 8>}, {pipeline_mode = #tpu.pipeline_mode<synchronous>, transform_indices = @transform_2, window_bounds = array<i64: 32, 96>}, {pipeline_mode = #tpu.pipeline_mode<synchronous>, transform_indices = @transform_3, window_bounds = array<i64: 1, 96>}, {pipeline_mode = #tpu.pipeline_mode<synchronous>, transform_indices = @transform_4, window_bounds = array<i64: 32, 32>}, {pipeline_mode = #tpu.pipeline_mode<synchronous>, transform_indices = @transform_5, window_bounds = array<i64: 1, 32>}, {pipeline_mode = #tpu.pipeline_mode<synchronous>, transform_indices = @transform_6, window_bounds = array<i64: 1, 32>}, {pipeline_mode = #tpu.pipeline_mode<synchronous>, transform_indices = @transform_7, window_bounds = array<i64: 1, 32>}, {transform_indices = @transform_8, window_bounds = array<i64: 8, 8, 32>}, {transform_indices = @transform_9, window_bounds = array<i64: 8, 4, 8, 8>}]} {
    %c0 = arith.constant 0 : index
    %c0_0 = arith.constant 0 : index
    %0 = vector.load %arg3[%c0, %c0_0] : memref<32x96xbf16, #tpu.memory_space<vmem>>, vector<32x96xbf16>
    %c0_1 = arith.constant 0 : index
    %c0_2 = arith.constant 0 : index
    %1 = vector.load %arg4[%c0_1, %c0_2] : memref<1x96xf32, #tpu.memory_space<vmem>>, vector<1x96xf32>
    %c0_3 = arith.constant 0 : index
    %c0_4 = arith.constant 0 : index
    %c0_5 = arith.constant 0 : index
    %2 = vector.load %arg1[%c0_3, %c0_4, %c0_5] : memref<8x8x32xf32, #tpu.memory_space<vmem>>, vector<8x8x32xf32>
    %3 = vector.shape_cast %2 : vector<8x8x32xf32> to vector<64x32xf32>
    %4 = arith.truncf %3 : vector<64x32xf32> to vector<64x32xbf16>
    %cst = arith.constant dense<0.000000e+00> : vector<64x96xf32>
    %5 = tpu.matmul %4, %0, %cst {dimension_numbers = #tpu.dot_dimension_numbers<[1], [0], [0], [1], [0, 0, 1, 1], [], []>} : vector<64x32xbf16>, vector<32x96xbf16>, vector<64x96xf32> -> vector<64x96xf32>
    %6 = vector.broadcast %1 : vector<1x96xf32> to vector<64x96xf32>
    %7 = arith.addf %5, %6 : vector<64x96xf32>
    %8 = vector.extract_strided_slice %7 {offsets = [0, 0], sizes = [64, 32], strides = [1, 1]} : vector<64x96xf32> to vector<64x32xf32>
    %9 = arith.truncf %7 : vector<64x96xf32> to vector<64x96xbf16>
    %10 = vector.shape_cast %9 : vector<64x96xbf16> to vector<8x8x96xbf16>
    %11 = vector.extract_strided_slice %10 {offsets = [0, 0, 0], sizes = [8, 8, 8], strides = [1, 1, 1]} : vector<8x8x96xbf16> to vector<8x8x8xbf16>
    %12 = vector.extract_strided_slice %10 {offsets = [0, 0, 8], sizes = [8, 8, 8], strides = [1, 1, 1]} : vector<8x8x96xbf16> to vector<8x8x8xbf16>
    %13 = vector.extract_strided_slice %10 {offsets = [0, 0, 16], sizes = [8, 8, 8], strides = [1, 1, 1]} : vector<8x8x96xbf16> to vector<8x8x8xbf16>
    %14 = vector.extract_strided_slice %10 {offsets = [0, 0, 24], sizes = [8, 8, 8], strides = [1, 1, 1]} : vector<8x8x96xbf16> to vector<8x8x8xbf16>
    %15 = vector.shape_cast %11 : vector<8x8x8xbf16> to vector<8x1x8x8xbf16>
    %16 = vector.shape_cast %12 : vector<8x8x8xbf16> to vector<8x1x8x8xbf16>
    %17 = vector.shape_cast %13 : vector<8x8x8xbf16> to vector<8x1x8x8xbf16>
    %18 = vector.shape_cast %14 : vector<8x8x8xbf16> to vector<8x1x8x8xbf16>
    %19 = tpu.concatenate %15, %16, %17, %18 in 1 : vector<8x1x8x8xbf16>, vector<8x1x8x8xbf16>, vector<8x1x8x8xbf16>, vector<8x1x8x8xbf16> -> vector<8x4x8x8xbf16>
    %20 = vector.shape_cast %19 : vector<8x4x8x8xbf16> to vector<32x8x8xbf16>
    %21 = vector.extract_strided_slice %10 {offsets = [0, 0, 32], sizes = [8, 8, 8], strides = [1, 1, 1]} : vector<8x8x96xbf16> to vector<8x8x8xbf16>
    %22 = vector.extract_strided_slice %10 {offsets = [0, 0, 40], sizes = [8, 8, 8], strides = [1, 1, 1]} : vector<8x8x96xbf16> to vector<8x8x8xbf16>
    %23 = vector.extract_strided_slice %10 {offsets = [0, 0, 48], sizes = [8, 8, 8], strides = [1, 1, 1]} : vector<8x8x96xbf16> to vector<8x8x8xbf16>
    %24 = vector.extract_strided_slice %10 {offsets = [0, 0, 56], sizes = [8, 8, 8], strides = [1, 1, 1]} : vector<8x8x96xbf16> to vector<8x8x8xbf16>
    %25 = vector.shape_cast %21 : vector<8x8x8xbf16> to vector<8x1x8x8xbf16>
    %26 = vector.shape_cast %22 : vector<8x8x8xbf16> to vector<8x1x8x8xbf16>
    %27 = vector.shape_cast %23 : vector<8x8x8xbf16> to vector<8x1x8x8xbf16>
    %28 = vector.shape_cast %24 : vector<8x8x8xbf16> to vector<8x1x8x8xbf16>
    %29 = tpu.concatenate %25, %26, %27, %28 in 1 : vector<8x1x8x8xbf16>, vector<8x1x8x8xbf16>, vector<8x1x8x8xbf16>, vector<8x1x8x8xbf16> -> vector<8x4x8x8xbf16>
    %30 = vector.shape_cast %29 : vector<8x4x8x8xbf16> to vector<32x8x8xbf16>
    %31 = vector.extract_strided_slice %10 {offsets = [0, 0, 64], sizes = [8, 8, 8], strides = [1, 1, 1]} : vector<8x8x96xbf16> to vector<8x8x8xbf16>
    %32 = vector.extract_strided_slice %10 {offsets = [0, 0, 72], sizes = [8, 8, 8], strides = [1, 1, 1]} : vector<8x8x96xbf16> to vector<8x8x8xbf16>
    %33 = vector.extract_strided_slice %10 {offsets = [0, 0, 80], sizes = [8, 8, 8], strides = [1, 1, 1]} : vector<8x8x96xbf16> to vector<8x8x8xbf16>
    %34 = vector.extract_strided_slice %10 {offsets = [0, 0, 88], sizes = [8, 8, 8], strides = [1, 1, 1]} : vector<8x8x96xbf16> to vector<8x8x8xbf16>
    %35 = vector.shape_cast %31 : vector<8x8x8xbf16> to vector<8x1x8x8xbf16>
    %36 = vector.shape_cast %32 : vector<8x8x8xbf16> to vector<8x1x8x8xbf16>
    %37 = vector.shape_cast %33 : vector<8x8x8xbf16> to vector<8x1x8x8xbf16>
    %38 = vector.shape_cast %34 : vector<8x8x8xbf16> to vector<8x1x8x8xbf16>
    %39 = tpu.concatenate %35, %36, %37, %38 in 1 : vector<8x1x8x8xbf16>, vector<8x1x8x8xbf16>, vector<8x1x8x8xbf16>, vector<8x1x8x8xbf16> -> vector<8x4x8x8xbf16>
    %40 = vector.shape_cast %39 : vector<8x4x8x8xbf16> to vector<32x8x8xbf16>
    "tpu.trace_start"() <{level = 10 : i32, message = "bqd,bkd->bqk"}> : () -> ()
    %cst_6 = arith.constant dense<0.000000e+00> : vector<32x8x8xf32>
    %41 = tpu.matmul %20, %30, %cst_6 {dimension_numbers = #tpu.dot_dimension_numbers<[2], [2], [1], [1], [0, 0, 0, 1, 1, 1], [0], [0]>} : vector<32x8x8xbf16>, vector<32x8x8xbf16>, vector<32x8x8xf32> -> vector<32x8x8xf32>
    "tpu.trace_stop"() : () -> ()
    %42 = vector.shape_cast %41 : vector<32x8x8xf32> to vector<8x4x8x8xf32>
    %c0_7 = arith.constant 0 : index
    %c0_8 = arith.constant 0 : index
    %c0_9 = arith.constant 0 : index
    %c0_10 = arith.constant 0 : index
    %43 = vector.load %arg2[%c0_7, %c0_8, %c0_9, %c0_10] : memref<8x1x8x8xi8, #tpu.memory_space<vmem>>, vector<8x1x8x8xi8>
    %c0_i8 = arith.constant 0 : i8
    %44 = vector.broadcast %c0_i8 : i8 to vector<8x1x8x8xi8>
    %45 = arith.cmpi ne, %43, %44 : vector<8x1x8x8xi8>
    %cst_11 = arith.constant -1.000000e+09 : f32
    %46 = vector.shape_cast %45 : vector<8x1x8x8xi1> to vector<8x1x8x8xi1>
    %47 = vector.broadcast %46 : vector<8x1x8x8xi1> to vector<8x4x8x8xi1>
    %48 = vector.broadcast %cst_11 : f32 to vector<8x4x8x8xf32>
    %49 = arith.select %47, %48, %42 : vector<8x4x8x8xi1>, vector<8x4x8x8xf32>
    %cst_12 = arith.constant dense<0xFF800000> : vector<8x4x8xf32>
    %50 = vector.multi_reduction <maximumf>, %49, %cst_12 [3] : vector<8x4x8x8xf32> to vector<8x4x8xf32>
    %51 = vector.shape_cast %50 : vector<8x4x8xf32> to vector<8x4x8x1xf32>
    %52 = vector.broadcast %51 : vector<8x4x8x1xf32> to vector<8x4x8x8xf32>
    %53 = arith.subf %49, %52 : vector<8x4x8x8xf32>
    %54 = math.exp %53 : vector<8x4x8x8xf32>
    %cst_13 = arith.constant dense<0.000000e+00> : vector<8x4x8xf32>
    %55 = vector.multi_reduction <add>, %54, %cst_13 [3] : vector<8x4x8x8xf32> to vector<8x4x8xf32>
    %56 = vector.shape_cast %55 : vector<8x4x8xf32> to vector<8x4x8x1xf32>
    %57 = tpu.reciprocal %56 : vector<8x4x8x1xf32> -> vector<8x4x8x1xf32>
    %58 = vector.broadcast %57 : vector<8x4x8x1xf32> to vector<8x4x8x8xf32>
    %59 = arith.mulf %54, %58 : vector<8x4x8x8xf32>
    %c0_14 = arith.constant 0 : index
    %c0_15 = arith.constant 0 : index
    %c0_16 = arith.constant 0 : index
    %c0_17 = arith.constant 0 : index
    %60 = vector.load %arg10[%c0_14, %c0_15, %c0_16, %c0_17] : memref<8x4x8x8xf32, #tpu.memory_space<vmem>>, vector<8x4x8x8xf32>
    tpu.vector_store %arg10[%c0_14, %c0_15, %c0_16, %c0_17], %59 {strides = array<i32>} : memref<8x4x8x8xf32, #tpu.memory_space<vmem>>, vector<8x4x8x8xf32>,
    %61 = vector.shape_cast %59 : vector<8x4x8x8xf32> to vector<32x8x8xf32>
    %62 = arith.truncf %61 : vector<32x8x8xf32> to vector<32x8x8xbf16>
    "tpu.trace_start"() <{level = 10 : i32, message = "bqk,bkd->bqd"}> : () -> ()
    %cst_18 = arith.constant dense<0.000000e+00> : vector<32x8x8xf32>
    %63 = tpu.matmul %62, %40, %cst_18 {dimension_numbers = #tpu.dot_dimension_numbers<[2], [1], [1], [2], [0, 0, 0, 1, 1, 2], [0], [0]>} : vector<32x8x8xbf16>, vector<32x8x8xbf16>, vector<32x8x8xf32> -> vector<32x8x8xf32>
    "tpu.trace_stop"() : () -> ()
    %64 = vector.shape_cast %63 : vector<32x8x8xf32> to vector<8x4x8x8xf32>
    %65 = vector.extract_strided_slice %64 {offsets = [0, 0, 0, 0], sizes = [8, 1, 8, 8], strides = [1, 1, 1, 1]} : vector<8x4x8x8xf32> to vector<8x1x8x8xf32>
    %66 = vector.shape_cast %65 : vector<8x1x8x8xf32> to vector<8x8x8xf32>
    %67 = vector.extract_strided_slice %64 {offsets = [0, 1, 0, 0], sizes = [8, 1, 8, 8], strides = [1, 1, 1, 1]} : vector<8x4x8x8xf32> to vector<8x1x8x8xf32>
    %68 = vector.shape_cast %67 : vector<8x1x8x8xf32> to vector<8x8x8xf32>
    %69 = vector.extract_strided_slice %64 {offsets = [0, 2, 0, 0], sizes = [8, 1, 8, 8], strides = [1, 1, 1, 1]} : vector<8x4x8x8xf32> to vector<8x1x8x8xf32>
    %70 = vector.shape_cast %69 : vector<8x1x8x8xf32> to vector<8x8x8xf32>
    %71 = vector.extract_strided_slice %64 {offsets = [0, 3, 0, 0], sizes = [8, 1, 8, 8], strides = [1, 1, 1, 1]} : vector<8x4x8x8xf32> to vector<8x1x8x8xf32>
    %72 = vector.shape_cast %71 : vector<8x1x8x8xf32> to vector<8x8x8xf32>
    %73 = tpu.concatenate %66, %68, %70, %72 in 2 : vector<8x8x8xf32>, vector<8x8x8xf32>, vector<8x8x8xf32>, vector<8x8x8xf32> -> vector<8x8x32xf32>
    %74 = vector.shape_cast %73 : vector<8x8x32xf32> to vector<64x32xf32>
    %75 = arith.truncf %74 : vector<64x32xf32> to vector<64x32xbf16>
    %c0_19 = arith.constant 0 : index
    %c0_20 = arith.constant 0 : index
    %76 = vector.load %arg5[%c0_19, %c0_20] : memref<32x32xbf16, #tpu.memory_space<vmem>>, vector<32x32xbf16>
    %cst_21 = arith.constant dense<0.000000e+00> : vector<64x32xf32>
    %77 = tpu.matmul %75, %76, %cst_21 {dimension_numbers = #tpu.dot_dimension_numbers<[1], [0], [0], [1], [0, 0, 1, 1], [], []>} : vector<64x32xbf16>, vector<32x32xbf16>, vector<64x32xf32> -> vector<64x32xf32>
    %c0_22 = arith.constant 0 : index
    %c0_23 = arith.constant 0 : index
    %78 = vector.load %arg6[%c0_22, %c0_23] : memref<1x32xf32, #tpu.memory_space<vmem>>, vector<1x32xf32>
    %79 = vector.broadcast %78 : vector<1x32xf32> to vector<64x32xf32>
    %80 = arith.addf %77, %79 : vector<64x32xf32>
    %81 = arith.addf %80, %8 : vector<64x32xf32>
    %cst_24 = arith.constant dense<0.000000e+00> : vector<64xf32>
    %82 = vector.multi_reduction <add>, %81, %cst_24 [1] : vector<64x32xf32> to vector<64xf32>
    %83 = vector.shape_cast %82 : vector<64xf32> to vector<64x1xf32>
    %cst_25 = arith.constant 3.200000e+01 : f32
    %84 = vector.broadcast %cst_25 : f32 to vector<64x1xf32>
    %85 = arith.divf %83, %84 : vector<64x1xf32>
    %86 = vector.broadcast %85 : vector<64x1xf32> to vector<64x32xf32>
    %87 = arith.subf %81, %86 : vector<64x32xf32>
    %88 = arith.mulf %87, %87 : vector<64x32xf32>
    %cst_26 = arith.constant dense<0.000000e+00> : vector<64xf32>
    %89 = vector.multi_reduction <add>, %88, %cst_26 [1] : vector<64x32xf32> to vector<64xf32>
    %90 = vector.shape_cast %89 : vector<64xf32> to vector<64x1xf32>
    %cst_27 = arith.constant 3.200000e+01 : f32
    %91 = vector.broadcast %cst_27 : f32 to vector<64x1xf32>
    %92 = arith.divf %90, %91 : vector<64x1xf32>
    %93 = vector.broadcast %85 : vector<64x1xf32> to vector<64x32xf32>
    %94 = arith.subf %81, %93 : vector<64x32xf32>
    %cst_28 = arith.constant 9.99999974E-6 : f32
    %95 = vector.broadcast %cst_28 : f32 to vector<64x1xf32>
    %96 = arith.addf %92, %95 : vector<64x1xf32>
    %97 = math.rsqrt %96 : vector<64x1xf32>
    %98 = vector.broadcast %97 : vector<64x1xf32> to vector<64x32xf32>
    %99 = arith.mulf %94, %98 : vector<64x32xf32>
    %c0_29 = arith.constant 0 : index
    %c0_30 = arith.constant 0 : index
    %100 = vector.load %arg7[%c0_29, %c0_30] : memref<1x32xf32, #tpu.memory_space<vmem>>, vector<1x32xf32>
    %101 = vector.broadcast %100 : vector<1x32xf32> to vector<64x32xf32>
    %102 = arith.mulf %99, %101 : vector<64x32xf32>
    %c0_31 = arith.constant 0 : index
    %c0_32 = arith.constant 0 : index
    %103 = vector.load %arg8[%c0_31, %c0_32] : memref<1x32xf32, #tpu.memory_space<vmem>>, vector<1x32xf32>
    %104 = vector.broadcast %103 : vector<1x32xf32> to vector<64x32xf32>
    %105 = arith.addf %102, %104 : vector<64x32xf32>
    %106 = vector.shape_cast %105 : vector<64x32xf32> to vector<8x8x32xf32>
    %c0_33 = arith.constant 0 : index
    %c0_34 = arith.constant 0 : index
    %c0_35 = arith.constant 0 : index
    %107 = vector.load %arg9[%c0_33, %c0_34, %c0_35] : memref<8x8x32xf32, #tpu.memory_space<vmem>>, vector<8x8x32xf32>
    tpu.vector_store %arg9[%c0_33, %c0_34, %c0_35], %106 {strides = array<i32>} : memref<8x8x32xf32, #tpu.memory_space<vmem>>, vector<8x8x32xf32>,
    return
  }
  func.func @transform_0(%arg0: i32) -> (i32, i32, i32) {
    %c0_i32 = arith.constant 0 : i32
    %c0_i32_0 = arith.constant 0 : i32
    %c0_i32_1 = arith.constant 0 : i32
    return %arg0, %c0_i32, %c0_i32_0 : i32, i32, i32
  }
  func.func @transform_1(%arg0: i32) -> (i32, i32, i32, i32) {
    %c0_i32 = arith.constant 0 : i32
    %c0_i32_0 = arith.constant 0 : i32
    %c0_i32_1 = arith.constant 0 : i32
    %c0_i32_2 = arith.constant 0 : i32
    return %arg0, %c0_i32, %c0_i32_0, %c0_i32_1 : i32, i32, i32, i32
  }
  func.func @transform_2(%arg0: i32) -> (i32, i32) {
    %c0_i32 = arith.constant 0 : i32
    %c0_i32_0 = arith.constant 0 : i32
    %c0_i32_1 = arith.constant 0 : i32
    return %c0_i32, %c0_i32_0 : i32, i32
  }
  func.func @transform_3(%arg0: i32) -> (i32, i32) {
    %c0_i32 = arith.constant 0 : i32
    %c0_i32_0 = arith.constant 0 : i32
    %c0_i32_1 = arith.constant 0 : i32
    return %c0_i32, %c0_i32_0 : i32, i32
  }
  func.func @transform_4(%arg0: i32) -> (i32, i32) {
    %c0_i32 = arith.constant 0 : i32
    %c0_i32_0 = arith.constant 0 : i32
    %c0_i32_1 = arith.constant 0 : i32
    return %c0_i32, %c0_i32_0 : i32, i32
  }
  func.func @transform_5(%arg0: i32) -> (i32, i32) {
    %c0_i32 = arith.constant 0 : i32
    %c0_i32_0 = arith.constant 0 : i32
    %c0_i32_1 = arith.constant 0 : i32
    return %c0_i32, %c0_i32_0 : i32, i32
  }
  func.func @transform_6(%arg0: i32) -> (i32, i32) {
    %c0_i32 = arith.constant 0 : i32
    %c0_i32_0 = arith.constant 0 : i32
    %c0_i32_1 = arith.constant 0 : i32
    return %c0_i32, %c0_i32_0 : i32, i32
  }
  func.func @transform_7(%arg0: i32) -> (i32, i32) {
    %c0_i32 = arith.constant 0 : i32
    %c0_i32_0 = arith.constant 0 : i32
    %c0_i32_1 = arith.constant 0 : i32
    return %c0_i32, %c0_i32_0 : i32, i32
  }
  func.func @transform_8(%arg0: i32) -> (i32, i32, i32) {
    %c0_i32 = arith.constant 0 : i32
    %c0_i32_0 = arith.constant 0 : i32
    %c0_i32_1 = arith.constant 0 : i32
    return %arg0, %c0_i32, %c0_i32_0 : i32, i32, i32
  }
  func.func @transform_9(%arg0: i32) -> (i32, i32, i32, i32) {
    %c0_i32 = arith.constant 0 : i32
    %c0_i32_0 = arith.constant 0 : i32
    %c0_i32_1 = arith.constant 0 : i32
    %c0_i32_2 = arith.constant 0 : i32
    return %arg0, %c0_i32, %c0_i32_0, %c0_i32_1 : i32, i32, i32, i32
  }
}

</mosaic_0001>

<llo_original>
// kernel: tpu_custom_call.1
$region0: #{tpu_custom_call.1}
  #allocation0 [shape = 'u32[]', space=smem, size = 0x4, offset = 0x4, fixed_abs, tag = 'smem constant byte address 0x4 - core index']
  #allocation1 [shape = 'u32[144,128]{1,0:T(1,128)}', space=vmem, size = 0x12000, scoped, tag = 'internal scratch']
  %s0 = inlined_call_operand.hbm [shape: f32[8,8,32], index: 0, kind: input, shape index: {}]
  %s1 = inlined_call_operand.hbm [shape: s8[8,1,8,8], index: 1, kind: input, shape index: {}]
  %s2 = inlined_call_operand.hbm [shape: bf16[32,96], index: 2, kind: input, shape index: {}]
  %s3 = inlined_call_operand.vmem [shape: f32[1,96], index: 3, kind: input, shape index: {}]
  %s4 = inlined_call_operand.hbm [shape: bf16[32,32], index: 4, kind: input, shape index: {}]
  %s5 = inlined_call_operand.vmem [shape: f32[1,32], index: 5, kind: input, shape index: {}]
  %s6 = inlined_call_operand.vmem [shape: f32[1,32], index: 6, kind: input, shape index: {}]
  %s7 = inlined_call_operand.vmem [shape: f32[1,32], index: 7, kind: input, shape index: {}]
  %s8 = inlined_call_operand.hbm [shape: f32[8,8,32], index: 8, kind: output, shape index: {0}]
  %s9 = inlined_call_operand.hbm [shape: f32[8,4,8,8], index: 9, kind: output, shape index: {1}]
  %10 = xla_tuple %s8, %s9
  %s11 = sld [smem:[#allocation0]]
  $region66: #{tpu_custom_call.1} parent=0
    _
  %s13 = ssub.s32 1, %s11
  %s14 = scalar_select 0, %s13, %s11
  $region1: #{tpu_custom_call.1} parent=0
    #allocation2 [shape = 'u8[32768]{0}', space=vmem, size = 0x8000, scoped, tag = 'input window, operand 0, single buffered']
    #allocation3 [shape = 's32[1]{0}', space=sflag, size = 0x4, scoped, tag = 'scoped memory for tpu_custom_call.1']
    #allocation4 [shape = 's32[1]{0}', space=sflag, size = 0x4, scoped, tag = 'scoped memory for tpu_custom_call.1']
    #allocation5 [shape = 'u8[8192]{0}', space=vmem, size = 0x2000, scoped, tag = 'input window, operand 1, single buffered']
    #allocation6 [shape = 's32[1]{0}', space=sflag, size = 0x4, scoped, tag = 'scoped memory for tpu_custom_call.1']
    #allocation7 [shape = 'u8[8192]{0}', space=vmem, size = 0x2000, scoped, tag = 'input window, operand 2, single buffered']
    #allocation8 [shape = 'u8[8192]{0}', space=vmem, size = 0x2000, scoped, tag = 'input window, operand 4, single buffered']
    #allocation9 [shape = 's32[1]{0}', space=sflag, size = 0x4, scoped, tag = 'scoped memory for tpu_custom_call.1']
    #allocation10 [shape = 'u8[32768]{0}', space=vmem, size = 0x8000, scoped, tag = 'output window, operand 0, single buffered']
    #allocation11 [shape = 'u8[131072]{0}', space=vmem, size = 0x20000, scoped, tag = 'output window, operand 1, single buffered']
    #allocation12 [shape = 's32[1]{0}', space=sflag, size = 0x4, scoped, tag = 'scoped memory for tpu_custom_call.1']
    %15 = vsyncpa [#allocation3], 0
    %16 = vsyncpa [#allocation6], 0
    %17 = vsyncpa [#allocation9], 0
    %18 = vsyncpa [#allocation4], 0
    %19 = vsyncpa [#allocation12], 0
    // Predicated region
    $region2: #{tpu_custom_call.1} parent=1 // pred_check
      _
    $region3: #{tpu_custom_call.1} parent=1 // pred_check_branch
      %21 = sbr.rel (0) target = $region5
    $region4: #{tpu_custom_call.1} parent=1 // pred_region
      %s23 = ssub.s32 1024, 1024
      %24 = vsyncadd [#allocation3], %s23
      %s25 = sshll.u32 [#allocation2], 4
      %s26 = int_to_ptr.vmem [resolvable:$true] %s25
      %31 = dma.hbm_to_vmem [thread:$0]  %s0, 1024, %s26, [#allocation3], 128, 128, 8
    $region5: #{tpu_custom_call.1} parent=1 // pred_fallthru
      _
    // Predicated region
    $region6: #{tpu_custom_call.1} parent=1 // pred_check
      _
    $region7: #{tpu_custom_call.1} parent=1 // pred_check_branch
      %33 = sbr.rel (0) target = $region9
    $region8: #{tpu_custom_call.1} parent=1 // pred_region
      %s35 = ssub.s32 256, 256
      %36 = vsyncadd [#allocation6], %s35
      %s37 = sshll.u32 [#allocation5], 4
      %s38 = int_to_ptr.vmem [resolvable:$true] %s37
      %43 = dma.hbm_to_vmem [thread:$0]  %s1, 256, %s38, [#allocation6], 32, 32, 2
    $region9: #{tpu_custom_call.1} parent=1 // pred_fallthru
      _
    // Predicated region
    $region10: #{tpu_custom_call.1} parent=1 // pred_check
      _
    $region11: #{tpu_custom_call.1} parent=1 // pred_check_branch
      %45 = sbr.rel (0) target = $region13
    $region12: #{tpu_custom_call.1} parent=1 // pred_region
      %s47 = ssub.s32 256, 256
      %48 = vsyncadd [#allocation6], %s47
      %s49 = sshll.u32 [#allocation7], 4
      %s50 = int_to_ptr.vmem [resolvable:$true] %s49
      %55 = dma.hbm_to_vmem [thread:$0]  %s2, 256, %s50, [#allocation6], 64, 64, 4
    $region13: #{tpu_custom_call.1} parent=1 // pred_fallthru
      _
    // Predicated region
    $region14: #{tpu_custom_call.1} parent=1 // pred_check
      _
    $region15: #{tpu_custom_call.1} parent=1 // pred_check_branch
      %57 = sbr.rel (0) target = $region17
    $region16: #{tpu_custom_call.1} parent=1 // pred_region
      _
    $region17: #{tpu_custom_call.1} parent=1 // pred_fallthru
      _
    // Predicated region
    $region18: #{tpu_custom_call.1} parent=1 // pred_check
      _
    $region19: #{tpu_custom_call.1} parent=1 // pred_check_branch
      %59 = sbr.rel (0) target = $region21
    $region20: #{tpu_custom_call.1} parent=1 // pred_region
      %s61 = ssub.s32 256, 256
      %62 = vsyncadd [#allocation9], %s61
      %s63 = sshll.u32 [#allocation8], 4
      %s64 = int_to_ptr.vmem [resolvable:$true] %s63
      %69 = dma.hbm_to_vmem [thread:$0]  %s4, 256, %s64, [#allocation9], 64, 64, 4
    $region21: #{tpu_custom_call.1} parent=1 // pred_fallthru
      _
    // Predicated region
    $region22: #{tpu_custom_call.1} parent=1 // pred_check
      _
    $region23: #{tpu_custom_call.1} parent=1 // pred_check_branch
      %71 = sbr.rel (0) target = $region25
    $region24: #{tpu_custom_call.1} parent=1 // pred_region
      _
    $region25: #{tpu_custom_call.1} parent=1 // pred_fallthru
      _
    // Predicated region
    $region26: #{tpu_custom_call.1} parent=1 // pred_check
      _
    $region27: #{tpu_custom_call.1} parent=1 // pred_check_branch
      %73 = sbr.rel (0) target = $region29
    $region28: #{tpu_custom_call.1} parent=1 // pred_region
      _
    $region29: #{tpu_custom_call.1} parent=1 // pred_fallthru
      _
    // Predicated region
    $region30: #{tpu_custom_call.1} parent=1 // pred_check
      _
    $region31: #{tpu_custom_call.1} parent=1 // pred_check_branch
      %75 = sbr.rel (0) target = $region33
    $region32: #{tpu_custom_call.1} parent=1 // pred_region
      _
    $region33: #{tpu_custom_call.1} parent=1 // pred_fallthru
      _
    // Predicated region
    $region34: #{tpu_custom_call.1} parent=1 // pred_check
      _
    $region35: #{tpu_custom_call.1} parent=1 // pred_check_branch
      %77 = sbr.rel (0) target = $region37
    $region36: #{tpu_custom_call.1} parent=1 // pred_region
      %78 = dma.done [#allocation3], 1024
    $region37: #{tpu_custom_call.1} parent=1 // pred_fallthru
      _
    // Predicated region
    $region38: #{tpu_custom_call.1} parent=1 // pred_check
      _
    $region39: #{tpu_custom_call.1} parent=1 // pred_check_branch
      %80 = sbr.rel (0) target = $region41
    $region40: #{tpu_custom_call.1} parent=1 // pred_region
      %81 = dma.done [#allocation6], 256
    $region41: #{tpu_custom_call.1} parent=1 // pred_fallthru
      _
    // Predicated region
    $region42: #{tpu_custom_call.1} parent=1 // pred_check
      _
    $region43: #{tpu_custom_call.1} parent=1 // pred_check_branch
      %83 = sbr.rel (0) target = $region45
    $region44: #{tpu_custom_call.1} parent=1 // pred_region
      %84 = dma.done [#allocation6], 256
    $region45: #{tpu_custom_call.1} parent=1 // pred_fallthru
      _
    // Predicated region
    $region46: #{tpu_custom_call.1} parent=1 // pred_check
      _
    $region47: #{tpu_custom_call.1} parent=1 // pred_check_branch
      %86 = sbr.rel (0) target = $region49
    $region48: #{tpu_custom_call.1} parent=1 // pred_region
      %87 = dma.done [#allocation9], 256
    $region49: #{tpu_custom_call.1} parent=1 // pred_fallthru
      _
    %v91 = vld [vmem:[#allocation7] sm:$0xf]
    %v92 = vld [vmem:[#allocation7 + $0x4] sm:$0xf]
    %v93 = vld [vmem:[#allocation7 + $0x8] sm:$0xf]
    %v94 = vld [vmem:[#allocation7 + $0xc] sm:$0xf]
    %v95 = vld [vmem:[%s3] sm:$0x1]
    %v96 = vld [vmem:[#allocation2] sm:$0xff]
    %v97 = vld [vmem:[#allocation2 + $0x8] sm:$0xff]
    %v98 = vld [vmem:[#allocation2 + $0x10] sm:$0xff]
    %v99 = vld [vmem:[#allocation2 + $0x18] sm:$0xff]
    %v100 = vld [vmem:[#allocation2 + $0x20] sm:$0xff]
    %v101 = vld [vmem:[#allocation2 + $0x28] sm:$0xff]
    %v102 = vld [vmem:[#allocation2 + $0x30] sm:$0xff]
    %v103 = vld [vmem:[#allocation2 + $0x38] sm:$0xff]
    %v104 = vpack.c.bf16 %v97, %v96
    %v105 = vpack.c.bf16 %v99, %v98
    %v106 = vpack.c.bf16 %v101, %v100
    %v107 = vpack.c.bf16 %v103, %v102
    %v109 = vlaneseq
    %v110 = vshrl.u32 %v109, 7
    %v111 = vsub.s32 0, %v110
    %v112 = vrot.slane %v95, %v111
    %v118 = vunpack.c.l.b16 %v91
    %v119 = vunpack.c.l.b16 %v92
    %v120 = vunpack.c.l.b16 %v93
    %v121 = vunpack.c.l.b16 %v94
    %v122 = vpack.c.b16 %v119, %v118
    %v123 = vpack.c.b16 %v121, %v120
    %vm126 = vcmask 261120
    %v128 = vsel %vm126, %v104, 0
    %v131 = vsel %vm126, %v105, 0
    %v134 = vsel %vm126, %v106, 0
    %v137 = vsel %vm126, %v107, 0
    %139 = vmatprep.subr.bf16.mxu0 0
    %140 = vmatpush1.bf16.msra.mxu0 %v122
    %141 = vmatprep.subr.bf16.mxu0 0
    %142 = vmatpush1.bf16.msra.mxu0 %v123
    %143 = vmatprep.subr.bf16.mxu0 0
    %144 = vmatpush1.bf16.msra.mxu0 0
    %145 = vmatprep.subr.bf16.mxu0 0
    %146 = vmatpush1.bf16.msra.mxu0 0
    %147 = vmatprep.subr.bf16.mxu0 0
    %148 = vmatpush1.bf16.msra.mxu0 0
    %149 = vmatprep.subr.bf16.mxu0 0
    %150 = vmatpush1.bf16.msra.mxu0 0
    %151 = vmatprep.subr.bf16.mxu0 0
    %152 = vmatpush1.bf16.msra.mxu0 0
    %153 = vmatprep.subr.bf16.mxu0 0
    %154 = vmatpush1.bf16.msra.mxu0 0
    %155 = vmatprep.subr.bf16.mxu0 0
    %156 = vmatpush1.bf16.msra.mxu0 0
    %157 = vmatprep.subr.bf16.mxu0 0
    %158 = vmatpush1.bf16.msra.mxu0 0
    %159 = vmatprep.subr.bf16.mxu0 0
    %160 = vmatpush1.bf16.msra.mxu0 0
    %161 = vmatprep.subr.bf16.mxu0 0
    %162 = vmatpush1.bf16.msra.mxu0 0
    %163 = vmatprep.subr.bf16.mxu0 0
    %164 = vmatpush1.bf16.msra.mxu0 0
    %165 = vmatprep.subr.bf16.mxu0 0
    %166 = vmatpush1.bf16.msra.mxu0 0
    %167 = vmatprep.subr.bf16.mxu0 0
    %168 = vmatpush1.bf16.msra.mxu0 0
    %169 = vmatprep.subr.bf16.mxu0 0
    %170 = vmatpush1.bf16.msra.mxu0 0
    %171 = vmatprep.mubr.bf16.mxu0 0
    %172 = vmatmul.mubr.bf16.gmra.mrb[0].mxu0 %v128
    %v173 = vpop.f32.mrb[0].mxu0
    %v174 = vadd.f32 %v112, %v173
    %v175 = vpop.f32.mrb[0].mxu0
    %v176 = vpop.f32.mrb[0].mxu0
    %v177 = vadd.f32 %v112, %v176
    %v178 = vpop.f32.mrb[0].mxu0
    %179 = vmatprep.mubr.bf16.mxu0 0
    %180 = vmatmul.mubr.bf16.gmra.mrb[0].mxu0 %v131
    %v181 = vpop.f32.mrb[0].mxu0
    %v182 = vadd.f32 %v112, %v181
    %v183 = vpop.f32.mrb[0].mxu0
    %v184 = vpop.f32.mrb[0].mxu0
    %v185 = vadd.f32 %v112, %v184
    %v186 = vpop.f32.mrb[0].mxu0
    %187 = vmatprep.mubr.bf16.mxu0 0
    %188 = vmatmul.mubr.bf16.gmra.mrb[0].mxu0 %v134
    %v189 = vpop.f32.mrb[0].mxu0
    %v190 = vadd.f32 %v112, %v189
    %v191 = vpop.f32.mrb[0].mxu0
    %v192 = vpop.f32.mrb[0].mxu0
    %v193 = vadd.f32 %v112, %v192
    %v194 = vpop.f32.mrb[0].mxu0
    %195 = vmatprep.mubr.bf16.mxu0 0
    %196 = vmatmul.mubr.bf16.gmra.mrb[0].mxu0 %v137
    %v197 = vpop.f32.mrb[0].mxu0
    %v198 = vadd.f32 %v112, %v197
    %v199 = vpop.f32.mrb[0].mxu0
    %v200 = vpop.f32.mrb[0].mxu0
    %v201 = vadd.f32 %v112, %v200
    %v202 = vpop.f32.mrb[0].mxu0
    %203 = vdwg.mxu0
    %v204 = vpack.c.bf16 %v177, %v174
    %v205 = vpack.c.bf16 %v185, %v182
    %v206 = vpack.c.bf16 %v193, %v190
    %v207 = vpack.c.bf16 %v201, %v198
    %v212 = vunpack.c.l.b16 %v204
    %v213 = vunpack.c.h.b16 %v204
    %v214 = vunpack.c.l.b16 %v205
    %v215 = vunpack.c.h.b16 %v205
    %v216 = vunpack.c.l.b16 %v206
    %v217 = vunpack.c.h.b16 %v206
    %v218 = vunpack.c.l.b16 %v207
    %v219 = vunpack.c.h.b16 %v207
    %v220 = vpack.c.b16 %v212, %v212
    %v221 = vpack.c.b16 %v213, %v213
    %v222 = vpack.c.b16 %v214, %v214
    %v223 = vpack.c.b16 %v215, %v215
    %v224 = vpack.c.b16 %v216, %v216
    %v225 = vpack.c.b16 %v217, %v217
    %v226 = vpack.c.b16 %v218, %v218
    %v227 = vpack.c.b16 %v219, %v219
    %228 = vrot.lane.b32.xlu0 %v220, 120
    %v229 = vpop.permute.xlu0 %228
    %230 = vrot.lane.b32.xlu0 %v221, 120
    %v231 = vpop.permute.xlu0 %230
    %232 = vrot.lane.b32.xlu0 %v222, 120
    %v233 = vpop.permute.xlu0 %232
    %234 = vrot.lane.b32.xlu0 %v223, 120
    %v235 = vpop.permute.xlu0 %234
    %236 = vrot.lane.b32.xlu0 %v224, 120
    %v237 = vpop.permute.xlu0 %236
    %238 = vrot.lane.b32.xlu0 %v225, 120
    %v239 = vpop.permute.xlu0 %238
    %240 = vrot.lane.b32.xlu0 %v226, 120
    %v241 = vpop.permute.xlu0 %240
    %242 = vrot.lane.b32.xlu0 %v227, 120
    %v243 = vpop.permute.xlu0 %242
    %244 = vrot.lane.b32.xlu0 %v220, 112
    %v245 = vpop.permute.xlu0 %244
    %246 = vrot.lane.b32.xlu0 %v221, 112
    %v247 = vpop.permute.xlu0 %246
    %248 = vrot.lane.b32.xlu0 %v222, 112
    %v249 = vpop.permute.xlu0 %248
    %250 = vrot.lane.b32.xlu0 %v223, 112
    %v251 = vpop.permute.xlu0 %250
    %252 = vrot.lane.b32.xlu0 %v224, 112
    %v253 = vpop.permute.xlu0 %252
    %254 = vrot.lane.b32.xlu0 %v225, 112
    %v255 = vpop.permute.xlu0 %254
    %256 = vrot.lane.b32.xlu0 %v226, 112
    %v257 = vpop.permute.xlu0 %256
    %258 = vrot.lane.b32.xlu0 %v227, 112
    %v259 = vpop.permute.xlu0 %258
    %260 = vrot.lane.b32.xlu0 %v220, 104
    %v261 = vpop.permute.xlu0 %260
    %262 = vrot.lane.b32.xlu0 %v221, 104
    %v263 = vpop.permute.xlu0 %262
    %264 = vrot.lane.b32.xlu0 %v222, 104
    %v265 = vpop.permute.xlu0 %264
    %266 = vrot.lane.b32.xlu0 %v223, 104
    %v267 = vpop.permute.xlu0 %266
    %268 = vrot.lane.b32.xlu0 %v224, 104
    %v269 = vpop.permute.xlu0 %268
    %270 = vrot.lane.b32.xlu0 %v225, 104
    %v271 = vpop.permute.xlu0 %270
    %272 = vrot.lane.b32.xlu0 %v226, 104
    %v273 = vpop.permute.xlu0 %272
    %274 = vrot.lane.b32.xlu0 %v227, 104
    %v275 = vpop.permute.xlu0 %274
    %276 = vrot.lane.b32.xlu0 %v220, 96
    %v277 = vpop.permute.xlu0 %276
    %vm278 = vcmask 64512
    %v280 = vsel %vm278, %v220, 0
    %v283 = vsel %vm278, %v277, 0
    %285 = vmatprep.subr.bf16.mxu0 0
    %286 = vmatpush1.bf16.xpose.msra.mxu0 %v283
    %287 = vmatprep.subr.bf16.mxu0 0
    %288 = vmatpush1.bf16.xpose.msra.mxu0 0
    %289 = vmatprep.subr.bf16.mxu0 0
    %290 = vmatpush1.bf16.xpose.msra.mxu0 0
    %291 = vmatprep.subr.bf16.mxu0 0
    %292 = vmatpush1.bf16.xpose.msra.mxu0 0
    %293 = vmatprep.subr.bf16.mxu0 0
    %294 = vmatpush1.bf16.xpose.msra.mxu0 0
    %295 = vmatprep.subr.bf16.mxu0 0
    %296 = vmatpush1.bf16.xpose.msra.mxu0 0
    %297 = vmatprep.subr.bf16.mxu0 0
    %298 = vmatpush1.bf16.xpose.msra.mxu0 0
    %299 = vmatprep.subr.bf16.mxu0 0
    %300 = vmatpush1.bf16.xpose.msra.mxu0 0
    %301 = vmatprep.subr.bf16.mxu0 0
    %302 = vmatpush1.bf16.xpose.msra.mxu0 0
    %303 = vmatprep.subr.bf16.mxu0 0
    %304 = vmatpush1.bf16.xpose.msra.mxu0 0
    %305 = vmatprep.subr.bf16.mxu0 0
    %306 = vmatpush1.bf16.xpose.msra.mxu0 0
    %307 = vmatprep.subr.bf16.mxu0 0
    %308 = vmatpush1.bf16.xpose.msra.mxu0 0
    %309 = vmatprep.subr.bf16.mxu0 0
    %310 = vmatpush1.bf16.xpose.msra.mxu0 0
    %311 = vmatprep.subr.bf16.mxu0 0
    %312 = vmatpush1.bf16.xpose.msra.mxu0 0
    %313 = vmatprep.subr.bf16.mxu0 0
    %314 = vmatpush1.bf16.xpose.msra.mxu0 0
    %315 = vmatprep.subr.bf16.mxu0 0
    %316 = vmatpush1.bf16.xpose.msra.mxu0 0
    %317 = vmatprep.mubr.bf16.mxu0 0
    %318 = vmatmul.mubr.bf16.gmra.mrb[0].mxu0 %v280
    %v319 = vpop.f32.mrb[0].mxu0
    %v320 = vadd.f32 0.0, %v319
    %v321 = vpop.f32.mrb[0].mxu0
    %v322 = vpop.f32.mrb[0].mxu0
    %v323 = vpop.f32.mrb[0].mxu0
    %324 = vdwg.mxu0
    %v325 = vunpack.c.l.b16 %v229
    %v326 = vpack.c.b16 %v325, %v325
    %327 = vrot.lane.b32.xlu0 %v326, 96
    %v328 = vpop.permute.xlu0 %327
    %v330 = vsel %vm278, %v229, 0
    %v333 = vsel %vm278, %v328, 0
    %335 = vmatprep.subr.bf16.mxu0 0
    %336 = vmatpush1.bf16.xpose.msra.mxu0 %v333
    %337 = vmatprep.subr.bf16.mxu0 0
    %338 = vmatpush1.bf16.xpose.msra.mxu0 0
    %339 = vmatprep.subr.bf16.mxu0 0
    %340 = vmatpush1.bf16.xpose.msra.mxu0 0
    %341 = vmatprep.subr.bf16.mxu0 0
    %342 = vmatpush1.bf16.xpose.msra.mxu0 0
    %343 = vmatprep.subr.bf16.mxu0 0
    %344 = vmatpush1.bf16.xpose.msra.mxu0 0
    %345 = vmatprep.subr.bf16.mxu0 0
    %346 = vmatpush1.bf16.xpose.msra.mxu0 0
    %347 = vmatprep.subr.bf16.mxu0 0
    %348 = vmatpush1.bf16.xpose.msra.mxu0 0
    %349 = vmatprep.subr.bf16.mxu0 0
    %350 = vmatpush1.bf16.xpose.msra.mxu0 0
    %351 = vmatprep.subr.bf16.mxu0 0
    %352 = vmatpush1.bf16.xpose.msra.mxu0 0
    %353 = vmatprep.subr.bf16.mxu0 0
    %354 = vmatpush1.bf16.xpose.msra.mxu0 0
    %355 = vmatprep.subr.bf16.mxu0 0
    %356 = vmatpush1.bf16.xpose.msra.mxu0 0
    %357 = vmatprep.subr.bf16.mxu0 0
    %358 = vmatpush1.bf16.xpose.msra.mxu0 0
    %359 = vmatprep.subr.bf16.mxu0 0
    %360 = vmatpush1.bf16.xpose.msra.mxu0 0
    %361 = vmatprep.subr.bf16.mxu0 0
    %362 = vmatpush1.bf16.xpose.msra.mxu0 0
    %363 = vmatprep.subr.bf16.mxu0 0
    %364 = vmatpush1.bf16.xpose.msra.mxu0 0
    %365 = vmatprep.subr.bf16.mxu0 0
    %366 = vmatpush1.bf16.xpose.msra.mxu0 0
    %367 = vmatprep.mubr.bf16.mxu0 0
    %368 = vmatmul.mubr.bf16.gmra.mrb[0].mxu0 %v330
    %v369 = vpop.f32.mrb[0].mxu0
    %v370 = vadd.f32 0.0, %v369
    %v371 = vpop.f32.mrb[0].mxu0
    %v372 = vpop.f32.mrb[0].mxu0
    %v373 = vpop.f32.mrb[0].mxu0
    %374 = vdwg.mxu0
    %v375 = vunpack.c.l.b16 %v245
    %v376 = vpack.c.b16 %v375, %v375
    %377 = vrot.lane.b32.xlu0 %v376, 96
    %v378 = vpop.permute.xlu0 %377
    %v380 = vsel %vm278, %v245, 0
    %v383 = vsel %vm278, %v378, 0
    %385 = vmatprep.subr.bf16.mxu0 0
    %386 = vmatpush1.bf16.xpose.msra.mxu0 %v383
    %387 = vmatprep.subr.bf16.mxu0 0
    %388 = vmatpush1.bf16.xpose.msra.mxu0 0
    %389 = vmatprep.subr.bf16.mxu0 0
    %390 = vmatpush1.bf16.xpose.msra.mxu0 0
    %391 = vmatprep.subr.bf16.mxu0 0
    %392 = vmatpush1.bf16.xpose.msra.mxu0 0
    %393 = vmatprep.subr.bf16.mxu0 0
    %394 = vmatpush1.bf16.xpose.msra.mxu0 0
    %395 = vmatprep.subr.bf16.mxu0 0
    %396 = vmatpush1.bf16.xpose.msra.mxu0 0
    %397 = vmatprep.subr.bf16.mxu0 0
    %398 = vmatpush1.bf16.xpose.msra.mxu0 0
    %399 = vmatprep.subr.bf16.mxu0 0
    %400 = vmatpush1.bf16.xpose.msra.mxu0 0
    %401 = vmatprep.subr.bf16.mxu0 0
    %402 = vmatpush1.bf16.xpose.msra.mxu0 0
    %403 = vmatprep.subr.bf16.mxu0 0
    %404 = vmatpush1.bf16.xpose.msra.mxu0 0
    %405 = vmatprep.subr.bf16.mxu0 0
    %406 = vmatpush1.bf16.xpose.msra.mxu0 0
    %407 = vmatprep.subr.bf16.mxu0 0
    %408 = vmatpush1.bf16.xpose.msra.mxu0 0
    %409 = vmatprep.subr.bf16.mxu0 0
    %410 = vmatpush1.bf16.xpose.msra.mxu0 0
    %411 = vmatprep.subr.bf16.mxu0 0
    %412 = vmatpush1.bf16.xpose.msra.mxu0 0
    %413 = vmatprep.subr.bf16.mxu0 0
    %414 = vmatpush1.bf16.xpose.msra.mxu0 0
    %415 = vmatprep.subr.bf16.mxu0 0
    %416 = vmatpush1.bf16.xpose.msra.mxu0 0
    %417 = vmatprep.mubr.bf16.mxu0 0
    %418 = vmatmul.mubr.bf16.gmra.mrb[0].mxu0 %v380
    %v419 = vpop.f32.mrb[0].mxu0
    %v420 = vadd.f32 0.0, %v419
    %v421 = vpop.f32.mrb[0].mxu0
    %v422 = vpop.f32.mrb[0].mxu0
    %v423 = vpop.f32.mrb[0].mxu0
    %424 = vdwg.mxu0
    %v425 = vunpack.c.l.b16 %v261
    %v426 = vpack.c.b16 %v425, %v425
    %427 = vrot.lane.b32.xlu0 %v426, 96
    %v428 = vpop.permute.xlu0 %427
    %v430 = vsel %vm278, %v261, 0
    %v433 = vsel %vm278, %v428, 0
    %435 = vmatprep.subr.bf16.mxu0 0
    %436 = vmatpush1.bf16.xpose.msra.mxu0 %v433
    %437 = vmatprep.subr.bf16.mxu0 0
    %438 = vmatpush1.bf16.xpose.msra.mxu0 0
    %439 = vmatprep.subr.bf16.mxu0 0
    %440 = vmatpush1.bf16.xpose.msra.mxu0 0
    %441 = vmatprep.subr.bf16.mxu0 0
    %442 = vmatpush1.bf16.xpose.msra.mxu0 0
    %443 = vmatprep.subr.bf16.mxu0 0
    %444 = vmatpush1.bf16.xpose.msra.mxu0 0
    %445 = vmatprep.subr.bf16.mxu0 0
    %446 = vmatpush1.bf16.xpose.msra.mxu0 0
    %447 = vmatprep.subr.bf16.mxu0 0
    %448 = vmatpush1.bf16.xpose.msra.mxu0 0
    %449 = vmatprep.subr.bf16.mxu0 0
    %450 = vmatpush1.bf16.xpose.msra.mxu0 0
    %451 = vmatprep.subr.bf16.mxu0 0
    %452 = vmatpush1.bf16.xpose.msra.mxu0 0
    %453 = vmatprep.subr.bf16.mxu0 0
    %454 = vmatpush1.bf16.xpose.msra.mxu0 0
    %455 = vmatprep.subr.bf16.mxu0 0
    %456 = vmatpush1.bf16.xpose.msra.mxu0 0
    %457 = vmatprep.subr.bf16.mxu0 0
    %458 = vmatpush1.bf16.xpose.msra.mxu0 0
    %459 = vmatprep.subr.bf16.mxu0 0
    %460 = vmatpush1.bf16.xpose.msra.mxu0 0
    %461 = vmatprep.subr.bf16.mxu0 0
    %462 = vmatpush1.bf16.xpose.msra.mxu0 0
    %463 = vmatprep.subr.bf16.mxu0 0
    %464 = vmatpush1.bf16.xpose.msra.mxu0 0
    %465 = vmatprep.subr.bf16.mxu0 0
    %466 = vmatpush1.bf16.xpose.msra.mxu0 0
    %467 = vmatprep.mubr.bf16.mxu0 0
    %468 = vmatmul.mubr.bf16.gmra.mrb[0].mxu0 %v430
    %v469 = vpop.f32.mrb[0].mxu0
    %v470 = vadd.f32 0.0, %v469
    %v471 = vpop.f32.mrb[0].mxu0
    %v472 = vpop.f32.mrb[0].mxu0
    %v473 = vpop.f32.mrb[0].mxu0
    %474 = vdwg.mxu0
    %475 = vrot.lane.b32.xlu0 %v221, 96
    %v476 = vpop.permute.xlu0 %475
    %v478 = vsel %vm278, %v221, 0
    %v481 = vsel %vm278, %v476, 0
    %483 = vmatprep.subr.bf16.mxu0 0
    %484 = vmatpush1.bf16.xpose.msra.mxu0 %v481
    %485 = vmatprep.subr.bf16.mxu0 0
    %486 = vmatpush1.bf16.xpose.msra.mxu0 0
    %487 = vmatprep.subr.bf16.mxu0 0
    %488 = vmatpush1.bf16.xpose.msra.mxu0 0
    %489 = vmatprep.subr.bf16.mxu0 0
    %490 = vmatpush1.bf16.xpose.msra.mxu0 0
    %491 = vmatprep.subr.bf16.mxu0 0
    %492 = vmatpush1.bf16.xpose.msra.mxu0 0
    %493 = vmatprep.subr.bf16.mxu0 0
    %494 = vmatpush1.bf16.xpose.msra.mxu0 0
    %495 = vmatprep.subr.bf16.mxu0 0
    %496 = vmatpush1.bf16.xpose.msra.mxu0 0
    %497 = vmatprep.subr.bf16.mxu0 0
    %498 = vmatpush1.bf16.xpose.msra.mxu0 0
    %499 = vmatprep.subr.bf16.mxu0 0
    %500 = vmatpush1.bf16.xpose.msra.mxu0 0
    %501 = vmatprep.subr.bf16.mxu0 0
    %502 = vmatpush1.bf16.xpose.msra.mxu0 0
    %503 = vmatprep.subr.bf16.mxu0 0
    %504 = vmatpush1.bf16.xpose.msra.mxu0 0
    %505 = vmatprep.subr.bf16.mxu0 0
    %506 = vmatpush1.bf16.xpose.msra.mxu0 0
    %507 = vmatprep.subr.bf16.mxu0 0
    %508 = vmatpush1.bf16.xpose.msra.mxu0 0
    %509 = vmatprep.subr.bf16.mxu0 0
    %510 = vmatpush1.bf16.xpose.msra.mxu0 0
    %511 = vmatprep.subr.bf16.mxu0 0
    %512 = vmatpush1.bf16.xpose.msra.mxu0 0
    %513 = vmatprep.subr.bf16.mxu0 0
    %514 = vmatpush1.bf16.xpose.msra.mxu0 0
    %515 = vmatprep.mubr.bf16.mxu0 0
    %516 = vmatmul.mubr.bf16.gmra.mrb[0].mxu0 %v478
    %v517 = vpop.f32.mrb[0].mxu0
    %v518 = vadd.f32 0.0, %v517
    %v519 = vpop.f32.mrb[0].mxu0
    %v520 = vpop.f32.mrb[0].mxu0
    %v521 = vpop.f32.mrb[0].mxu0
    %522 = vdwg.mxu0
    %v523 = vunpack.c.l.b16 %v231
    %v524 = vpack.c.b16 %v523, %v523
    %525 = vrot.lane.b32.xlu0 %v524, 96
    %v526 = vpop.permute.xlu0 %525
    %v528 = vsel %vm278, %v231, 0
    %v531 = vsel %vm278, %v526, 0
    %533 = vmatprep.subr.bf16.mxu0 0
    %534 = vmatpush1.bf16.xpose.msra.mxu0 %v531
    %535 = vmatprep.subr.bf16.mxu0 0
    %536 = vmatpush1.bf16.xpose.msra.mxu0 0
    %537 = vmatprep.subr.bf16.mxu0 0
    %538 = vmatpush1.bf16.xpose.msra.mxu0 0
    %539 = vmatprep.subr.bf16.mxu0 0
    %540 = vmatpush1.bf16.xpose.msra.mxu0 0
    %541 = vmatprep.subr.bf16.mxu0 0
    %542 = vmatpush1.bf16.xpose.msra.mxu0 0
    %543 = vmatprep.subr.bf16.mxu0 0
    %544 = vmatpush1.bf16.xpose.msra.mxu0 0
    %545 = vmatprep.subr.bf16.mxu0 0
    %546 = vmatpush1.bf16.xpose.msra.mxu0 0
    %547 = vmatprep.subr.bf16.mxu0 0
    %548 = vmatpush1.bf16.xpose.msra.mxu0 0
    %549 = vmatprep.subr.bf16.mxu0 0
    %550 = vmatpush1.bf16.xpose.msra.mxu0 0
    %551 = vmatprep.subr.bf16.mxu0 0
    %552 = vmatpush1.bf16.xpose.msra.mxu0 0
    %553 = vmatprep.subr.bf16.mxu0 0
    %554 = vmatpush1.bf16.xpose.msra.mxu0 0
    %555 = vmatprep.subr.bf16.mxu0 0
    %556 = vmatpush1.bf16.xpose.msra.mxu0 0
    %557 = vmatprep.subr.bf16.mxu0 0
    %558 = vmatpush1.bf16.xpose.msra.mxu0 0
    %559 = vmatprep.subr.bf16.mxu0 0
    %560 = vmatpush1.bf16.xpose.msra.mxu0 0
    %561 = vmatprep.subr.bf16.mxu0 0
    %562 = vmatpush1.bf16.xpose.msra.mxu0 0
    %563 = vmatprep.subr.bf16.mxu0 0
    %564 = vmatpush1.bf16.xpose.msra.mxu0 0
    %565 = vmatprep.mubr.bf16.mxu0 0
    %566 = vmatmul.mubr.bf16.gmra.mrb[0].mxu0 %v528
    %v567 = vpop.f32.mrb[0].mxu0
    %v568 = vadd.f32 0.0, %v567
    %v569 = vpop.f32.mrb[0].mxu0
    %v570 = vpop.f32.mrb[0].mxu0
    %v571 = vpop.f32.mrb[0].mxu0
    %572 = vdwg.mxu0
    %v573 = vunpack.c.l.b16 %v247
    %v574 = vpack.c.b16 %v573, %v573
    %575 = vrot.lane.b32.xlu0 %v574, 96
    %v576 = vpop.permute.xlu0 %575
    %v578 = vsel %vm278, %v247, 0
    %v581 = vsel %vm278, %v576, 0
    %583 = vmatprep.subr.bf16.mxu0 0
    %584 = vmatpush1.bf16.xpose.msra.mxu0 %v581
    %585 = vmatprep.subr.bf16.mxu0 0
    %586 = vmatpush1.bf16.xpose.msra.mxu0 0
    %587 = vmatprep.subr.bf16.mxu0 0
    %588 = vmatpush1.bf16.xpose.msra.mxu0 0
    %589 = vmatprep.subr.bf16.mxu0 0
    %590 = vmatpush1.bf16.xpose.msra.mxu0 0
    %591 = vmatprep.subr.bf16.mxu0 0
    %592 = vmatpush1.bf16.xpose.msra.mxu0 0
    %593 = vmatprep.subr.bf16.mxu0 0
    %594 = vmatpush1.bf16.xpose.msra.mxu0 0
    %595 = vmatprep.subr.bf16.mxu0 0
    %596 = vmatpush1.bf16.xpose.msra.mxu0 0
    %597 = vmatprep.subr.bf16.mxu0 0
    %598 = vmatpush1.bf16.xpose.msra.mxu0 0
    %599 = vmatprep.subr.bf16.mxu0 0
    %600 = vmatpush1.bf16.xpose.msra.mxu0 0
    %601 = vmatprep.subr.bf16.mxu0 0
    %602 = vmatpush1.bf16.xpose.msra.mxu0 0
    %603 = vmatprep.subr.bf16.mxu0 0
    %604 = vmatpush1.bf16.xpose.msra.mxu0 0
    %605 = vmatprep.subr.bf16.mxu0 0
    %606 = vmatpush1.bf16.xpose.msra.mxu0 0
    %607 = vmatprep.subr.bf16.mxu0 0
    %608 = vmatpush1.bf16.xpose.msra.mxu0 0
    %609 = vmatprep.subr.bf16.mxu0 0
    %610 = vmatpush1.bf16.xpose.msra.mxu0 0
    %611 = vmatprep.subr.bf16.mxu0 0
    %612 = vmatpush1.bf16.xpose.msra.mxu0 0
    %613 = vmatprep.subr.bf16.mxu0 0
    %614 = vmatpush1.bf16.xpose.msra.mxu0 0
    %615 = vmatprep.mubr.bf16.mxu0 0
    %616 = vmatmul.mubr.bf16.gmra.mrb[0].mxu0 %v578
    %v617 = vpop.f32.mrb[0].mxu0
    %v618 = vadd.f32 0.0, %v617
    %v619 = vpop.f32.mrb[0].mxu0
    %v620 = vpop.f32.mrb[0].mxu0
    %v621 = vpop.f32.mrb[0].mxu0
    %622 = vdwg.mxu0
    %v623 = vunpack.c.l.b16 %v263
    %v624 = vpack.c.b16 %v623, %v623
    %625 = vrot.lane.b32.xlu0 %v624, 96
    %v626 = vpop.permute.xlu0 %625
    %v628 = vsel %vm278, %v263, 0
    %v631 = vsel %vm278, %v626, 0
    %633 = vmatprep.subr.bf16.mxu0 0
    %634 = vmatpush1.bf16.xpose.msra.mxu0 %v631
    %635 = vmatprep.subr.bf16.mxu0 0
    %636 = vmatpush1.bf16.xpose.msra.mxu0 0
    %637 = vmatprep.subr.bf16.mxu0 0
    %638 = vmatpush1.bf16.xpose.msra.mxu0 0
    %639 = vmatprep.subr.bf16.mxu0 0
    %640 = vmatpush1.bf16.xpose.msra.mxu0 0
    %641 = vmatprep.subr.bf16.mxu0 0
    %642 = vmatpush1.bf16.xpose.msra.mxu0 0
    %643 = vmatprep.subr.bf16.mxu0 0
    %644 = vmatpush1.bf16.xpose.msra.mxu0 0
    %645 = vmatprep.subr.bf16.mxu0 0
    %646 = vmatpush1.bf16.xpose.msra.mxu0 0
    %647 = vmatprep.subr.bf16.mxu0 0
    %648 = vmatpush1.bf16.xpose.msra.mxu0 0
    %649 = vmatprep.subr.bf16.mxu0 0
    %650 = vmatpush1.bf16.xpose.msra.mxu0 0
    %651 = vmatprep.subr.bf16.mxu0 0
    %652 = vmatpush1.bf16.xpose.msra.mxu0 0
    %653 = vmatprep.subr.bf16.mxu0 0
    %654 = vmatpush1.bf16.xpose.msra.mxu0 0
    %655 = vmatprep.subr.bf16.mxu0 0
    %656 = vmatpush1.bf16.xpose.msra.mxu0 0
    %657 = vmatprep.subr.bf16.mxu0 0
    %658 = vmatpush1.bf16.xpose.msra.mxu0 0
    %659 = vmatprep.subr.bf16.mxu0 0
    %660 = vmatpush1.bf16.xpose.msra.mxu0 0
    %661 = vmatprep.subr.bf16.mxu0 0
    %662 = vmatpush1.bf16.xpose.msra.mxu0 0
    %663 = vmatprep.subr.bf16.mxu0 0
    %664 = vmatpush1.bf16.xpose.msra.mxu0 0
    %665 = vmatprep.mubr.bf16.mxu0 0
    %666 = vmatmul.mubr.bf16.gmra.mrb[0].mxu0 %v628
    %v667 = vpop.f32.mrb[0].mxu0
    %v668 = vadd.f32 0.0, %v667
    %v669 = vpop.f32.mrb[0].mxu0
    %v670 = vpop.f32.mrb[0].mxu0
    %v671 = vpop.f32.mrb[0].mxu0
    %672 = vdwg.mxu0
    %673 = vrot.lane.b32.xlu0 %v222, 96
    %v674 = vpop.permute.xlu0 %673
    %v676 = vsel %vm278, %v222, 0
    %v679 = vsel %vm278, %v674, 0
    %681 = vmatprep.subr.bf16.mxu0 0
    %682 = vmatpush1.bf16.xpose.msra.mxu0 %v679
    %683 = vmatprep.subr.bf16.mxu0 0
    %684 = vmatpush1.bf16.xpose.msra.mxu0 0
    %685 = vmatprep.subr.bf16.mxu0 0
    %686 = vmatpush1.bf16.xpose.msra.mxu0 0
    %687 = vmatprep.subr.bf16.mxu0 0
    %688 = vmatpush1.bf16.xpose.msra.mxu0 0
    %689 = vmatprep.subr.bf16.mxu0 0
    %690 = vmatpush1.bf16.xpose.msra.mxu0 0
    %691 = vmatprep.subr.bf16.mxu0 0
    %692 = vmatpush1.bf16.xpose.msra.mxu0 0
    %693 = vmatprep.subr.bf16.mxu0 0
    %694 = vmatpush1.bf16.xpose.msra.mxu0 0
    %695 = vmatprep.subr.bf16.mxu0 0
    %696 = vmatpush1.bf16.xpose.msra.mxu0 0
    %697 = vmatprep.subr.bf16.mxu0 0
    %698 = vmatpush1.bf16.xpose.msra.mxu0 0
    %699 = vmatprep.subr.bf16.mxu0 0
    %700 = vmatpush1.bf16.xpose.msra.mxu0 0
    %701 = vmatprep.subr.bf16.mxu0 0
    %702 = vmatpush1.bf16.xpose.msra.mxu0 0
    %703 = vmatprep.subr.bf16.mxu0 0
    %704 = vmatpush1.bf16.xpose.msra.mxu0 0
    %705 = vmatprep.subr.bf16.mxu0 0
    %706 = vmatpush1.bf16.xpose.msra.mxu0 0
    %707 = vmatprep.subr.bf16.mxu0 0
    %708 = vmatpush1.bf16.xpose.msra.mxu0 0
    %709 = vmatprep.subr.bf16.mxu0 0
    %710 = vmatpush1.bf16.xpose.msra.mxu0 0
    %711 = vmatprep.subr.bf16.mxu0 0
    %712 = vmatpush1.bf16.xpose.msra.mxu0 0
    %713 = vmatprep.mubr.bf16.mxu0 0
    %714 = vmatmul.mubr.bf16.gmra.mrb[0].mxu0 %v676
    %v715 = vpop.f32.mrb[0].mxu0
    %v716 = vadd.f32 0.0, %v715
    %v717 = vpop.f32.mrb[0].mxu0
    %v718 = vpop.f32.mrb[0].mxu0
    %v719 = vpop.f32.mrb[0].mxu0
    %720 = vdwg.mxu0
    %v721 = vunpack.c.l.b16 %v233
    %v722 = vpack.c.b16 %v721, %v721
    %723 = vrot.lane.b32.xlu0 %v722, 96
    %v724 = vpop.permute.xlu0 %723
    %v726 = vsel %vm278, %v233, 0
    %v729 = vsel %vm278, %v724, 0
    %731 = vmatprep.subr.bf16.mxu0 0
    %732 = vmatpush1.bf16.xpose.msra.mxu0 %v729
    %733 = vmatprep.subr.bf16.mxu0 0
    %734 = vmatpush1.bf16.xpose.msra.mxu0 0
    %735 = vmatprep.subr.bf16.mxu0 0
    %736 = vmatpush1.bf16.xpose.msra.mxu0 0
    %737 = vmatprep.subr.bf16.mxu0 0
    %738 = vmatpush1.bf16.xpose.msra.mxu0 0
    %739 = vmatprep.subr.bf16.mxu0 0
    %740 = vmatpush1.bf16.xpose.msra.mxu0 0
    %741 = vmatprep.subr.bf16.mxu0 0
    %742 = vmatpush1.bf16.xpose.msra.mxu0 0
    %743 = vmatprep.subr.bf16.mxu0 0
    %744 = vmatpush1.bf16.xpose.msra.mxu0 0
    %745 = vmatprep.subr.bf16.mxu0 0
    %746 = vmatpush1.bf16.xpose.msra.mxu0 0
    %747 = vmatprep.subr.bf16.mxu0 0
    %748 = vmatpush1.bf16.xpose.msra.mxu0 0
    %749 = vmatprep.subr.bf16.mxu0 0
    %750 = vmatpush1.bf16.xpose.msra.mxu0 0
    %751 = vmatprep.subr.bf16.mxu0 0
    %752 = vmatpush1.bf16.xpose.msra.mxu0 0
    %753 = vmatprep.subr.bf16.mxu0 0
    %754 = vmatpush1.bf16.xpose.msra.mxu0 0
    %755 = vmatprep.subr.bf16.mxu0 0
    %756 = vmatpush1.bf16.xpose.msra.mxu0 0
    %757 = vmatprep.subr.bf16.mxu0 0
    %758 = vmatpush1.bf16.xpose.msra.mxu0 0
    %759 = vmatprep.subr.bf16.mxu0 0
    %760 = vmatpush1.bf16.xpose.msra.mxu0 0
    %761 = vmatprep.subr.bf16.mxu0 0
    %762 = vmatpush1.bf16.xpose.msra.mxu0 0
    %763 = vmatprep.mubr.bf16.mxu0 0
    %764 = vmatmul.mubr.bf16.gmra.mrb[0].mxu0 %v726
    %v765 = vpop.f32.mrb[0].mxu0
    %v766 = vadd.f32 0.0, %v765
    %v767 = vpop.f32.mrb[0].mxu0
    %v768 = vpop.f32.mrb[0].mxu0
    %v769 = vpop.f32.mrb[0].mxu0
    %770 = vdwg.mxu0
    %v771 = vunpack.c.l.b16 %v249
    %v772 = vpack.c.b16 %v771, %v771
    %773 = vrot.lane.b32.xlu0 %v772, 96
    %v774 = vpop.permute.xlu0 %773
    %v776 = vsel %vm278, %v249, 0
    %v779 = vsel %vm278, %v774, 0
    %781 = vmatprep.subr.bf16.mxu0 0
    %782 = vmatpush1.bf16.xpose.msra.mxu0 %v779
    %783 = vmatprep.subr.bf16.mxu0 0
    %784 = vmatpush1.bf16.xpose.msra.mxu0 0
    %785 = vmatprep.subr.bf16.mxu0 0
    %786 = vmatpush1.bf16.xpose.msra.mxu0 0
    %787 = vmatprep.subr.bf16.mxu0 0
    %788 = vmatpush1.bf16.xpose.msra.mxu0 0
    %789 = vmatprep.subr.bf16.mxu0 0
    %790 = vmatpush1.bf16.xpose.msra.mxu0 0
    %791 = vmatprep.subr.bf16.mxu0 0
    %792 = vmatpush1.bf16.xpose.msra.mxu0 0
    %793 = vmatprep.subr.bf16.mxu0 0
    %794 = vmatpush1.bf16.xpose.msra.mxu0 0
    %795 = vmatprep.subr.bf16.mxu0 0
    %796 = vmatpush1.bf16.xpose.msra.mxu0 0
    %797 = vmatprep.subr.bf16.mxu0 0
    %798 = vmatpush1.bf16.xpose.msra.mxu0 0
    %799 = vmatprep.subr.bf16.mxu0 0
    %800 = vmatpush1.bf16.xpose.msra.mxu0 0
    %801 = vmatprep.subr.bf16.mxu0 0
    %802 = vmatpush1.bf16.xpose.msra.mxu0 0
    %803 = vmatprep.subr.bf16.mxu0 0
    %804 = vmatpush1.bf16.xpose.msra.mxu0 0
    %805 = vmatprep.subr.bf16.mxu0 0
    %806 = vmatpush1.bf16.xpose.msra.mxu0 0
    %807 = vmatprep.subr.bf16.mxu0 0
    %808 = vmatpush1.bf16.xpose.msra.mxu0 0
    %809 = vmatprep.subr.bf16.mxu0 0
    %810 = vmatpush1.bf16.xpose.msra.mxu0 0
    %811 = vmatprep.subr.bf16.mxu0 0
    %812 = vmatpush1.bf16.xpose.msra.mxu0 0
    %813 = vmatprep.mubr.bf16.mxu0 0
    %814 = vmatmul.mubr.bf16.gmra.mrb[0].mxu0 %v776
    %v815 = vpop.f32.mrb[0].mxu0
    %v816 = vadd.f32 0.0, %v815
    %v817 = vpop.f32.mrb[0].mxu0
    %v818 = vpop.f32.mrb[0].mxu0
    %v819 = vpop.f32.mrb[0].mxu0
    %820 = vdwg.mxu0
    %v821 = vunpack.c.l.b16 %v265
    %v822 = vpack.c.b16 %v821, %v821
    %823 = vrot.lane.b32.xlu0 %v822, 96
    %v824 = vpop.permute.xlu0 %823
    %v826 = vsel %vm278, %v265, 0
    %v829 = vsel %vm278, %v824, 0
    %831 = vmatprep.subr.bf16.mxu0 0
    %832 = vmatpush1.bf16.xpose.msra.mxu0 %v829
    %833 = vmatprep.subr.bf16.mxu0 0
    %834 = vmatpush1.bf16.xpose.msra.mxu0 0
    %835 = vmatprep.subr.bf16.mxu0 0
    %836 = vmatpush1.bf16.xpose.msra.mxu0 0
    %837 = vmatprep.subr.bf16.mxu0 0
    %838 = vmatpush1.bf16.xpose.msra.mxu0 0
    %839 = vmatprep.subr.bf16.mxu0 0
    %840 = vmatpush1.bf16.xpose.msra.mxu0 0
    %841 = vmatprep.subr.bf16.mxu0 0
    %842 = vmatpush1.bf16.xpose.msra.mxu0 0
    %843 = vmatprep.subr.bf16.mxu0 0
    %844 = vmatpush1.bf16.xpose.msra.mxu0 0
    %845 = vmatprep.subr.bf16.mxu0 0
    %846 = vmatpush1.bf16.xpose.msra.mxu0 0
    %847 = vmatprep.subr.bf16.mxu0 0
    %848 = vmatpush1.bf16.xpose.msra.mxu0 0
    %849 = vmatprep.subr.bf16.mxu0 0
    %850 = vmatpush1.bf16.xpose.msra.mxu0 0
    %851 = vmatprep.subr.bf16.mxu0 0
    %852 = vmatpush1.bf16.xpose.msra.mxu0 0
    %853 = vmatprep.subr.bf16.mxu0 0
    %854 = vmatpush1.bf16.xpose.msra.mxu0 0
    %855 = vmatprep.subr.bf16.mxu0 0
    %856 = vmatpush1.bf16.xpose.msra.mxu0 0
    %857 = vmatprep.subr.bf16.mxu0 0
    %858 = vmatpush1.bf16.xpose.msra.mxu0 0
    %859 = vmatprep.subr.bf16.mxu0 0
    %860 = vmatpush1.bf16.xpose.msra.mxu0 0
    %861 = vmatprep.subr.bf16.mxu0 0
    %862 = vmatpush1.bf16.xpose.msra.mxu0 0
    %863 = vmatprep.mubr.bf16.mxu0 0
    %864 = vmatmul.mubr.bf16.gmra.mrb[0].mxu0 %v826
    %v865 = vpop.f32.mrb[0].mxu0
    %v866 = vadd.f32 0.0, %v865
    %v867 = vpop.f32.mrb[0].mxu0
    %v868 = vpop.f32.mrb[0].mxu0
    %v869 = vpop.f32.mrb[0].mxu0
    %870 = vdwg.mxu0
    %871 = vrot.lane.b32.xlu0 %v223, 96
    %v872 = vpop.permute.xlu0 %871
    %v874 = vsel %vm278, %v223, 0
    %v877 = vsel %vm278, %v872, 0
    %879 = vmatprep.subr.bf16.mxu0 0
    %880 = vmatpush1.bf16.xpose.msra.mxu0 %v877
    %881 = vmatprep.subr.bf16.mxu0 0
    %882 = vmatpush1.bf16.xpose.msra.mxu0 0
    %883 = vmatprep.subr.bf16.mxu0 0
    %884 = vmatpush1.bf16.xpose.msra.mxu0 0
    %885 = vmatprep.subr.bf16.mxu0 0
    %886 = vmatpush1.bf16.xpose.msra.mxu0 0
    %887 = vmatprep.subr.bf16.mxu0 0
    %888 = vmatpush1.bf16.xpose.msra.mxu0 0
    %889 = vmatprep.subr.bf16.mxu0 0
    %890 = vmatpush1.bf16.xpose.msra.mxu0 0
    %891 = vmatprep.subr.bf16.mxu0 0
    %892 = vmatpush1.bf16.xpose.msra.mxu0 0
    %893 = vmatprep.subr.bf16.mxu0 0
    %894 = vmatpush1.bf16.xpose.msra.mxu0 0
    %895 = vmatprep.subr.bf16.mxu0 0
    %896 = vmatpush1.bf16.xpose.msra.mxu0 0
    %897 = vmatprep.subr.bf16.mxu0 0
    %898 = vmatpush1.bf16.xpose.msra.mxu0 0
    %899 = vmatprep.subr.bf16.mxu0 0
    %900 = vmatpush1.bf16.xpose.msra.mxu0 0
    %901 = vmatprep.subr.bf16.mxu0 0
    %902 = vmatpush1.bf16.xpose.msra.mxu0 0
    %903 = vmatprep.subr.bf16.mxu0 0
    %904 = vmatpush1.bf16.xpose.msra.mxu0 0
    %905 = vmatprep.subr.bf16.mxu0 0
    %906 = vmatpush1.bf16.xpose.msra.mxu0 0
    %907 = vmatprep.subr.bf16.mxu0 0
    %908 = vmatpush1.bf16.xpose.msra.mxu0 0
    %909 = vmatprep.subr.bf16.mxu0 0
    %910 = vmatpush1.bf16.xpose.msra.mxu0 0
    %911 = vmatprep.mubr.bf16.mxu0 0
    %912 = vmatmul.mubr.bf16.gmra.mrb[0].mxu0 %v874
    %v913 = vpop.f32.mrb[0].mxu0
    %v914 = vadd.f32 0.0, %v913
    %v915 = vpop.f32.mrb[0].mxu0
    %v916 = vpop.f32.mrb[0].mxu0
    %v917 = vpop.f32.mrb[0].mxu0
    %918 = vdwg.mxu0
    %v919 = vunpack.c.l.b16 %v235
    %v920 = vpack.c.b16 %v919, %v919
    %921 = vrot.lane.b32.xlu0 %v920, 96
    %v922 = vpop.permute.xlu0 %921
    %v924 = vsel %vm278, %v235, 0
    %v927 = vsel %vm278, %v922, 0
    %929 = vmatprep.subr.bf16.mxu0 0
    %930 = vmatpush1.bf16.xpose.msra.mxu0 %v927
    %931 = vmatprep.subr.bf16.mxu0 0
    %932 = vmatpush1.bf16.xpose.msra.mxu0 0
    %933 = vmatprep.subr.bf16.mxu0 0
    %934 = vmatpush1.bf16.xpose.msra.mxu0 0
    %935 = vmatprep.subr.bf16.mxu0 0
    %936 = vmatpush1.bf16.xpose.msra.mxu0 0
    %937 = vmatprep.subr.bf16.mxu0 0
    %938 = vmatpush1.bf16.xpose.msra.mxu0 0
    %939 = vmatprep.subr.bf16.mxu0 0
    %940 = vmatpush1.bf16.xpose.msra.mxu0 0
    %941 = vmatprep.subr.bf16.mxu0 0
    %942 = vmatpush1.bf16.xpose.msra.mxu0 0
    %943 = vmatprep.subr.bf16.mxu0 0
    %944 = vmatpush1.bf16.xpose.msra.mxu0 0
    %945 = vmatprep.subr.bf16.mxu0 0
    %946 = vmatpush1.bf16.xpose.msra.mxu0 0
    %947 = vmatprep.subr.bf16.mxu0 0
    %948 = vmatpush1.bf16.xpose.msra.mxu0 0
    %949 = vmatprep.subr.bf16.mxu0 0
    %950 = vmatpush1.bf16.xpose.msra.mxu0 0
    %951 = vmatprep.subr.bf16.mxu0 0
    %952 = vmatpush1.bf16.xpose.msra.mxu0 0
    %953 = vmatprep.subr.bf16.mxu0 0
    %954 = vmatpush1.bf16.xpose.msra.mxu0 0
    %955 = vmatprep.subr.bf16.mxu0 0
    %956 = vmatpush1.bf16.xpose.msra.mxu0 0
    %957 = vmatprep.subr.bf16.mxu0 0
    %958 = vmatpush1.bf16.xpose.msra.mxu0 0
    %959 = vmatprep.subr.bf16.mxu0 0
    %960 = vmatpush1.bf16.xpose.msra.mxu0 0
    %961 = vmatprep.mubr.bf16.mxu0 0
    %962 = vmatmul.mubr.bf16.gmra.mrb[0].mxu0 %v924
    %v963 = vpop.f32.mrb[0].mxu0
    %v964 = vadd.f32 0.0, %v963
    %v965 = vpop.f32.mrb[0].mxu0
    %v966 = vpop.f32.mrb[0].mxu0
    %v967 = vpop.f32.mrb[0].mxu0
    %968 = vdwg.mxu0
    %v969 = vunpack.c.l.b16 %v251
    %v970 = vpack.c.b16 %v969, %v969
    %971 = vrot.lane.b32.xlu0 %v970, 96
    %v972 = vpop.permute.xlu0 %971
    %v974 = vsel %vm278, %v251, 0
    %v977 = vsel %vm278, %v972, 0
    %979 = vmatprep.subr.bf16.mxu0 0
    %980 = vmatpush1.bf16.xpose.msra.mxu0 %v977
    %981 = vmatprep.subr.bf16.mxu0 0
    %982 = vmatpush1.bf16.xpose.msra.mxu0 0
    %983 = vmatprep.subr.bf16.mxu0 0
    %984 = vmatpush1.bf16.xpose.msra.mxu0 0
    %985 = vmatprep.subr.bf16.mxu0 0
    %986 = vmatpush1.bf16.xpose.msra.mxu0 0
    %987 = vmatprep.subr.bf16.mxu0 0
    %988 = vmatpush1.bf16.xpose.msra.mxu0 0
    %989 = vmatprep.subr.bf16.mxu0 0
    %990 = vmatpush1.bf16.xpose.msra.mxu0 0
    %991 = vmatprep.subr.bf16.mxu0 0
    %992 = vmatpush1.bf16.xpose.msra.mxu0 0
    %993 = vmatprep.subr.bf16.mxu0 0
    %994 = vmatpush1.bf16.xpose.msra.mxu0 0
    %995 = vmatprep.subr.bf16.mxu0 0
    %996 = vmatpush1.bf16.xpose.msra.mxu0 0
    %997 = vmatprep.subr.bf16.mxu0 0
    %998 = vmatpush1.bf16.xpose.msra.mxu0 0
    %999 = vmatprep.subr.bf16.mxu0 0
    %1000 = vmatpush1.bf16.xpose.msra.mxu0 0
    %1001 = vmatprep.subr.bf16.mxu0 0
    %1002 = vmatpush1.bf16.xpose.msra.mxu0 0
    %1003 = vmatprep.subr.bf16.mxu0 0
    %1004 = vmatpush1.bf16.xpose.msra.mxu0 0
    %1005 = vmatprep.subr.bf16.mxu0 0
    %1006 = vmatpush1.bf16.xpose.msra.mxu0 0
    %1007 = vmatprep.subr.bf16.mxu0 0
    %1008 = vmatpush1.bf16.xpose.msra.mxu0 0
    %1009 = vmatprep.subr.bf16.mxu0 0
    %1010 = vmatpush1.bf16.xpose.msra.mxu0 0
    %1011 = vmatprep.mubr.bf16.mxu0 0
    %1012 = vmatmul.mubr.bf16.gmra.mrb[0].mxu0 %v974
    %v1013 = vpop.f32.mrb[0].mxu0
    %v1014 = vadd.f32 0.0, %v1013
    %v1015 = vpop.f32.mrb[0].mxu0
    %v1016 = vpop.f32.mrb[0].mxu0
    %v1017 = vpop.f32.mrb[0].mxu0
    %1018 = vdwg.mxu0
    %v1019 = vunpack.c.l.b16 %v267
    %v1020 = vpack.c.b16 %v1019, %v1019
    %1021 = vrot.lane.b32.xlu0 %v1020, 96
    %v1022 = vpop.permute.xlu0 %1021
    %v1024 = vsel %vm278, %v267, 0
    %v1027 = vsel %vm278, %v1022, 0
    %1029 = vmatprep.subr.bf16.mxu0 0
    %1030 = vmatpush1.bf16.xpose.msra.mxu0 %v1027
    %1031 = vmatprep.subr.bf16.mxu0 0
    %1032 = vmatpush1.bf16.xpose.msra.mxu0 0
    %1033 = vmatprep.subr.bf16.mxu0 0
    %1034 = vmatpush1.bf16.xpose.msra.mxu0 0
    %1035 = vmatprep.subr.bf16.mxu0 0
    %1036 = vmatpush1.bf16.xpose.msra.mxu0 0
    %1037 = vmatprep.subr.bf16.mxu0 0
    %1038 = vmatpush1.bf16.xpose.msra.mxu0 0
    %1039 = vmatprep.subr.bf16.mxu0 0
    %1040 = vmatpush1.bf16.xpose.msra.mxu0 0
    %1041 = vmatprep.subr.bf16.mxu0 0
    %1042 = vmatpush1.bf16.xpose.msra.mxu0 0
    %1043 = vmatprep.subr.bf16.mxu0 0
    %1044 = vmatpush1.bf16.xpose.msra.mxu0 0
    %1045 = vmatprep.subr.bf16.mxu0 0
    %1046 = vmatpush1.bf16.xpose.msra.mxu0 0
    %1047 = vmatprep.subr.bf16.mxu0 0
    %1048 = vmatpush1.bf16.xpose.msra.mxu0 0
    %1049 = vmatprep.subr.bf16.mxu0 0
    %1050 = vmatpush1.bf16.xpose.msra.mxu0 0
    %1051 = vmatprep.subr.bf16.mxu0 0
    %1052 = vmatpush1.bf16.xpose.msra.mxu0 0
    %1053 = vmatprep.subr.bf16.mxu0 0
    %1054 = vmatpush1.bf16.xpose.msra.mxu0 0
    %1055 = vmatprep.subr.bf16.mxu0 0
    %1056 = vmatpush1.bf16.xpose.msra.mxu0 0
    %1057 = vmatprep.subr.bf16.mxu0 0
    %1058 = vmatpush1.bf16.xpose.msra.mxu0 0
    %1059 = vmatprep.subr.bf16.mxu0 0
    %1060 = vmatpush1.bf16.xpose.msra.mxu0 0
    %1061 = vmatprep.mubr.bf16.mxu0 0
    %1062 = vmatmul.mubr.bf16.gmra.mrb[0].mxu0 %v1024
    %v1063 = vpop.f32.mrb[0].mxu0
    %v1064 = vadd.f32 0.0, %v1063
    %v1065 = vpop.f32.mrb[0].mxu0
    %v1066 = vpop.f32.mrb[0].mxu0
    %v1067 = vpop.f32.mrb[0].mxu0
    %1068 = vdwg.mxu0
    %1069 = vrot.lane.b32.xlu0 %v224, 96
    %v1070 = vpop.permute.xlu0 %1069
    %v1072 = vsel %vm278, %v224, 0
    %v1075 = vsel %vm278, %v1070, 0
    %1077 = vmatprep.subr.bf16.mxu0 0
    %1078 = vmatpush1.bf16.xpose.msra.mxu0 %v1075
    %1079 = vmatprep.subr.bf16.mxu0 0
    %1080 = vmatpush1.bf16.xpose.msra.mxu0 0
    %1081 = vmatprep.subr.bf16.mxu0 0
    %1082 = vmatpush1.bf16.xpose.msra.mxu0 0
    %1083 = vmatprep.subr.bf16.mxu0 0
    %1084 = vmatpush1.bf16.xpose.msra.mxu0 0
    %1085 = vmatprep.subr.bf16.mxu0 0
    %1086 = vmatpush1.bf16.xpose.msra.mxu0 0
    %1087 = vmatprep.subr.bf16.mxu0 0
    %1088 = vmatpush1.bf16.xpose.msra.mxu0 0
    %1089 = vmatprep.subr.bf16.mxu0 0
    %1090 = vmatpush1.bf16.xpose.msra.mxu0 0
    %1091 = vmatprep.subr.bf16.mxu0 0
    %1092 = vmatpush1.bf16.xpose.msra.mxu0 0
    %1093 = vmatprep.subr.bf16.mxu0 0
    %1094 = vmatpush1.bf16.xpose.msra.mxu0 0
    %1095 = vmatprep.subr.bf16.mxu0 0
    %1096 = vmatpush1.bf16.xpose.msra.mxu0 0
    %1097 = vmatprep.subr.bf16.mxu0 0
    %1098 = vmatpush1.bf16.xpose.msra.mxu0 0
    %1099 = vmatprep.subr.bf16.mxu0 0
    %1100 = vmatpush1.bf16.xpose.msra.mxu0 0
    %1101 = vmatprep.subr.bf16.mxu0 0
    %1102 = vmatpush1.bf16.xpose.msra.mxu0 0
    %1103 = vmatprep.subr.bf16.mxu0 0
    %1104 = vmatpush1.bf16.xpose.msra.mxu0 0
    %1105 = vmatprep.subr.bf16.mxu0 0
    %1106 = vmatpush1.bf16.xpose.msra.mxu0 0
    %1107 = vmatprep.subr.bf16.mxu0 0
    %1108 = vmatpush1.bf16.xpose.msra.mxu0 0
    %1109 = vmatprep.mubr.bf16.mxu0 0
    %1110 = vmatmul.mubr.bf16.gmra.mrb[0].mxu0 %v1072
    %v1111 = vpop.f32.mrb[0].mxu0
    %v1112 = vadd.f32 0.0, %v1111
    %v1113 = vpop.f32.mrb[0].mxu0
    %v1114 = vpop.f32.mrb[0].mxu0
    %v1115 = vpop.f32.mrb[0].mxu0
    %1116 = vdwg.mxu0
    %v1117 = vunpack.c.l.b16 %v237
    %v1118 = vpack.c.b16 %v1117, %v1117
    %1119 = vrot.lane.b32.xlu0 %v1118, 96
    %v1120 = vpop.permute.xlu0 %1119
    %v1122 = vsel %vm278, %v237, 0
    %v1125 = vsel %vm278, %v1120, 0
    %1127 = vmatprep.subr.bf16.mxu0 0
    %1128 = vmatpush1.bf16.xpose.msra.mxu0 %v1125
    %1129 = vmatprep.subr.bf16.mxu0 0
    %1130 = vmatpush1.bf16.xpose.msra.mxu0 0
    %1131 = vmatprep.subr.bf16.mxu0 0
    %1132 = vmatpush1.bf16.xpose.msra.mxu0 0
    %1133 = vmatprep.subr.bf16.mxu0 0
    %1134 = vmatpush1.bf16.xpose.msra.mxu0 0
    %1135 = vmatprep.subr.bf16.mxu0 0
    %1136 = vmatpush1.bf16.xpose.msra.mxu0 0
    %1137 = vmatprep.subr.bf16.mxu0 0
    %1138 = vmatpush1.bf16.xpose.msra.mxu0 0
    %1139 = vmatprep.subr.bf16.mxu0 0
    %1140 = vmatpush1.bf16.xpose.msra.mxu0 0
    %1141 = vmatprep.subr.bf16.mxu0 0
    %1142 = vmatpush1.bf16.xpose.msra.mxu0 0
    %1143 = vmatprep.subr.bf16.mxu0 0
    %1144 = vmatpush1.bf16.xpose.msra.mxu0 0
    %1145 = vmatprep.subr.bf16.mxu0 0
    %1146 = vmatpush1.bf16.xpose.msra.mxu0 0
    %1147 = vmatprep.subr.bf16.mxu0 0
    %1148 = vmatpush1.bf16.xpose.msra.mxu0 0
    %1149 = vmatprep.subr.bf16.mxu0 0
    %1150 = vmatpush1.bf16.xpose.msra.mxu0 0
    %1151 = vmatprep.subr.bf16.mxu0 0
    %1152 = vmatpush1.bf16.xpose.msra.mxu0 0
    %1153 = vmatprep.subr.bf16.mxu0 0
    %1154 = vmatpush1.bf16.xpose.msra.mxu0 0
    %1155 = vmatprep.subr.bf16.mxu0 0
    %1156 = vmatpush1.bf16.xpose.msra.mxu0 0
    %1157 = vmatprep.subr.bf16.mxu0 0
    %1158 = vmatpush1.bf16.xpose.msra.mxu0 0
    %1159 = vmatprep.mubr.bf16.mxu0 0
    %1160 = vmatmul.mubr.bf16.gmra.mrb[0].mxu0 %v1122
    %v1161 = vpop.f32.mrb[0].mxu0
    %v1162 = vadd.f32 0.0, %v1161
    %v1163 = vpop.f32.mrb[0].mxu0
    %v1164 = vpop.f32.mrb[0].mxu0
    %v1165 = vpop.f32.mrb[0].mxu0
    %1166 = vdwg.mxu0
    %v1167 = vunpack.c.l.b16 %v253
    %v1168 = vpack.c.b16 %v1167, %v1167
    %1169 = vrot.lane.b32.xlu0 %v1168, 96
    %v1170 = vpop.permute.xlu0 %1169
    %v1172 = vsel %vm278, %v253, 0
    %v1175 = vsel %vm278, %v1170, 0
    %1177 = vmatprep.subr.bf16.mxu0 0
    %1178 = vmatpush1.bf16.xpose.msra.mxu0 %v1175
    %1179 = vmatprep.subr.bf16.mxu0 0
    %1180 = vmatpush1.bf16.xpose.msra.mxu0 0
    %1181 = vmatprep.subr.bf16.mxu0 0
    %1182 = vmatpush1.bf16.xpose.msra.mxu0 0
    %1183 = vmatprep.subr.bf16.mxu0 0
    %1184 = vmatpush1.bf16.xpose.msra.mxu0 0
    %1185 = vmatprep.subr.bf16.mxu0 0
    %1186 = vmatpush1.bf16.xpose.msra.mxu0 0
    %1187 = vmatprep.subr.bf16.mxu0 0
    %1188 = vmatpush1.bf16.xpose.msra.mxu0 0
    %1189 = vmatprep.subr.bf16.mxu0 0
    %1190 = vmatpush1.bf16.xpose.msra.mxu0 0
    %1191 = vmatprep.subr.bf16.mxu0 0
    %1192 = vmatpush1.bf16.xpose.msra.mxu0 0
    %1193 = vmatprep.subr.bf16.mxu0 0
    %1194 = vmatpush1.bf16.xpose.msra.mxu0 0
    %1195 = vmatprep.subr.bf16.mxu0 0
    %1196 = vmatpush1.bf16.xpose.msra.mxu0 0
    %1197 = vmatprep.subr.bf16.mxu0 0
    %1198 = vmatpush1.bf16.xpose.msra.mxu0 0
    %1199 = vmatprep.subr.bf16.mxu0 0
    %1200 = vmatpush1.bf16.xpose.msra.mxu0 0
    %1201 = vmatprep.subr.bf16.mxu0 0
    %1202 = vmatpush1.bf16.xpose.msra.mxu0 0
    %1203 = vmatprep.subr.bf16.mxu0 0
    %1204 = vmatpush1.bf16.xpose.msra.mxu0 0
    %1205 = vmatprep.subr.bf16.mxu0 0
    %1206 = vmatpush1.bf16.xpose.msra.mxu0 0
    %1207 = vmatprep.subr.bf16.mxu0 0
    %1208 = vmatpush1.bf16.xpose.msra.mxu0 0
    %1209 = vmatprep.mubr.bf16.mxu0 0
    %1210 = vmatmul.mubr.bf16.gmra.mrb[0].mxu0 %v1172
    %v1211 = vpop.f32.mrb[0].mxu0
    %v1212 = vadd.f32 0.0, %v1211
    %v1213 = vpop.f32.mrb[0].mxu0
    %v1214 = vpop.f32.mrb[0].mxu0
    %v1215 = vpop.f32.mrb[0].mxu0
    %1216 = vdwg.mxu0
    %v1217 = vunpack.c.l.b16 %v269
    %v1218 = vpack.c.b16 %v1217, %v1217
    %1219 = vrot.lane.b32.xlu0 %v1218, 96
    %v1220 = vpop.permute.xlu0 %1219
    %v1222 = vsel %vm278, %v269, 0
    %v1225 = vsel %vm278, %v1220, 0
    %1227 = vmatprep.subr.bf16.mxu0 0
    %1228 = vmatpush1.bf16.xpose.msra.mxu0 %v1225
    %1229 = vmatprep.subr.bf16.mxu0 0
    %1230 = vmatpush1.bf16.xpose.msra.mxu0 0
    %1231 = vmatprep.subr.bf16.mxu0 0
    %1232 = vmatpush1.bf16.xpose.msra.mxu0 0
    %1233 = vmatprep.subr.bf16.mxu0 0
    %1234 = vmatpush1.bf16.xpose.msra.mxu0 0
    %1235 = vmatprep.subr.bf16.mxu0 0
    %1236 = vmatpush1.bf16.xpose.msra.mxu0 0
    %1237 = vmatprep.subr.bf16.mxu0 0
    %1238 = vmatpush1.bf16.xpose.msra.mxu0 0
    %1239 = vmatprep.subr.bf16.mxu0 0
    %1240 = vmatpush1.bf16.xpose.msra.mxu0 0
    %1241 = vmatprep.subr.bf16.mxu0 0
    %1242 = vmatpush1.bf16.xpose.msra.mxu0 0
    %1243 = vmatprep.subr.bf16.mxu0 0
    %1244 = vmatpush1.bf16.xpose.msra.mxu0 0
    %1245 = vmatprep.subr.bf16.mxu0 0
    %1246 = vmatpush1.bf16.xpose.msra.mxu0 0
    %1247 = vmatprep.subr.bf16.mxu0 0
    %1248 = vmatpush1.bf16.xpose.msra.mxu0 0
    %1249 = vmatprep.subr.bf16.mxu0 0
    %1250 = vmatpush1.bf16.xpose.msra.mxu0 0
    %1251 = vmatprep.subr.bf16.mxu0 0
    %1252 = vmatpush1.bf16.xpose.msra.mxu0 0
    %1253 = vmatprep.subr.bf16.mxu0 0
    %1254 = vmatpush1.bf16.xpose.msra.mxu0 0
    %1255 = vmatprep.subr.bf16.mxu0 0
    %1256 = vmatpush1.bf16.xpose.msra.mxu0 0
    %1257 = vmatprep.subr.bf16.mxu0 0
    %1258 = vmatpush1.bf16.xpose.msra.mxu0 0
    %1259 = vmatprep.mubr.bf16.mxu0 0
    %1260 = vmatmul.mubr.bf16.gmra.mrb[0].mxu0 %v1222
    %v1261 = vpop.f32.mrb[0].mxu0
    %v1262 = vadd.f32 0.0, %v1261
    %v1263 = vpop.f32.mrb[0].mxu0
    %v1264 = vpop.f32.mrb[0].mxu0
    %v1265 = vpop.f32.mrb[0].mxu0
    %1266 = vdwg.mxu0
    %1267 = vrot.lane.b32.xlu0 %v225, 96
    %v1268 = vpop.permute.xlu0 %1267
    %v1270 = vsel %vm278, %v225, 0
    %v1273 = vsel %vm278, %v1268, 0
    %1275 = vmatprep.subr.bf16.mxu0 0
    %1276 = vmatpush1.bf16.xpose.msra.mxu0 %v1273
    %1277 = vmatprep.subr.bf16.mxu0 0
    %1278 = vmatpush1.bf16.xpose.msra.mxu0 0
    %1279 = vmatprep.subr.bf16.mxu0 0
    %1280 = vmatpush1.bf16.xpose.msra.mxu0 0
    %1281 = vmatprep.subr.bf16.mxu0 0
    %1282 = vmatpush1.bf16.xpose.msra.mxu0 0
    %1283 = vmatprep.subr.bf16.mxu0 0
    %1284 = vmatpush1.bf16.xpose.msra.mxu0 0
    %1285 = vmatprep.subr.bf16.mxu0 0
    %1286 = vmatpush1.bf16.xpose.msra.mxu0 0
    %1287 = vmatprep.subr.bf16.mxu0 0
    %1288 = vmatpush1.bf16.xpose.msra.mxu0 0
    %1289 = vmatprep.subr.bf16.mxu0 0
    %1290 = vmatpush1.bf16.xpose.msra.mxu0 0
    %1291 = vmatprep.subr.bf16.mxu0 0
    %1292 = vmatpush1.bf16.xpose.msra.mxu0 0
    %1293 = vmatprep.subr.bf16.mxu0 0
    %1294 = vmatpush1.bf16.xpose.msra.mxu0 0
    %1295 = vmatprep.subr.bf16.mxu0 0
    %1296 = vmatpush1.bf16.xpose.msra.mxu0 0
    %1297 = vmatprep.subr.bf16.mxu0 0
    %1298 = vmatpush1.bf16.xpose.msra.mxu0 0
    %1299 = vmatprep.subr.bf16.mxu0 0
    %1300 = vmatpush1.bf16.xpose.msra.mxu0 0
    %1301 = vmatprep.subr.bf16.mxu0 0
    %1302 = vmatpush1.bf16.xpose.msra.mxu0 0
    %1303 = vmatprep.subr.bf16.mxu0 0
    %1304 = vmatpush1.bf16.xpose.msra.mxu0 0
    %1305 = vmatprep.subr.bf16.mxu0 0
    %1306 = vmatpush1.bf16.xpose.msra.mxu0 0
    %1307 = vmatprep.mubr.bf16.mxu0 0
    %1308 = vmatmul.mubr.bf16.gmra.mrb[0].mxu0 %v1270
    %v1309 = vpop.f32.mrb[0].mxu0
    %v1310 = vadd.f32 0.0, %v1309
    %v1311 = vpop.f32.mrb[0].mxu0
    %v1312 = vpop.f32.mrb[0].mxu0
    %v1313 = vpop.f32.mrb[0].mxu0
    %1314 = vdwg.mxu0
    %v1315 = vunpack.c.l.b16 %v239
    %v1316 = vpack.c.b16 %v1315, %v1315
    %1317 = vrot.lane.b32.xlu0 %v1316, 96
    %v1318 = vpop.permute.xlu0 %1317
    %v1320 = vsel %vm278, %v239, 0
    %v1323 = vsel %vm278, %v1318, 0
    %1325 = vmatprep.subr.bf16.mxu0 0
    %1326 = vmatpush1.bf16.xpose.msra.mxu0 %v1323
    %1327 = vmatprep.subr.bf16.mxu0 0
    %1328 = vmatpush1.bf16.xpose.msra.mxu0 0
    %1329 = vmatprep.subr.bf16.mxu0 0
    %1330 = vmatpush1.bf16.xpose.msra.mxu0 0
    %1331 = vmatprep.subr.bf16.mxu0 0
    %1332 = vmatpush1.bf16.xpose.msra.mxu0 0
    %1333 = vmatprep.subr.bf16.mxu0 0
    %1334 = vmatpush1.bf16.xpose.msra.mxu0 0
    %1335 = vmatprep.subr.bf16.mxu0 0
    %1336 = vmatpush1.bf16.xpose.msra.mxu0 0
    %1337 = vmatprep.subr.bf16.mxu0 0
    %1338 = vmatpush1.bf16.xpose.msra.mxu0 0
    %1339 = vmatprep.subr.bf16.mxu0 0
    %1340 = vmatpush1.bf16.xpose.msra.mxu0 0
    %1341 = vmatprep.subr.bf16.mxu0 0
    %1342 = vmatpush1.bf16.xpose.msra.mxu0 0
    %1343 = vmatprep.subr.bf16.mxu0 0
    %1344 = vmatpush1.bf16.xpose.msra.mxu0 0
    %1345 = vmatprep.subr.bf16.mxu0 0
    %1346 = vmatpush1.bf16.xpose.msra.mxu0 0
    %1347 = vmatprep.subr.bf16.mxu0 0
    %1348 = vmatpush1.bf16.xpose.msra.mxu0 0
    %1349 = vmatprep.subr.bf16.mxu0 0
    %1350 = vmatpush1.bf16.xpose.msra.mxu0 0
    %1351 = vmatprep.subr.bf16.mxu0 0
    %1352 = vmatpush1.bf16.xpose.msra.mxu0 0
    %1353 = vmatprep.subr.bf16.mxu0 0
    %1354 = vmatpush1.bf16.xpose.msra.mxu0 0
    %1355 = vmatprep.subr.bf16.mxu0 0
    %1356 = vmatpush1.bf16.xpose.msra.mxu0 0
    %1357 = vmatprep.mubr.bf16.mxu0 0
    %1358 = vmatmul.mubr.bf16.gmra.mrb[0].mxu0 %v1320
    %v1359 = vpop.f32.mrb[0].mxu0
    %v1360 = vadd.f32 0.0, %v1359
    %v1361 = vpop.f32.mrb[0].mxu0
    %v1362 = vpop.f32.mrb[0].mxu0
    %v1363 = vpop.f32.mrb[0].mxu0
    %1364 = vdwg.mxu0
    %v1365 = vunpack.c.l.b16 %v255
    %v1366 = vpack.c.b16 %v1365, %v1365
    %1367 = vrot.lane.b32.xlu0 %v1366, 96
    %v1368 = vpop.permute.xlu0 %1367
    %v1370 = vsel %vm278, %v255, 0
    %v1373 = vsel %vm278, %v1368, 0
    %1375 = vmatprep.subr.bf16.mxu0 0
    %1376 = vmatpush1.bf16.xpose.msra.mxu0 %v1373
    %1377 = vmatprep.subr.bf16.mxu0 0
    %1378 = vmatpush1.bf16.xpose.msra.mxu0 0
    %1379 = vmatprep.subr.bf16.mxu0 0
    %1380 = vmatpush1.bf16.xpose.msra.mxu0 0
    %1381 = vmatprep.subr.bf16.mxu0 0
    %1382 = vmatpush1.bf16.xpose.msra.mxu0 0
    %1383 = vmatprep.subr.bf16.mxu0 0
    %1384 = vmatpush1.bf16.xpose.msra.mxu0 0
    %1385 = vmatprep.subr.bf16.mxu0 0
    %1386 = vmatpush1.bf16.xpose.msra.mxu0 0
    %1387 = vmatprep.subr.bf16.mxu0 0
    %1388 = vmatpush1.bf16.xpose.msra.mxu0 0
    %1389 = vmatprep.subr.bf16.mxu0 0
    %1390 = vmatpush1.bf16.xpose.msra.mxu0 0
    %1391 = vmatprep.subr.bf16.mxu0 0
    %1392 = vmatpush1.bf16.xpose.msra.mxu0 0
    %1393 = vmatprep.subr.bf16.mxu0 0
    %1394 = vmatpush1.bf16.xpose.msra.mxu0 0
    %1395 = vmatprep.subr.bf16.mxu0 0
    %1396 = vmatpush1.bf16.xpose.msra.mxu0 0
    %1397 = vmatprep.subr.bf16.mxu0 0
    %1398 = vmatpush1.bf16.xpose.msra.mxu0 0
    %1399 = vmatprep.subr.bf16.mxu0 0
    %1400 = vmatpush1.bf16.xpose.msra.mxu0 0
    %1401 = vmatprep.subr.bf16.mxu0 0
    %1402 = vmatpush1.bf16.xpose.msra.mxu0 0
    %1403 = vmatprep.subr.bf16.mxu0 0
    %1404 = vmatpush1.bf16.xpose.msra.mxu0 0
    %1405 = vmatprep.subr.bf16.mxu0 0
    %1406 = vmatpush1.bf16.xpose.msra.mxu0 0
    %1407 = vmatprep.mubr.bf16.mxu0 0
    %1408 = vmatmul.mubr.bf16.gmra.mrb[0].mxu0 %v1370
    %v1409 = vpop.f32.mrb[0].mxu0
    %v1410 = vadd.f32 0.0, %v1409
    %v1411 = vpop.f32.mrb[0].mxu0
    %v1412 = vpop.f32.mrb[0].mxu0
    %v1413 = vpop.f32.mrb[0].mxu0
    %1414 = vdwg.mxu0
    %v1415 = vunpack.c.l.b16 %v271
    %v1416 = vpack.c.b16 %v1415, %v1415
    %1417 = vrot.lane.b32.xlu0 %v1416, 96
    %v1418 = vpop.permute.xlu0 %1417
    %v1420 = vsel %vm278, %v271, 0
    %v1423 = vsel %vm278, %v1418, 0
    %1425 = vmatprep.subr.bf16.mxu0 0
    %1426 = vmatpush1.bf16.xpose.msra.mxu0 %v1423
    %1427 = vmatprep.subr.bf16.mxu0 0
    %1428 = vmatpush1.bf16.xpose.msra.mxu0 0
    %1429 = vmatprep.subr.bf16.mxu0 0
    %1430 = vmatpush1.bf16.xpose.msra.mxu0 0
    %1431 = vmatprep.subr.bf16.mxu0 0
    %1432 = vmatpush1.bf16.xpose.msra.mxu0 0
    %1433 = vmatprep.subr.bf16.mxu0 0
    %1434 = vmatpush1.bf16.xpose.msra.mxu0 0
    %1435 = vmatprep.subr.bf16.mxu0 0
    %1436 = vmatpush1.bf16.xpose.msra.mxu0 0
    %1437 = vmatprep.subr.bf16.mxu0 0
    %1438 = vmatpush1.bf16.xpose.msra.mxu0 0
    %1439 = vmatprep.subr.bf16.mxu0 0
    %1440 = vmatpush1.bf16.xpose.msra.mxu0 0
    %1441 = vmatprep.subr.bf16.mxu0 0
    %1442 = vmatpush1.bf16.xpose.msra.mxu0 0
    %1443 = vmatprep.subr.bf16.mxu0 0
    %1444 = vmatpush1.bf16.xpose.msra.mxu0 0
    %1445 = vmatprep.subr.bf16.mxu0 0
    %1446 = vmatpush1.bf16.xpose.msra.mxu0 0
    %1447 = vmatprep.subr.bf16.mxu0 0
    %1448 = vmatpush1.bf16.xpose.msra.mxu0 0
    %1449 = vmatprep.subr.bf16.mxu0 0
    %1450 = vmatpush1.bf16.xpose.msra.mxu0 0
    %1451 = vmatprep.subr.bf16.mxu0 0
    %1452 = vmatpush1.bf16.xpose.msra.mxu0 0
    %1453 = vmatprep.subr.bf16.mxu0 0
    %1454 = vmatpush1.bf16.xpose.msra.mxu0 0
    %1455 = vmatprep.subr.bf16.mxu0 0
    %1456 = vmatpush1.bf16.xpose.msra.mxu0 0
    %1457 = vmatprep.mubr.bf16.mxu0 0
    %1458 = vmatmul.mubr.bf16.gmra.mrb[0].mxu0 %v1420
    %v1459 = vpop.f32.mrb[0].mxu0
    %v1460 = vadd.f32 0.0, %v1459
    %v1461 = vpop.f32.mrb[0].mxu0
    %v1462 = vpop.f32.mrb[0].mxu0
    %v1463 = vpop.f32.mrb[0].mxu0
    %1464 = vdwg.mxu0
    %1465 = vrot.lane.b32.xlu0 %v226, 96
    %v1466 = vpop.permute.xlu0 %1465
    %v1468 = vsel %vm278, %v226, 0
    %v1471 = vsel %vm278, %v1466, 0
    %1473 = vmatprep.subr.bf16.mxu0 0
    %1474 = vmatpush1.bf16.xpose.msra.mxu0 %v1471
    %1475 = vmatprep.subr.bf16.mxu0 0
    %1476 = vmatpush1.bf16.xpose.msra.mxu0 0
    %1477 = vmatprep.subr.bf16.mxu0 0
    %1478 = vmatpush1.bf16.xpose.msra.mxu0 0
    %1479 = vmatprep.subr.bf16.mxu0 0
    %1480 = vmatpush1.bf16.xpose.msra.mxu0 0
    %1481 = vmatprep.subr.bf16.mxu0 0
    %1482 = vmatpush1.bf16.xpose.msra.mxu0 0
    %1483 = vmatprep.subr.bf16.mxu0 0
    %1484 = vmatpush1.bf16.xpose.msra.mxu0 0
    %1485 = vmatprep.subr.bf16.mxu0 0
    %1486 = vmatpush1.bf16.xpose.msra.mxu0 0
    %1487 = vmatprep.subr.bf16.mxu0 0
    %1488 = vmatpush1.bf16.xpose.msra.mxu0 0
    %1489 = vmatprep.subr.bf16.mxu0 0
    %1490 = vmatpush1.bf16.xpose.msra.mxu0 0
    %1491 = vmatprep.subr.bf16.mxu0 0
    %1492 = vmatpush1.bf16.xpose.msra.mxu0 0
    %1493 = vmatprep.subr.bf16.mxu0 0
    %1494 = vmatpush1.bf16.xpose.msra.mxu0 0
    %1495 = vmatprep.subr.bf16.mxu0 0
    %1496 = vmatpush1.bf16.xpose.msra.mxu0 0
    %1497 = vmatprep.subr.bf16.mxu0 0
    %1498 = vmatpush1.bf16.xpose.msra.mxu0 0
    %1499 = vmatprep.subr.bf16.mxu0 0
    %1500 = vmatpush1.bf16.xpose.msra.mxu0 0
    %1501 = vmatprep.subr.bf16.mxu0 0
    %1502 = vmatpush1.bf16.xpose.msra.mxu0 0
    %1503 = vmatprep.subr.bf16.mxu0 0
    %1504 = vmatpush1.bf16.xpose.msra.mxu0 0
    %1505 = vmatprep.mubr.bf16.mxu0 0
    %1506 = vmatmul.mubr.bf16.gmra.mrb[0].mxu0 %v1468
    %v1507 = vpop.f32.mrb[0].mxu0
    %v1508 = vadd.f32 0.0, %v1507
    %v1509 = vpop.f32.mrb[0].mxu0
    %v1510 = vpop.f32.mrb[0].mxu0
    %v1511 = vpop.f32.mrb[0].mxu0
    %1512 = vdwg.mxu0
    %v1513 = vunpack.c.l.b16 %v241
    %v1514 = vpack.c.b16 %v1513, %v1513
    %1515 = vrot.lane.b32.xlu0 %v1514, 96
    %v1516 = vpop.permute.xlu0 %1515
    %v1518 = vsel %vm278, %v241, 0
    %v1521 = vsel %vm278, %v1516, 0
    %1523 = vmatprep.subr.bf16.mxu0 0
    %1524 = vmatpush1.bf16.xpose.msra.mxu0 %v1521
    %1525 = vmatprep.subr.bf16.mxu0 0
    %1526 = vmatpush1.bf16.xpose.msra.mxu0 0
    %1527 = vmatprep.subr.bf16.mxu0 0
    %1528 = vmatpush1.bf16.xpose.msra.mxu0 0
    %1529 = vmatprep.subr.bf16.mxu0 0
    %1530 = vmatpush1.bf16.xpose.msra.mxu0 0
    %1531 = vmatprep.subr.bf16.mxu0 0
    %1532 = vmatpush1.bf16.xpose.msra.mxu0 0
    %1533 = vmatprep.subr.bf16.mxu0 0
    %1534 = vmatpush1.bf16.xpose.msra.mxu0 0
    %1535 = vmatprep.subr.bf16.mxu0 0
    %1536 = vmatpush1.bf16.xpose.msra.mxu0 0
    %1537 = vmatprep.subr.bf16.mxu0 0
    %1538 = vmatpush1.bf16.xpose.msra.mxu0 0
    %1539 = vmatprep.subr.bf16.mxu0 0
    %1540 = vmatpush1.bf16.xpose.msra.mxu0 0
    %1541 = vmatprep.subr.bf16.mxu0 0
    %1542 = vmatpush1.bf16.xpose.msra.mxu0 0
    %1543 = vmatprep.subr.bf16.mxu0 0
    %1544 = vmatpush1.bf16.xpose.msra.mxu0 0
    %1545 = vmatprep.subr.bf16.mxu0 0
    %1546 = vmatpush1.bf16.xpose.msra.mxu0 0
    %1547 = vmatprep.subr.bf16.mxu0 0
    %1548 = vmatpush1.bf16.xpose.msra.mxu0 0
    %1549 = vmatprep.subr.bf16.mxu0 0
    %1550 = vmatpush1.bf16.xpose.msra.mxu0 0
    %1551 = vmatprep.subr.bf16.mxu0 0
    %1552 = vmatpush1.bf16.xpose.msra.mxu0 0
    %1553 = vmatprep.subr.bf16.mxu0 0
    %1554 = vmatpush1.bf16.xpose.msra.mxu0 0
    %1555 = vmatprep.mubr.bf16.mxu0 0
    %1556 = vmatmul.mubr.bf16.gmra.mrb[0].mxu0 %v1518
    %v1557 = vpop.f32.mrb[0].mxu0
    %v1558 = vadd.f32 0.0, %v1557
    %v1559 = vpop.f32.mrb[0].mxu0
    %v1560 = vpop.f32.mrb[0].mxu0
    %v1561 = vpop.f32.mrb[0].mxu0
    %1562 = vdwg.mxu0
    %v1563 = vunpack.c.l.b16 %v257
    %v1564 = vpack.c.b16 %v1563, %v1563
    %1565 = vrot.lane.b32.xlu0 %v1564, 96
    %v1566 = vpop.permute.xlu0 %1565
    %v1568 = vsel %vm278, %v257, 0
    %v1571 = vsel %vm278, %v1566, 0
    %1573 = vmatprep.subr.bf16.mxu0 0
    %1574 = vmatpush1.bf16.xpose.msra.mxu0 %v1571
    %1575 = vmatprep.subr.bf16.mxu0 0
    %1576 = vmatpush1.bf16.xpose.msra.mxu0 0
    %1577 = vmatprep.subr.bf16.mxu0 0
    %1578 = vmatpush1.bf16.xpose.msra.mxu0 0
    %1579 = vmatprep.subr.bf16.mxu0 0
    %1580 = vmatpush1.bf16.xpose.msra.mxu0 0
    %1581 = vmatprep.subr.bf16.mxu0 0
    %1582 = vmatpush1.bf16.xpose.msra.mxu0 0
    %1583 = vmatprep.subr.bf16.mxu0 0
    %1584 = vmatpush1.bf16.xpose.msra.mxu0 0
    %1585 = vmatprep.subr.bf16.mxu0 0
    %1586 = vmatpush1.bf16.xpose.msra.mxu0 0
    %1587 = vmatprep.subr.bf16.mxu0 0
    %1588 = vmatpush1.bf16.xpose.msra.mxu0 0
    %1589 = vmatprep.subr.bf16.mxu0 0
    %1590 = vmatpush1.bf16.xpose.msra.mxu0 0
    %1591 = vmatprep.subr.bf16.mxu0 0
    %1592 = vmatpush1.bf16.xpose.msra.mxu0 0
    %1593 = vmatprep.subr.bf16.mxu0 0
    %1594 = vmatpush1.bf16.xpose.msra.mxu0 0
    %1595 = vmatprep.subr.bf16.mxu0 0
    %1596 = vmatpush1.bf16.xpose.msra.mxu0 0
    %1597 = vmatprep.subr.bf16.mxu0 0
    %1598 = vmatpush1.bf16.xpose.msra.mxu0 0
    %1599 = vmatprep.subr.bf16.mxu0 0
    %1600 = vmatpush1.bf16.xpose.msra.mxu0 0
    %1601 = vmatprep.subr.bf16.mxu0 0
    %1602 = vmatpush1.bf16.xpose.msra.mxu0 0
    %1603 = vmatprep.subr.bf16.mxu0 0
    %1604 = vmatpush1.bf16.xpose.msra.mxu0 0
    %1605 = vmatprep.mubr.bf16.mxu0 0
    %1606 = vmatmul.mubr.bf16.gmra.mrb[0].mxu0 %v1568
    %v1607 = vpop.f32.mrb[0].mxu0
    %v1608 = vadd.f32 0.0, %v1607
    %v1609 = vpop.f32.mrb[0].mxu0
    %v1610 = vpop.f32.mrb[0].mxu0
    %v1611 = vpop.f32.mrb[0].mxu0
    %1612 = vdwg.mxu0
    %v1613 = vunpack.c.l.b16 %v273
    %v1614 = vpack.c.b16 %v1613, %v1613
    %1615 = vrot.lane.b32.xlu0 %v1614, 96
    %v1616 = vpop.permute.xlu0 %1615
    %v1618 = vsel %vm278, %v273, 0
    %v1621 = vsel %vm278, %v1616, 0
    %1623 = vmatprep.subr.bf16.mxu0 0
    %1624 = vmatpush1.bf16.xpose.msra.mxu0 %v1621
    %1625 = vmatprep.subr.bf16.mxu0 0
    %1626 = vmatpush1.bf16.xpose.msra.mxu0 0
    %1627 = vmatprep.subr.bf16.mxu0 0
    %1628 = vmatpush1.bf16.xpose.msra.mxu0 0
    %1629 = vmatprep.subr.bf16.mxu0 0
    %1630 = vmatpush1.bf16.xpose.msra.mxu0 0
    %1631 = vmatprep.subr.bf16.mxu0 0
    %1632 = vmatpush1.bf16.xpose.msra.mxu0 0
    %1633 = vmatprep.subr.bf16.mxu0 0
    %1634 = vmatpush1.bf16.xpose.msra.mxu0 0
    %1635 = vmatprep.subr.bf16.mxu0 0
    %1636 = vmatpush1.bf16.xpose.msra.mxu0 0
    %1637 = vmatprep.subr.bf16.mxu0 0
    %1638 = vmatpush1.bf16.xpose.msra.mxu0 0
    %1639 = vmatprep.subr.bf16.mxu0 0
    %1640 = vmatpush1.bf16.xpose.msra.mxu0 0
    %1641 = vmatprep.subr.bf16.mxu0 0
    %1642 = vmatpush1.bf16.xpose.msra.mxu0 0
    %1643 = vmatprep.subr.bf16.mxu0 0
    %1644 = vmatpush1.bf16.xpose.msra.mxu0 0
    %1645 = vmatprep.subr.bf16.mxu0 0
    %1646 = vmatpush1.bf16.xpose.msra.mxu0 0
    %1647 = vmatprep.subr.bf16.mxu0 0
    %1648 = vmatpush1.bf16.xpose.msra.mxu0 0
    %1649 = vmatprep.subr.bf16.mxu0 0
    %1650 = vmatpush1.bf16.xpose.msra.mxu0 0
    %1651 = vmatprep.subr.bf16.mxu0 0
    %1652 = vmatpush1.bf16.xpose.msra.mxu0 0
    %1653 = vmatprep.subr.bf16.mxu0 0
    %1654 = vmatpush1.bf16.xpose.msra.mxu0 0
    %1655 = vmatprep.mubr.bf16.mxu0 0
    %1656 = vmatmul.mubr.bf16.gmra.mrb[0].mxu0 %v1618
    %v1657 = vpop.f32.mrb[0].mxu0
    %v1658 = vadd.f32 0.0, %v1657
    %v1659 = vpop.f32.mrb[0].mxu0
    %v1660 = vpop.f32.mrb[0].mxu0
    %v1661 = vpop.f32.mrb[0].mxu0
    %1662 = vdwg.mxu0
    %1663 = vrot.lane.b32.xlu0 %v227, 96
    %v1664 = vpop.permute.xlu0 %1663
    %v1666 = vsel %vm278, %v227, 0
    %v1669 = vsel %vm278, %v1664, 0
    %1671 = vmatprep.subr.bf16.mxu0 0
    %1672 = vmatpush1.bf16.xpose.msra.mxu0 %v1669
    %1673 = vmatprep.subr.bf16.mxu0 0
    %1674 = vmatpush1.bf16.xpose.msra.mxu0 0
    %1675 = vmatprep.subr.bf16.mxu0 0
    %1676 = vmatpush1.bf16.xpose.msra.mxu0 0
    %1677 = vmatprep.subr.bf16.mxu0 0
    %1678 = vmatpush1.bf16.xpose.msra.mxu0 0
    %1679 = vmatprep.subr.bf16.mxu0 0
    %1680 = vmatpush1.bf16.xpose.msra.mxu0 0
    %1681 = vmatprep.subr.bf16.mxu0 0
    %1682 = vmatpush1.bf16.xpose.msra.mxu0 0
    %1683 = vmatprep.subr.bf16.mxu0 0
    %1684 = vmatpush1.bf16.xpose.msra.mxu0 0
    %1685 = vmatprep.subr.bf16.mxu0 0
    %1686 = vmatpush1.bf16.xpose.msra.mxu0 0
    %1687 = vmatprep.subr.bf16.mxu0 0
    %1688 = vmatpush1.bf16.xpose.msra.mxu0 0
    %1689 = vmatprep.subr.bf16.mxu0 0
    %1690 = vmatpush1.bf16.xpose.msra.mxu0 0
    %1691 = vmatprep.subr.bf16.mxu0 0
    %1692 = vmatpush1.bf16.xpose.msra.mxu0 0
    %1693 = vmatprep.subr.bf16.mxu0 0
    %1694 = vmatpush1.bf16.xpose.msra.mxu0 0
    %1695 = vmatprep.subr.bf16.mxu0 0
    %1696 = vmatpush1.bf16.xpose.msra.mxu0 0
    %1697 = vmatprep.subr.bf16.mxu0 0
    %1698 = vmatpush1.bf16.xpose.msra.mxu0 0
    %1699 = vmatprep.subr.bf16.mxu0 0
    %1700 = vmatpush1.bf16.xpose.msra.mxu0 0
    %1701 = vmatprep.subr.bf16.mxu0 0
    %1702 = vmatpush1.bf16.xpose.msra.mxu0 0
    %1703 = vmatprep.mubr.bf16.mxu0 0
    %1704 = vmatmul.mubr.bf16.gmra.mrb[0].mxu0 %v1666
    %v1705 = vpop.f32.mrb[0].mxu0
    %v1706 = vadd.f32 0.0, %v1705
    %v1707 = vpop.f32.mrb[0].mxu0
    %v1708 = vpop.f32.mrb[0].mxu0
    %v1709 = vpop.f32.mrb[0].mxu0
    %1710 = vdwg.mxu0
    %v1711 = vunpack.c.l.b16 %v243
    %v1712 = vpack.c.b16 %v1711, %v1711
    %1713 = vrot.lane.b32.xlu0 %v1712, 96
    %v1714 = vpop.permute.xlu0 %1713
    %v1716 = vsel %vm278, %v243, 0
    %v1719 = vsel %vm278, %v1714, 0
    %1721 = vmatprep.subr.bf16.mxu0 0
    %1722 = vmatpush1.bf16.xpose.msra.mxu0 %v1719
    %1723 = vmatprep.subr.bf16.mxu0 0
    %1724 = vmatpush1.bf16.xpose.msra.mxu0 0
    %1725 = vmatprep.subr.bf16.mxu0 0
    %1726 = vmatpush1.bf16.xpose.msra.mxu0 0
    %1727 = vmatprep.subr.bf16.mxu0 0
    %1728 = vmatpush1.bf16.xpose.msra.mxu0 0
    %1729 = vmatprep.subr.bf16.mxu0 0
    %1730 = vmatpush1.bf16.xpose.msra.mxu0 0
    %1731 = vmatprep.subr.bf16.mxu0 0
    %1732 = vmatpush1.bf16.xpose.msra.mxu0 0
    %1733 = vmatprep.subr.bf16.mxu0 0
    %1734 = vmatpush1.bf16.xpose.msra.mxu0 0
    %1735 = vmatprep.subr.bf16.mxu0 0
    %1736 = vmatpush1.bf16.xpose.msra.mxu0 0
    %1737 = vmatprep.subr.bf16.mxu0 0
    %1738 = vmatpush1.bf16.xpose.msra.mxu0 0
    %1739 = vmatprep.subr.bf16.mxu0 0
    %1740 = vmatpush1.bf16.xpose.msra.mxu0 0
    %1741 = vmatprep.subr.bf16.mxu0 0
    %1742 = vmatpush1.bf16.xpose.msra.mxu0 0
    %1743 = vmatprep.subr.bf16.mxu0 0
    %1744 = vmatpush1.bf16.xpose.msra.mxu0 0
    %1745 = vmatprep.subr.bf16.mxu0 0
    %1746 = vmatpush1.bf16.xpose.msra.mxu0 0
    %1747 = vmatprep.subr.bf16.mxu0 0
    %1748 = vmatpush1.bf16.xpose.msra.mxu0 0
    %1749 = vmatprep.subr.bf16.mxu0 0
    %1750 = vmatpush1.bf16.xpose.msra.mxu0 0
    %1751 = vmatprep.subr.bf16.mxu0 0
    %1752 = vmatpush1.bf16.xpose.msra.mxu0 0
    %1753 = vmatprep.mubr.bf16.mxu0 0
    %1754 = vmatmul.mubr.bf16.gmra.mrb[0].mxu0 %v1716
    %v1755 = vpop.f32.mrb[0].mxu0
    %v1756 = vadd.f32 0.0, %v1755
    %v1757 = vpop.f32.mrb[0].mxu0
    %v1758 = vpop.f32.mrb[0].mxu0
    %v1759 = vpop.f32.mrb[0].mxu0
    %1760 = vdwg.mxu0
    %v1761 = vunpack.c.l.b16 %v259
    %v1762 = vpack.c.b16 %v1761, %v1761
    %1763 = vrot.lane.b32.xlu0 %v1762, 96
    %v1764 = vpop.permute.xlu0 %1763
    %v1766 = vsel %vm278, %v259, 0
    %v1769 = vsel %vm278, %v1764, 0
    %1771 = vmatprep.subr.bf16.mxu0 0
    %1772 = vmatpush1.bf16.xpose.msra.mxu0 %v1769
    %1773 = vmatprep.subr.bf16.mxu0 0
    %1774 = vmatpush1.bf16.xpose.msra.mxu0 0
    %1775 = vmatprep.subr.bf16.mxu0 0
    %1776 = vmatpush1.bf16.xpose.msra.mxu0 0
    %1777 = vmatprep.subr.bf16.mxu0 0
    %1778 = vmatpush1.bf16.xpose.msra.mxu0 0
    %1779 = vmatprep.subr.bf16.mxu0 0
    %1780 = vmatpush1.bf16.xpose.msra.mxu0 0
    %1781 = vmatprep.subr.bf16.mxu0 0
    %1782 = vmatpush1.bf16.xpose.msra.mxu0 0
    %1783 = vmatprep.subr.bf16.mxu0 0
    %1784 = vmatpush1.bf16.xpose.msra.mxu0 0
    %1785 = vmatprep.subr.bf16.mxu0 0
    %1786 = vmatpush1.bf16.xpose.msra.mxu0 0
    %1787 = vmatprep.subr.bf16.mxu0 0
    %1788 = vmatpush1.bf16.xpose.msra.mxu0 0
    %1789 = vmatprep.subr.bf16.mxu0 0
    %1790 = vmatpush1.bf16.xpose.msra.mxu0 0
    %1791 = vmatprep.subr.bf16.mxu0 0
    %1792 = vmatpush1.bf16.xpose.msra.mxu0 0
    %1793 = vmatprep.subr.bf16.mxu0 0
    %1794 = vmatpush1.bf16.xpose.msra.mxu0 0
    %1795 = vmatprep.subr.bf16.mxu0 0
    %1796 = vmatpush1.bf16.xpose.msra.mxu0 0
    %1797 = vmatprep.subr.bf16.mxu0 0
    %1798 = vmatpush1.bf16.xpose.msra.mxu0 0
    %1799 = vmatprep.subr.bf16.mxu0 0
    %1800 = vmatpush1.bf16.xpose.msra.mxu0 0
    %1801 = vmatprep.subr.bf16.mxu0 0
    %1802 = vmatpush1.bf16.xpose.msra.mxu0 0
    %1803 = vmatprep.mubr.bf16.mxu0 0
    %1804 = vmatmul.mubr.bf16.gmra.mrb[0].mxu0 %v1766
    %v1805 = vpop.f32.mrb[0].mxu0
    %v1806 = vadd.f32 0.0, %v1805
    %v1807 = vpop.f32.mrb[0].mxu0
    %v1808 = vpop.f32.mrb[0].mxu0
    %v1809 = vpop.f32.mrb[0].mxu0
    %1810 = vdwg.mxu0
    %v1811 = vunpack.c.l.b16 %v275
    %v1812 = vpack.c.b16 %v1811, %v1811
    %1813 = vrot.lane.b32.xlu0 %v1812, 96
    %v1814 = vpop.permute.xlu0 %1813
    %v1816 = vsel %vm278, %v275, 0
    %v1819 = vsel %vm278, %v1814, 0
    %1821 = vmatprep.subr.bf16.mxu0 0
    %1822 = vmatpush1.bf16.xpose.msra.mxu0 %v1819
    %1823 = vmatprep.subr.bf16.mxu0 0
    %1824 = vmatpush1.bf16.xpose.msra.mxu0 0
    %1825 = vmatprep.subr.bf16.mxu0 0
    %1826 = vmatpush1.bf16.xpose.msra.mxu0 0
    %1827 = vmatprep.subr.bf16.mxu0 0
    %1828 = vmatpush1.bf16.xpose.msra.mxu0 0
    %1829 = vmatprep.subr.bf16.mxu0 0
    %1830 = vmatpush1.bf16.xpose.msra.mxu0 0
    %1831 = vmatprep.subr.bf16.mxu0 0
    %1832 = vmatpush1.bf16.xpose.msra.mxu0 0
    %1833 = vmatprep.subr.bf16.mxu0 0
    %1834 = vmatpush1.bf16.xpose.msra.mxu0 0
    %1835 = vmatprep.subr.bf16.mxu0 0
    %1836 = vmatpush1.bf16.xpose.msra.mxu0 0
    %1837 = vmatprep.subr.bf16.mxu0 0
    %1838 = vmatpush1.bf16.xpose.msra.mxu0 0
    %1839 = vmatprep.subr.bf16.mxu0 0
    %1840 = vmatpush1.bf16.xpose.msra.mxu0 0
    %1841 = vmatprep.subr.bf16.mxu0 0
    %1842 = vmatpush1.bf16.xpose.msra.mxu0 0
    %1843 = vmatprep.subr.bf16.mxu0 0
    %1844 = vmatpush1.bf16.xpose.msra.mxu0 0
    %1845 = vmatprep.subr.bf16.mxu0 0
    %1846 = vmatpush1.bf16.xpose.msra.mxu0 0
    %1847 = vmatprep.subr.bf16.mxu0 0
    %1848 = vmatpush1.bf16.xpose.msra.mxu0 0
    %1849 = vmatprep.subr.bf16.mxu0 0
    %1850 = vmatpush1.bf16.xpose.msra.mxu0 0
    %1851 = vmatprep.subr.bf16.mxu0 0
    %1852 = vmatpush1.bf16.xpose.msra.mxu0 0
    %1853 = vmatprep.mubr.bf16.mxu0 0
    %1854 = vmatmul.mubr.bf16.gmra.mrb[0].mxu0 %v1816
    %v1855 = vpop.f32.mrb[0].mxu0
    %v1856 = vadd.f32 0.0, %v1855
    %v1857 = vpop.f32.mrb[0].mxu0
    %v1858 = vpop.f32.mrb[0].mxu0
    %v1859 = vpop.f32.mrb[0].mxu0
    %1860 = vdwg.mxu0
    %v1861 = vld [vmem:[#allocation5] sm:$0x3]
    %v1862 = vld [vmem:[#allocation5 + $0x2] sm:$0x3]
    %v1863 = vld [vmem:[#allocation5 + $0x4] sm:$0x3]
    %v1864 = vld [vmem:[#allocation5 + $0x6] sm:$0x3]
    %v1865 = vld [vmem:[#allocation5 + $0x8] sm:$0x3]
    %v1866 = vld [vmem:[#allocation5 + $0xa] sm:$0x3]
    %v1867 = vld [vmem:[#allocation5 + $0xc] sm:$0x3]
    %v1868 = vld [vmem:[#allocation5 + $0xe] sm:$0x3]
    %vm1869 = vnez %v1861
    %vm1870 = vnez %v1862
    %vm1871 = vnez %v1863
    %vm1872 = vnez %v1864
    %vm1873 = vnez %v1865
    %vm1874 = vnez %v1866
    %vm1875 = vnez %v1867
    %vm1876 = vnez %v1868
    %v1877 = vsel %vm1869, 16843009, 0
    %v1878 = vsel %vm1870, 16843009, 0
    %v1879 = vsel %vm1871, 16843009, 0
    %v1880 = vsel %vm1872, 16843009, 0
    %v1881 = vsel %vm1873, 16843009, 0
    %v1882 = vsel %vm1874, 16843009, 0
    %v1883 = vsel %vm1875, 16843009, 0
    %v1884 = vsel %vm1876, 16843009, 0
    %v1885 = vunpack.c.0.s8 %v1877
    %v1886 = vunpack.c.0.s8 %v1878
    %v1887 = vunpack.c.0.s8 %v1879
    %v1888 = vunpack.c.0.s8 %v1880
    %v1889 = vunpack.c.0.s8 %v1881
    %v1890 = vunpack.c.0.s8 %v1882
    %v1891 = vunpack.c.0.s8 %v1883
    %v1892 = vunpack.c.0.s8 %v1884
    %vm1893 = vcmp.ne.s32.totalorder %v1885, 0
    %vm1894 = vcmp.ne.s32.totalorder %v1886, 0
    %vm1895 = vcmp.ne.s32.totalorder %v1887, 0
    %vm1896 = vcmp.ne.s32.totalorder %v1888, 0
    %vm1897 = vcmp.ne.s32.totalorder %v1889, 0
    %vm1898 = vcmp.ne.s32.totalorder %v1890, 0
    %vm1899 = vcmp.ne.s32.totalorder %v1891, 0
    %vm1900 = vcmp.ne.s32.totalorder %v1892, 0
    %v1901 = vsel %vm1893, 1, 0
    %v1902 = vsel %vm1894, 1, 0
    %v1903 = vsel %vm1895, 1, 0
    %v1904 = vsel %vm1896, 1, 0
    %v1905 = vsel %vm1897, 1, 0
    %v1906 = vsel %vm1898, 1, 0
    %v1907 = vsel %vm1899, 1, 0
    %v1908 = vsel %vm1900, 1, 0
    %vm1909 = vcmp.eq.s32.totalorder %v1901, 1
    %vm1910 = vcmp.eq.s32.totalorder %v1902, 1
    %vm1911 = vcmp.eq.s32.totalorder %v1903, 1
    %vm1912 = vcmp.eq.s32.totalorder %v1904, 1
    %vm1913 = vcmp.eq.s32.totalorder %v1905, 1
    %vm1914 = vcmp.eq.s32.totalorder %v1906, 1
    %vm1915 = vcmp.eq.s32.totalorder %v1907, 1
    %vm1916 = vcmp.eq.s32.totalorder %v1908, 1
    %v1917 = vsel %vm1909, -1e+09, %v320
    %v1918 = vsel %vm1909, -1e+09, %v370
    %v1919 = vsel %vm1909, -1e+09, %v420
    %v1920 = vsel %vm1909, -1e+09, %v470
    %v1921 = vsel %vm1910, -1e+09, %v518
    %v1922 = vsel %vm1910, -1e+09, %v568
    %v1923 = vsel %vm1910, -1e+09, %v618
    %v1924 = vsel %vm1910, -1e+09, %v668
    %v1925 = vsel %vm1911, -1e+09, %v716
    %v1926 = vsel %vm1911, -1e+09, %v766
    %v1927 = vsel %vm1911, -1e+09, %v816
    %v1928 = vsel %vm1911, -1e+09, %v866
    %v1929 = vsel %vm1912, -1e+09, %v914
    %v1930 = vsel %vm1912, -1e+09, %v964
    %v1931 = vsel %vm1912, -1e+09, %v1014
    %v1932 = vsel %vm1912, -1e+09, %v1064
    %v1933 = vsel %vm1913, -1e+09, %v1112
    %v1934 = vsel %vm1913, -1e+09, %v1162
    %v1935 = vsel %vm1913, -1e+09, %v1212
    %v1936 = vsel %vm1913, -1e+09, %v1262
    %v1937 = vsel %vm1914, -1e+09, %v1310
    %v1938 = vsel %vm1914, -1e+09, %v1360
    %v1939 = vsel %vm1914, -1e+09, %v1410
    %v1940 = vsel %vm1914, -1e+09, %v1460
    %v1941 = vsel %vm1915, -1e+09, %v1508
    %v1942 = vsel %vm1915, -1e+09, %v1558
    %v1943 = vsel %vm1915, -1e+09, %v1608
    %v1944 = vsel %vm1915, -1e+09, %v1658
    %v1945 = vsel %vm1916, -1e+09, %v1706
    %v1946 = vsel %vm1916, -1e+09, %v1756
    %v1947 = vsel %vm1916, -1e+09, %v1806
    %v1948 = vsel %vm1916, -1e+09, %v1856
    %v1949 = vsel %vm278, %v1917, -inf
    %1950 = vmax.xlane.f32.xlu0 %v1949
    %v1951 = vpop.xlane.xlu0 %1950
    %v1952 = vsel %vm278, %v1918, -inf
    %1953 = vmax.xlane.f32.xlu0 %v1952
    %v1954 = vpop.xlane.xlu0 %1953
    %v1955 = vsel %vm278, %v1919, -inf
    %1956 = vmax.xlane.f32.xlu0 %v1955
    %v1957 = vpop.xlane.xlu0 %1956
    %v1958 = vsel %vm278, %v1920, -inf
    %1959 = vmax.xlane.f32.xlu0 %v1958
    %v1960 = vpop.xlane.xlu0 %1959
    %v1961 = vsel %vm278, %v1921, -inf
    %1962 = vmax.xlane.f32.xlu0 %v1961
    %v1963 = vpop.xlane.xlu0 %1962
    %v1964 = vsel %vm278, %v1922, -inf
    %1965 = vmax.xlane.f32.xlu0 %v1964
    %v1966 = vpop.xlane.xlu0 %1965
    %v1967 = vsel %vm278, %v1923, -inf
    %1968 = vmax.xlane.f32.xlu0 %v1967
    %v1969 = vpop.xlane.xlu0 %1968
    %v1970 = vsel %vm278, %v1924, -inf
    %1971 = vmax.xlane.f32.xlu0 %v1970
    %v1972 = vpop.xlane.xlu0 %1971
    %v1973 = vsel %vm278, %v1925, -inf
    %1974 = vmax.xlane.f32.xlu0 %v1973
    %v1975 = vpop.xlane.xlu0 %1974
    %v1976 = vsel %vm278, %v1926, -inf
    %1977 = vmax.xlane.f32.xlu0 %v1976
    %v1978 = vpop.xlane.xlu0 %1977
    %v1979 = vsel %vm278, %v1927, -inf
    %1980 = vmax.xlane.f32.xlu0 %v1979
    %v1981 = vpop.xlane.xlu0 %1980
    %v1982 = vsel %vm278, %v1928, -inf
    %1983 = vmax.xlane.f32.xlu0 %v1982
    %v1984 = vpop.xlane.xlu0 %1983
    %v1985 = vsel %vm278, %v1929, -inf
    %1986 = vmax.xlane.f32.xlu0 %v1985
    %v1987 = vpop.xlane.xlu0 %1986
    %v1988 = vsel %vm278, %v1930, -inf
    %1989 = vmax.xlane.f32.xlu0 %v1988
    %v1990 = vpop.xlane.xlu0 %1989
    %v1991 = vsel %vm278, %v1931, -inf
    %1992 = vmax.xlane.f32.xlu0 %v1991
    %v1993 = vpop.xlane.xlu0 %1992
    %v1994 = vsel %vm278, %v1932, -inf
    %1995 = vmax.xlane.f32.xlu0 %v1994
    %v1996 = vpop.xlane.xlu0 %1995
    %v1997 = vsel %vm278, %v1933, -inf
    %1998 = vmax.xlane.f32.xlu0 %v1997
    %v1999 = vpop.xlane.xlu0 %1998
    %v2000 = vsel %vm278, %v1934, -inf
    %2001 = vmax.xlane.f32.xlu0 %v2000
    %v2002 = vpop.xlane.xlu0 %2001
    %v2003 = vsel %vm278, %v1935, -inf
    %2004 = vmax.xlane.f32.xlu0 %v2003
    %v2005 = vpop.xlane.xlu0 %2004
    %v2006 = vsel %vm278, %v1936, -inf
    %2007 = vmax.xlane.f32.xlu0 %v2006
    %v2008 = vpop.xlane.xlu0 %2007
    %v2009 = vsel %vm278, %v1937, -inf
    %2010 = vmax.xlane.f32.xlu0 %v2009
    %v2011 = vpop.xlane.xlu0 %2010
    %v2012 = vsel %vm278, %v1938, -inf
    %2013 = vmax.xlane.f32.xlu0 %v2012
    %v2014 = vpop.xlane.xlu0 %2013
    %v2015 = vsel %vm278, %v1939, -inf
    %2016 = vmax.xlane.f32.xlu0 %v2015
    %v2017 = vpop.xlane.xlu0 %2016
    %v2018 = vsel %vm278, %v1940, -inf
    %2019 = vmax.xlane.f32.xlu0 %v2018
    %v2020 = vpop.xlane.xlu0 %2019
    %v2021 = vsel %vm278, %v1941, -inf
    %2022 = vmax.xlane.f32.xlu0 %v2021
    %v2023 = vpop.xlane.xlu0 %2022
    %v2024 = vsel %vm278, %v1942, -inf
    %2025 = vmax.xlane.f32.xlu0 %v2024
    %v2026 = vpop.xlane.xlu0 %2025
    %v2027 = vsel %vm278, %v1943, -inf
    %2028 = vmax.xlane.f32.xlu0 %v2027
    %v2029 = vpop.xlane.xlu0 %2028
    %v2030 = vsel %vm278, %v1944, -inf
    %2031 = vmax.xlane.f32.xlu0 %v2030
    %v2032 = vpop.xlane.xlu0 %2031
    %v2033 = vsel %vm278, %v1945, -inf
    %2034 = vmax.xlane.f32.xlu0 %v2033
    %v2035 = vpop.xlane.xlu0 %2034
    %v2036 = vsel %vm278, %v1946, -inf
    %2037 = vmax.xlane.f32.xlu0 %v2036
    %v2038 = vpop.xlane.xlu0 %2037
    %v2039 = vsel %vm278, %v1947, -inf
    %2040 = vmax.xlane.f32.xlu0 %v2039
    %v2041 = vpop.xlane.xlu0 %2040
    %v2042 = vsel %vm278, %v1948, -inf
    %2043 = vmax.xlane.f32.xlu0 %v2042
    %v2044 = vpop.xlane.xlu0 %2043
    %v2045 = vsub.f32 %v1917, %v1951
    %v2046 = vsub.f32 %v1918, %v1954
    %v2047 = vsub.f32 %v1919, %v1957
    %v2048 = vsub.f32 %v1920, %v1960
    %v2049 = vsub.f32 %v1921, %v1963
    %v2050 = vsub.f32 %v1922, %v1966
    %v2051 = vsub.f32 %v1923, %v1969
    %v2052 = vsub.f32 %v1924, %v1972
    %v2053 = vsub.f32 %v1925, %v1975
    %v2054 = vsub.f32 %v1926, %v1978
    %v2055 = vsub.f32 %v1927, %v1981
    %v2056 = vsub.f32 %v1928, %v1984
    %v2057 = vsub.f32 %v1929, %v1987
    %v2058 = vsub.f32 %v1930, %v1990
    %v2059 = vsub.f32 %v1931, %v1993
    %v2060 = vsub.f32 %v1932, %v1996
    %v2061 = vsub.f32 %v1933, %v1999
    %v2062 = vsub.f32 %v1934, %v2002
    %v2063 = vsub.f32 %v1935, %v2005
    %v2064 = vsub.f32 %v1936, %v2008
    %v2065 = vsub.f32 %v1937, %v2011
    %v2066 = vsub.f32 %v1938, %v2014
    %v2067 = vsub.f32 %v1939, %v2017
    %v2068 = vsub.f32 %v1940, %v2020
    %v2069 = vsub.f32 %v1941, %v2023
    %v2070 = vsub.f32 %v1942, %v2026
    %v2071 = vsub.f32 %v1943, %v2029
    %v2072 = vsub.f32 %v1944, %v2032
    %v2073 = vsub.f32 %v1945, %v2035
    %v2074 = vsub.f32 %v1946, %v2038
    %v2075 = vsub.f32 %v1947, %v2041
    %v2076 = vsub.f32 %v1948, %v2044
    %v2077 = vmul.f32 %v2045, 1.442695
    %v2078 = vpow.pop %v2077
    %v2079 = vmul.f32 %v2046, 1.442695
    %v2080 = vpow.pop %v2079
    %v2081 = vmul.f32 %v2047, 1.442695
    %v2082 = vpow.pop %v2081
    %v2083 = vmul.f32 %v2048, 1.442695
    %v2084 = vpow.pop %v2083
    %v2085 = vmul.f32 %v2049, 1.442695
    %v2086 = vpow.pop %v2085
    %v2087 = vmul.f32 %v2050, 1.442695
    %v2088 = vpow.pop %v2087
    %v2089 = vmul.f32 %v2051, 1.442695
    %v2090 = vpow.pop %v2089
    %v2091 = vmul.f32 %v2052, 1.442695
    %v2092 = vpow.pop %v2091
    %v2093 = vmul.f32 %v2053, 1.442695
    %v2094 = vpow.pop %v2093
    %v2095 = vmul.f32 %v2054, 1.442695
    %v2096 = vpow.pop %v2095
    %v2097 = vmul.f32 %v2055, 1.442695
    %v2098 = vpow.pop %v2097
    %v2099 = vmul.f32 %v2056, 1.442695
    %v2100 = vpow.pop %v2099
    %v2101 = vmul.f32 %v2057, 1.442695
    %v2102 = vpow.pop %v2101
    %v2103 = vmul.f32 %v2058, 1.442695
    %v2104 = vpow.pop %v2103
    %v2105 = vmul.f32 %v2059, 1.442695
    %v2106 = vpow.pop %v2105
    %v2107 = vmul.f32 %v2060, 1.442695
    %v2108 = vpow.pop %v2107
    %v2109 = vmul.f32 %v2061, 1.442695
    %v2110 = vpow.pop %v2109
    %v2111 = vmul.f32 %v2062, 1.442695
    %v2112 = vpow.pop %v2111
    %v2113 = vmul.f32 %v2063, 1.442695
    %v2114 = vpow.pop %v2113
    %v2115 = vmul.f32 %v2064, 1.442695
    %v2116 = vpow.pop %v2115
    %v2117 = vmul.f32 %v2065, 1.442695
    %v2118 = vpow.pop %v2117
    %v2119 = vmul.f32 %v2066, 1.442695
    %v2120 = vpow.pop %v2119
    %v2121 = vmul.f32 %v2067, 1.442695
    %v2122 = vpow.pop %v2121
    %v2123 = vmul.f32 %v2068, 1.442695
    %v2124 = vpow.pop %v2123
    %v2125 = vmul.f32 %v2069, 1.442695
    %v2126 = vpow.pop %v2125
    %v2127 = vmul.f32 %v2070, 1.442695
    %v2128 = vpow.pop %v2127
    %v2129 = vmul.f32 %v2071, 1.442695
    %v2130 = vpow.pop %v2129
    %v2131 = vmul.f32 %v2072, 1.442695
    %v2132 = vpow.pop %v2131
    %v2133 = vmul.f32 %v2073, 1.442695
    %v2134 = vpow.pop %v2133
    %v2135 = vmul.f32 %v2074, 1.442695
    %v2136 = vpow.pop %v2135
    %v2137 = vmul.f32 %v2075, 1.442695
    %v2138 = vpow.pop %v2137
    %v2139 = vmul.f32 %v2076, 1.442695
    %v2140 = vpow.pop %v2139
    %v2141 = vsel %vm278, %v2078, 0.0
    %2142 = vadd.xlane.f32.xlu0 %v2141
    %v2143 = vpop.xlane.xlu0 %2142
    %v2144 = vsel %vm278, %v2080, 0.0
    %2145 = vadd.xlane.f32.xlu0 %v2144
    %v2146 = vpop.xlane.xlu0 %2145
    %v2147 = vsel %vm278, %v2082, 0.0
    %2148 = vadd.xlane.f32.xlu0 %v2147
    %v2149 = vpop.xlane.xlu0 %2148
    %v2150 = vsel %vm278, %v2084, 0.0
    %2151 = vadd.xlane.f32.xlu0 %v2150
    %v2152 = vpop.xlane.xlu0 %2151
    %v2153 = vsel %vm278, %v2086, 0.0
    %2154 = vadd.xlane.f32.xlu0 %v2153
    %v2155 = vpop.xlane.xlu0 %2154
    %v2156 = vsel %vm278, %v2088, 0.0
    %2157 = vadd.xlane.f32.xlu0 %v2156
    %v2158 = vpop.xlane.xlu0 %2157
    %v2159 = vsel %vm278, %v2090, 0.0
    %2160 = vadd.xlane.f32.xlu0 %v2159
    %v2161 = vpop.xlane.xlu0 %2160
    %v2162 = vsel %vm278, %v2092, 0.0
    %2163 = vadd.xlane.f32.xlu0 %v2162
    %v2164 = vpop.xlane.xlu0 %2163
    %v2165 = vsel %vm278, %v2094, 0.0
    %2166 = vadd.xlane.f32.xlu0 %v2165
    %v2167 = vpop.xlane.xlu0 %2166
    %v2168 = vsel %vm278, %v2096, 0.0
    %2169 = vadd.xlane.f32.xlu0 %v2168
    %v2170 = vpop.xlane.xlu0 %2169
    %v2171 = vsel %vm278, %v2098, 0.0
    %2172 = vadd.xlane.f32.xlu0 %v2171
    %v2173 = vpop.xlane.xlu0 %2172
    %v2174 = vsel %vm278, %v2100, 0.0
    %2175 = vadd.xlane.f32.xlu0 %v2174
    %v2176 = vpop.xlane.xlu0 %2175
    %v2177 = vsel %vm278, %v2102, 0.0
    %2178 = vadd.xlane.f32.xlu0 %v2177
    %v2179 = vpop.xlane.xlu0 %2178
    %v2180 = vsel %vm278, %v2104, 0.0
    %2181 = vadd.xlane.f32.xlu0 %v2180
    %v2182 = vpop.xlane.xlu0 %2181
    %v2183 = vsel %vm278, %v2106, 0.0
    %2184 = vadd.xlane.f32.xlu0 %v2183
    %v2185 = vpop.xlane.xlu0 %2184
    %v2186 = vsel %vm278, %v2108, 0.0
    %2187 = vadd.xlane.f32.xlu0 %v2186
    %v2188 = vpop.xlane.xlu0 %2187
    %v2189 = vsel %vm278, %v2110, 0.0
    %2190 = vadd.xlane.f32.xlu0 %v2189
    %v2191 = vpop.xlane.xlu0 %2190
    %v2192 = vsel %vm278, %v2112, 0.0
    %2193 = vadd.xlane.f32.xlu0 %v2192
    %v2194 = vpop.xlane.xlu0 %2193
    %v2195 = vsel %vm278, %v2114, 0.0
    %2196 = vadd.xlane.f32.xlu0 %v2195
    %v2197 = vpop.xlane.xlu0 %2196
    %v2198 = vsel %vm278, %v2116, 0.0
    %2199 = vadd.xlane.f32.xlu0 %v2198
    %v2200 = vpop.xlane.xlu0 %2199
    %v2201 = vsel %vm278, %v2118, 0.0
    %2202 = vadd.xlane.f32.xlu0 %v2201
    %v2203 = vpop.xlane.xlu0 %2202
    %v2204 = vsel %vm278, %v2120, 0.0
    %2205 = vadd.xlane.f32.xlu0 %v2204
    %v2206 = vpop.xlane.xlu0 %2205
    %v2207 = vsel %vm278, %v2122, 0.0
    %2208 = vadd.xlane.f32.xlu0 %v2207
    %v2209 = vpop.xlane.xlu0 %2208
    %v2210 = vsel %vm278, %v2124, 0.0
    %2211 = vadd.xlane.f32.xlu0 %v2210
    %v2212 = vpop.xlane.xlu0 %2211
    %v2213 = vsel %vm278, %v2126, 0.0
    %2214 = vadd.xlane.f32.xlu0 %v2213
    %v2215 = vpop.xlane.xlu0 %2214
    %v2216 = vsel %vm278, %v2128, 0.0
    %2217 = vadd.xlane.f32.xlu0 %v2216
    %v2218 = vpop.xlane.xlu0 %2217
    %v2219 = vsel %vm278, %v2130, 0.0
    %2220 = vadd.xlane.f32.xlu0 %v2219
    %v2221 = vpop.xlane.xlu0 %2220
    %v2222 = vsel %vm278, %v2132, 0.0
    %2223 = vadd.xlane.f32.xlu0 %v2222
    %v2224 = vpop.xlane.xlu0 %2223
    %v2225 = vsel %vm278, %v2134, 0.0
    %2226 = vadd.xlane.f32.xlu0 %v2225
    %v2227 = vpop.xlane.xlu0 %2226
    %v2228 = vsel %vm278, %v2136, 0.0
    %2229 = vadd.xlane.f32.xlu0 %v2228
    %v2230 = vpop.xlane.xlu0 %2229
    %v2231 = vsel %vm278, %v2138, 0.0
    %2232 = vadd.xlane.f32.xlu0 %v2231
    %v2233 = vpop.xlane.xlu0 %2232
    %v2234 = vsel %vm278, %v2140, 0.0
    %2235 = vadd.xlane.f32.xlu0 %v2234
    %v2236 = vpop.xlane.xlu0 %2235
    %v2237 = vrcp.pop %v2143
    %v2238 = vrcp.pop %v2146
    %v2239 = vrcp.pop %v2149
    %v2240 = vrcp.pop %v2152
    %v2241 = vrcp.pop %v2155
    %v2242 = vrcp.pop %v2158
    %v2243 = vrcp.pop %v2161
    %v2244 = vrcp.pop %v2164
    %v2245 = vrcp.pop %v2167
    %v2246 = vrcp.pop %v2170
    %v2247 = vrcp.pop %v2173
    %v2248 = vrcp.pop %v2176
    %v2249 = vrcp.pop %v2179
    %v2250 = vrcp.pop %v2182
    %v2251 = vrcp.pop %v2185
    %v2252 = vrcp.pop %v2188
    %v2253 = vrcp.pop %v2191
    %v2254 = vrcp.pop %v2194
    %v2255 = vrcp.pop %v2197
    %v2256 = vrcp.pop %v2200
    %v2257 = vrcp.pop %v2203
    %v2258 = vrcp.pop %v2206
    %v2259 = vrcp.pop %v2209
    %v2260 = vrcp.pop %v2212
    %v2261 = vrcp.pop %v2215
    %v2262 = vrcp.pop %v2218
    %v2263 = vrcp.pop %v2221
    %v2264 = vrcp.pop %v2224
    %v2265 = vrcp.pop %v2227
    %v2266 = vrcp.pop %v2230
    %v2267 = vrcp.pop %v2233
    %v2268 = vrcp.pop %v2236
    %v2269 = vmul.f32 %v2078, %v2237
    %v2270 = vmul.f32 %v2080, %v2238
    %v2271 = vmul.f32 %v2082, %v2239
    %v2272 = vmul.f32 %v2084, %v2240
    %v2273 = vmul.f32 %v2086, %v2241
    %v2274 = vmul.f32 %v2088, %v2242
    %v2275 = vmul.f32 %v2090, %v2243
    %v2276 = vmul.f32 %v2092, %v2244
    %v2277 = vmul.f32 %v2094, %v2245
    %v2278 = vmul.f32 %v2096, %v2246
    %v2279 = vmul.f32 %v2098, %v2247
    %v2280 = vmul.f32 %v2100, %v2248
    %v2281 = vmul.f32 %v2102, %v2249
    %v2282 = vmul.f32 %v2104, %v2250
    %v2283 = vmul.f32 %v2106, %v2251
    %v2284 = vmul.f32 %v2108, %v2252
    %v2285 = vmul.f32 %v2110, %v2253
    %v2286 = vmul.f32 %v2112, %v2254
    %v2287 = vmul.f32 %v2114, %v2255
    %v2288 = vmul.f32 %v2116, %v2256
    %v2289 = vmul.f32 %v2118, %v2257
    %v2290 = vmul.f32 %v2120, %v2258
    %v2291 = vmul.f32 %v2122, %v2259
    %v2292 = vmul.f32 %v2124, %v2260
    %v2293 = vmul.f32 %v2126, %v2261
    %v2294 = vmul.f32 %v2128, %v2262
    %v2295 = vmul.f32 %v2130, %v2263
    %v2296 = vmul.f32 %v2132, %v2264
    %v2297 = vmul.f32 %v2134, %v2265
    %v2298 = vmul.f32 %v2136, %v2266
    %v2299 = vmul.f32 %v2138, %v2267
    %v2300 = vmul.f32 %v2140, %v2268
    %2301 = vst.msk [vmem:[#allocation11] sm:$0xff] %vm278, %v2269
    %2302 = vst.msk [vmem:[#allocation11 + $0x8] sm:$0xff] %vm278, %v2270
    %2303 = vst.msk [vmem:[#allocation11 + $0x10] sm:$0xff] %vm278, %v2271
    %2304 = vst.msk [vmem:[#allocation11 + $0x18] sm:$0xff] %vm278, %v2272
    %2305 = vst.msk [vmem:[#allocation11 + $0x20] sm:$0xff] %vm278, %v2273
    %2306 = vst.msk [vmem:[#allocation11 + $0x28] sm:$0xff] %vm278, %v2274
    %2307 = vst.msk [vmem:[#allocation11 + $0x30] sm:$0xff] %vm278, %v2275
    %2308 = vst.msk [vmem:[#allocation11 + $0x38] sm:$0xff] %vm278, %v2276
    %2309 = vst.msk [vmem:[#allocation11 + $0x40] sm:$0xff] %vm278, %v2277
    %2310 = vst.msk [vmem:[#allocation11 + $0x48] sm:$0xff] %vm278, %v2278
    %2311 = vst.msk [vmem:[#allocation11 + $0x50] sm:$0xff] %vm278, %v2279
    %2312 = vst.msk [vmem:[#allocation11 + $0x58] sm:$0xff] %vm278, %v2280
    %2313 = vst.msk [vmem:[#allocation11 + $0x60] sm:$0xff] %vm278, %v2281
    %2314 = vst.msk [vmem:[#allocation11 + $0x68] sm:$0xff] %vm278, %v2282
    %2315 = vst.msk [vmem:[#allocation11 + $0x70] sm:$0xff] %vm278, %v2283
    %2316 = vst.msk [vmem:[#allocation11 + $0x78] sm:$0xff] %vm278, %v2284
    %2317 = vst.msk [vmem:[#allocation11 + $0x80] sm:$0xff] %vm278, %v2285
    %2318 = vst.msk [vmem:[#allocation11 + $0x88] sm:$0xff] %vm278, %v2286
    %2319 = vst.msk [vmem:[#allocation11 + $0x90] sm:$0xff] %vm278, %v2287
    %2320 = vst.msk [vmem:[#allocation11 + $0x98] sm:$0xff] %vm278, %v2288
    %2321 = vst.msk [vmem:[#allocation11 + $0xa0] sm:$0xff] %vm278, %v2289
    %2322 = vst.msk [vmem:[#allocation11 + $0xa8] sm:$0xff] %vm278, %v2290
    %2323 = vst.msk [vmem:[#allocation11 + $0xb0] sm:$0xff] %vm278, %v2291
    %2324 = vst.msk [vmem:[#allocation11 + $0xb8] sm:$0xff] %vm278, %v2292
    %2325 = vst.msk [vmem:[#allocation11 + $0xc0] sm:$0xff] %vm278, %v2293
    %2326 = vst.msk [vmem:[#allocation11 + $0xc8] sm:$0xff] %vm278, %v2294
    %2327 = vst.msk [vmem:[#allocation11 + $0xd0] sm:$0xff] %vm278, %v2295
    %2328 = vst.msk [vmem:[#allocation11 + $0xd8] sm:$0xff] %vm278, %v2296
    %2329 = vst.msk [vmem:[#allocation11 + $0xe0] sm:$0xff] %vm278, %v2297
    %2330 = vst.msk [vmem:[#allocation11 + $0xe8] sm:$0xff] %vm278, %v2298
    %2331 = vst.msk [vmem:[#allocation11 + $0xf0] sm:$0xff] %vm278, %v2299
    %2332 = vst.msk [vmem:[#allocation11 + $0xf8] sm:$0xff] %vm278, %v2300
    %v2333 = vpack.c.bf16 %v2269, %v2269
    %v2334 = vpack.c.bf16 %v2270, %v2270
    %v2335 = vpack.c.bf16 %v2271, %v2271
    %v2336 = vpack.c.bf16 %v2272, %v2272
    %v2337 = vpack.c.bf16 %v2273, %v2273
    %v2338 = vpack.c.bf16 %v2274, %v2274
    %v2339 = vpack.c.bf16 %v2275, %v2275
    %v2340 = vpack.c.bf16 %v2276, %v2276
    %v2341 = vpack.c.bf16 %v2277, %v2277
    %v2342 = vpack.c.bf16 %v2278, %v2278
    %v2343 = vpack.c.bf16 %v2279, %v2279
    %v2344 = vpack.c.bf16 %v2280, %v2280
    %v2345 = vpack.c.bf16 %v2281, %v2281
    %v2346 = vpack.c.bf16 %v2282, %v2282
    %v2347 = vpack.c.bf16 %v2283, %v2283
    %v2348 = vpack.c.bf16 %v2284, %v2284
    %v2349 = vpack.c.bf16 %v2285, %v2285
    %v2350 = vpack.c.bf16 %v2286, %v2286
    %v2351 = vpack.c.bf16 %v2287, %v2287
    %v2352 = vpack.c.bf16 %v2288, %v2288
    %v2353 = vpack.c.bf16 %v2289, %v2289
    %v2354 = vpack.c.bf16 %v2290, %v2290
    %v2355 = vpack.c.bf16 %v2291, %v2291
    %v2356 = vpack.c.bf16 %v2292, %v2292
    %v2357 = vpack.c.bf16 %v2293, %v2293
    %v2358 = vpack.c.bf16 %v2294, %v2294
    %v2359 = vpack.c.bf16 %v2295, %v2295
    %v2360 = vpack.c.bf16 %v2296, %v2296
    %v2361 = vpack.c.bf16 %v2297, %v2297
    %v2362 = vpack.c.bf16 %v2298, %v2298
    %v2363 = vpack.c.bf16 %v2299, %v2299
    %v2364 = vpack.c.bf16 %v2300, %v2300
    %2365 = vrot.lane.b32.xlu0 %v220, 64
    %v2366 = vpop.permute.xlu0 %2365
    %v2368 = vsel %vm278, %v2333, 0
    %vm2370 = vcmask 1043456
    %v2372 = vsel %vm2370, %v2366, 0
    %2374 = vmatprep.subr.bf16.mxu0 0
    %2375 = vmatpush1.bf16.msra.mxu0 %v2372
    %2376 = vmatprep.subr.bf16.mxu0 0
    %2377 = vmatpush1.bf16.msra.mxu0 0
    %2378 = vmatprep.subr.bf16.mxu0 0
    %2379 = vmatpush1.bf16.msra.mxu0 0
    %2380 = vmatprep.subr.bf16.mxu0 0
    %2381 = vmatpush1.bf16.msra.mxu0 0
    %2382 = vmatprep.subr.bf16.mxu0 0
    %2383 = vmatpush1.bf16.msra.mxu0 0
    %2384 = vmatprep.subr.bf16.mxu0 0
    %2385 = vmatpush1.bf16.msra.mxu0 0
    %2386 = vmatprep.subr.bf16.mxu0 0
    %2387 = vmatpush1.bf16.msra.mxu0 0
    %2388 = vmatprep.subr.bf16.mxu0 0
    %2389 = vmatpush1.bf16.msra.mxu0 0
    %2390 = vmatprep.subr.bf16.mxu0 0
    %2391 = vmatpush1.bf16.msra.mxu0 0
    %2392 = vmatprep.subr.bf16.mxu0 0
    %2393 = vmatpush1.bf16.msra.mxu0 0
    %2394 = vmatprep.subr.bf16.mxu0 0
    %2395 = vmatpush1.bf16.msra.mxu0 0
    %2396 = vmatprep.subr.bf16.mxu0 0
    %2397 = vmatpush1.bf16.msra.mxu0 0
    %2398 = vmatprep.subr.bf16.mxu0 0
    %2399 = vmatpush1.bf16.msra.mxu0 0
    %2400 = vmatprep.subr.bf16.mxu0 0
    %2401 = vmatpush1.bf16.msra.mxu0 0
    %2402 = vmatprep.subr.bf16.mxu0 0
    %2403 = vmatpush1.bf16.msra.mxu0 0
    %2404 = vmatprep.subr.bf16.mxu0 0
    %2405 = vmatpush1.bf16.msra.mxu0 0
    %2406 = vmatprep.mubr.bf16.mxu0 0
    %2407 = vmatmul.mubr.bf16.gmra.mrb[0].mxu0 %v2368
    %v2408 = vpop.f32.mrb[0].mxu0
    %v2409 = vadd.f32 0.0, %v2408
    %v2410 = vpop.f32.mrb[0].mxu0
    %v2411 = vpop.f32.mrb[0].mxu0
    %v2412 = vpop.f32.mrb[0].mxu0
    %2413 = vdwg.mxu0
    %2414 = vrot.lane.b32.xlu0 %v326, 64
    %v2415 = vpop.permute.xlu0 %2414
    %v2417 = vsel %vm278, %v2334, 0
    %v2420 = vsel %vm2370, %v2415, 0
    %2422 = vmatprep.subr.bf16.mxu0 0
    %2423 = vmatpush1.bf16.msra.mxu0 %v2420
    %2424 = vmatprep.subr.bf16.mxu0 0
    %2425 = vmatpush1.bf16.msra.mxu0 0
    %2426 = vmatprep.subr.bf16.mxu0 0
    %2427 = vmatpush1.bf16.msra.mxu0 0
    %2428 = vmatprep.subr.bf16.mxu0 0
    %2429 = vmatpush1.bf16.msra.mxu0 0
    %2430 = vmatprep.subr.bf16.mxu0 0
    %2431 = vmatpush1.bf16.msra.mxu0 0
    %2432 = vmatprep.subr.bf16.mxu0 0
    %2433 = vmatpush1.bf16.msra.mxu0 0
    %2434 = vmatprep.subr.bf16.mxu0 0
    %2435 = vmatpush1.bf16.msra.mxu0 0
    %2436 = vmatprep.subr.bf16.mxu0 0
    %2437 = vmatpush1.bf16.msra.mxu0 0
    %2438 = vmatprep.subr.bf16.mxu0 0
    %2439 = vmatpush1.bf16.msra.mxu0 0
    %2440 = vmatprep.subr.bf16.mxu0 0
    %2441 = vmatpush1.bf16.msra.mxu0 0
    %2442 = vmatprep.subr.bf16.mxu0 0
    %2443 = vmatpush1.bf16.msra.mxu0 0
    %2444 = vmatprep.subr.bf16.mxu0 0
    %2445 = vmatpush1.bf16.msra.mxu0 0
    %2446 = vmatprep.subr.bf16.mxu0 0
    %2447 = vmatpush1.bf16.msra.mxu0 0
    %2448 = vmatprep.subr.bf16.mxu0 0
    %2449 = vmatpush1.bf16.msra.mxu0 0
    %2450 = vmatprep.subr.bf16.mxu0 0
    %2451 = vmatpush1.bf16.msra.mxu0 0
    %2452 = vmatprep.subr.bf16.mxu0 0
    %2453 = vmatpush1.bf16.msra.mxu0 0
    %2454 = vmatprep.mubr.bf16.mxu0 0
    %2455 = vmatmul.mubr.bf16.gmra.mrb[0].mxu0 %v2417
    %v2456 = vpop.f32.mrb[0].mxu0
    %v2457 = vadd.f32 0.0, %v2456
    %v2458 = vpop.f32.mrb[0].mxu0
    %v2459 = vpop.f32.mrb[0].mxu0
    %v2460 = vpop.f32.mrb[0].mxu0
    %2461 = vdwg.mxu0
    %2462 = vrot.lane.b32.xlu0 %v376, 64
    %v2463 = vpop.permute.xlu0 %2462
    %v2465 = vsel %vm278, %v2335, 0
    %v2468 = vsel %vm2370, %v2463, 0
    %2470 = vmatprep.subr.bf16.mxu0 0
    %2471 = vmatpush1.bf16.msra.mxu0 %v2468
    %2472 = vmatprep.subr.bf16.mxu0 0
    %2473 = vmatpush1.bf16.msra.mxu0 0
    %2474 = vmatprep.subr.bf16.mxu0 0
    %2475 = vmatpush1.bf16.msra.mxu0 0
    %2476 = vmatprep.subr.bf16.mxu0 0
    %2477 = vmatpush1.bf16.msra.mxu0 0
    %2478 = vmatprep.subr.bf16.mxu0 0
    %2479 = vmatpush1.bf16.msra.mxu0 0
    %2480 = vmatprep.subr.bf16.mxu0 0
    %2481 = vmatpush1.bf16.msra.mxu0 0
    %2482 = vmatprep.subr.bf16.mxu0 0
    %2483 = vmatpush1.bf16.msra.mxu0 0
    %2484 = vmatprep.subr.bf16.mxu0 0
    %2485 = vmatpush1.bf16.msra.mxu0 0
    %2486 = vmatprep.subr.bf16.mxu0 0
    %2487 = vmatpush1.bf16.msra.mxu0 0
    %2488 = vmatprep.subr.bf16.mxu0 0
    %2489 = vmatpush1.bf16.msra.mxu0 0
    %2490 = vmatprep.subr.bf16.mxu0 0
    %2491 = vmatpush1.bf16.msra.mxu0 0
    %2492 = vmatprep.subr.bf16.mxu0 0
    %2493 = vmatpush1.bf16.msra.mxu0 0
    %2494 = vmatprep.subr.bf16.mxu0 0
    %2495 = vmatpush1.bf16.msra.mxu0 0
    %2496 = vmatprep.subr.bf16.mxu0 0
    %2497 = vmatpush1.bf16.msra.mxu0 0
    %2498 = vmatprep.subr.bf16.mxu0 0
    %2499 = vmatpush1.bf16.msra.mxu0 0
    %2500 = vmatprep.subr.bf16.mxu0 0
    %2501 = vmatpush1.bf16.msra.mxu0 0
    %2502 = vmatprep.mubr.bf16.mxu0 0
    %2503 = vmatmul.mubr.bf16.gmra.mrb[0].mxu0 %v2465
    %v2504 = vpop.f32.mrb[0].mxu0
    %v2505 = vadd.f32 0.0, %v2504
    %v2506 = vpop.f32.mrb[0].mxu0
    %v2507 = vpop.f32.mrb[0].mxu0
    %v2508 = vpop.f32.mrb[0].mxu0
    %2509 = vdwg.mxu0
    %2510 = vrot.lane.b32.xlu0 %v426, 64
    %v2511 = vpop.permute.xlu0 %2510
    %v2513 = vsel %vm278, %v2336, 0
    %v2516 = vsel %vm2370, %v2511, 0
    %2518 = vmatprep.subr.bf16.mxu0 0
    %2519 = vmatpush1.bf16.msra.mxu0 %v2516
    %2520 = vmatprep.subr.bf16.mxu0 0
    %2521 = vmatpush1.bf16.msra.mxu0 0
    %2522 = vmatprep.subr.bf16.mxu0 0
    %2523 = vmatpush1.bf16.msra.mxu0 0
    %2524 = vmatprep.subr.bf16.mxu0 0
    %2525 = vmatpush1.bf16.msra.mxu0 0
    %2526 = vmatprep.subr.bf16.mxu0 0
    %2527 = vmatpush1.bf16.msra.mxu0 0
    %2528 = vmatprep.subr.bf16.mxu0 0
    %2529 = vmatpush1.bf16.msra.mxu0 0
    %2530 = vmatprep.subr.bf16.mxu0 0
    %2531 = vmatpush1.bf16.msra.mxu0 0
    %2532 = vmatprep.subr.bf16.mxu0 0
    %2533 = vmatpush1.bf16.msra.mxu0 0
    %2534 = vmatprep.subr.bf16.mxu0 0
    %2535 = vmatpush1.bf16.msra.mxu0 0
    %2536 = vmatprep.subr.bf16.mxu0 0
    %2537 = vmatpush1.bf16.msra.mxu0 0
    %2538 = vmatprep.subr.bf16.mxu0 0
    %2539 = vmatpush1.bf16.msra.mxu0 0
    %2540 = vmatprep.subr.bf16.mxu0 0
    %2541 = vmatpush1.bf16.msra.mxu0 0
    %2542 = vmatprep.subr.bf16.mxu0 0
    %2543 = vmatpush1.bf16.msra.mxu0 0
    %2544 = vmatprep.subr.bf16.mxu0 0
    %2545 = vmatpush1.bf16.msra.mxu0 0
    %2546 = vmatprep.subr.bf16.mxu0 0
    %2547 = vmatpush1.bf16.msra.mxu0 0
    %2548 = vmatprep.subr.bf16.mxu0 0
    %2549 = vmatpush1.bf16.msra.mxu0 0
    %2550 = vmatprep.mubr.bf16.mxu0 0
    %2551 = vmatmul.mubr.bf16.gmra.mrb[0].mxu0 %v2513
    %v2552 = vpop.f32.mrb[0].mxu0
    %v2553 = vadd.f32 0.0, %v2552
    %v2554 = vpop.f32.mrb[0].mxu0
    %v2555 = vpop.f32.mrb[0].mxu0
    %v2556 = vpop.f32.mrb[0].mxu0
    %2557 = vdwg.mxu0
    %2558 = vrot.lane.b32.xlu0 %v221, 64
    %v2559 = vpop.permute.xlu0 %2558
    %v2561 = vsel %vm278, %v2337, 0
    %v2564 = vsel %vm2370, %v2559, 0
    %2566 = vmatprep.subr.bf16.mxu0 0
    %2567 = vmatpush1.bf16.msra.mxu0 %v2564
    %2568 = vmatprep.subr.bf16.mxu0 0
    %2569 = vmatpush1.bf16.msra.mxu0 0
    %2570 = vmatprep.subr.bf16.mxu0 0
    %2571 = vmatpush1.bf16.msra.mxu0 0
    %2572 = vmatprep.subr.bf16.mxu0 0
    %2573 = vmatpush1.bf16.msra.mxu0 0
    %2574 = vmatprep.subr.bf16.mxu0 0
    %2575 = vmatpush1.bf16.msra.mxu0 0
    %2576 = vmatprep.subr.bf16.mxu0 0
    %2577 = vmatpush1.bf16.msra.mxu0 0
    %2578 = vmatprep.subr.bf16.mxu0 0
    %2579 = vmatpush1.bf16.msra.mxu0 0
    %2580 = vmatprep.subr.bf16.mxu0 0
    %2581 = vmatpush1.bf16.msra.mxu0 0
    %2582 = vmatprep.subr.bf16.mxu0 0
    %2583 = vmatpush1.bf16.msra.mxu0 0
    %2584 = vmatprep.subr.bf16.mxu0 0
    %2585 = vmatpush1.bf16.msra.mxu0 0
    %2586 = vmatprep.subr.bf16.mxu0 0
    %2587 = vmatpush1.bf16.msra.mxu0 0
    %2588 = vmatprep.subr.bf16.mxu0 0
    %2589 = vmatpush1.bf16.msra.mxu0 0
    %2590 = vmatprep.subr.bf16.mxu0 0
    %2591 = vmatpush1.bf16.msra.mxu0 0
    %2592 = vmatprep.subr.bf16.mxu0 0
    %2593 = vmatpush1.bf16.msra.mxu0 0
    %2594 = vmatprep.subr.bf16.mxu0 0
    %2595 = vmatpush1.bf16.msra.mxu0 0
    %2596 = vmatprep.subr.bf16.mxu0 0
    %2597 = vmatpush1.bf16.msra.mxu0 0
    %2598 = vmatprep.mubr.bf16.mxu0 0
    %2599 = vmatmul.mubr.bf16.gmra.mrb[0].mxu0 %v2561
    %v2600 = vpop.f32.mrb[0].mxu0
    %v2601 = vadd.f32 0.0, %v2600
    %v2602 = vpop.f32.mrb[0].mxu0
    %v2603 = vpop.f32.mrb[0].mxu0
    %v2604 = vpop.f32.mrb[0].mxu0
    %2605 = vdwg.mxu0
    %2606 = vrot.lane.b32.xlu0 %v524, 64
    %v2607 = vpop.permute.xlu0 %2606
    %v2609 = vsel %vm278, %v2338, 0
    %v2612 = vsel %vm2370, %v2607, 0
    %2614 = vmatprep.subr.bf16.mxu0 0
    %2615 = vmatpush1.bf16.msra.mxu0 %v2612
    %2616 = vmatprep.subr.bf16.mxu0 0
    %2617 = vmatpush1.bf16.msra.mxu0 0
    %2618 = vmatprep.subr.bf16.mxu0 0
    %2619 = vmatpush1.bf16.msra.mxu0 0
    %2620 = vmatprep.subr.bf16.mxu0 0
    %2621 = vmatpush1.bf16.msra.mxu0 0
    %2622 = vmatprep.subr.bf16.mxu0 0
    %2623 = vmatpush1.bf16.msra.mxu0 0
    %2624 = vmatprep.subr.bf16.mxu0 0
    %2625 = vmatpush1.bf16.msra.mxu0 0
    %2626 = vmatprep.subr.bf16.mxu0 0
    %2627 = vmatpush1.bf16.msra.mxu0 0
    %2628 = vmatprep.subr.bf16.mxu0 0
    %2629 = vmatpush1.bf16.msra.mxu0 0
    %2630 = vmatprep.subr.bf16.mxu0 0
    %2631 = vmatpush1.bf16.msra.mxu0 0
    %2632 = vmatprep.subr.bf16.mxu0 0
    %2633 = vmatpush1.bf16.msra.mxu0 0
    %2634 = vmatprep.subr.bf16.mxu0 0
    %2635 = vmatpush1.bf16.msra.mxu0 0
    %2636 = vmatprep.subr.bf16.mxu0 0
    %2637 = vmatpush1.bf16.msra.mxu0 0
    %2638 = vmatprep.subr.bf16.mxu0 0
    %2639 = vmatpush1.bf16.msra.mxu0 0
    %2640 = vmatprep.subr.bf16.mxu0 0
    %2641 = vmatpush1.bf16.msra.mxu0 0
    %2642 = vmatprep.subr.bf16.mxu0 0
    %2643 = vmatpush1.bf16.msra.mxu0 0
    %2644 = vmatprep.subr.bf16.mxu0 0
    %2645 = vmatpush1.bf16.msra.mxu0 0
    %2646 = vmatprep.mubr.bf16.mxu0 0
    %2647 = vmatmul.mubr.bf16.gmra.mrb[0].mxu0 %v2609
    %v2648 = vpop.f32.mrb[0].mxu0
    %v2649 = vadd.f32 0.0, %v2648
    %v2650 = vpop.f32.mrb[0].mxu0
    %v2651 = vpop.f32.mrb[0].mxu0
    %v2652 = vpop.f32.mrb[0].mxu0
    %2653 = vdwg.mxu0
    %2654 = vrot.lane.b32.xlu0 %v574, 64
    %v2655 = vpop.permute.xlu0 %2654
    %v2657 = vsel %vm278, %v2339, 0
    %v2660 = vsel %vm2370, %v2655, 0
    %2662 = vmatprep.subr.bf16.mxu0 0
    %2663 = vmatpush1.bf16.msra.mxu0 %v2660
    %2664 = vmatprep.subr.bf16.mxu0 0
    %2665 = vmatpush1.bf16.msra.mxu0 0
    %2666 = vmatprep.subr.bf16.mxu0 0
    %2667 = vmatpush1.bf16.msra.mxu0 0
    %2668 = vmatprep.subr.bf16.mxu0 0
    %2669 = vmatpush1.bf16.msra.mxu0 0
    %2670 = vmatprep.subr.bf16.mxu0 0
    %2671 = vmatpush1.bf16.msra.mxu0 0
    %2672 = vmatprep.subr.bf16.mxu0 0
    %2673 = vmatpush1.bf16.msra.mxu0 0
    %2674 = vmatprep.subr.bf16.mxu0 0
    %2675 = vmatpush1.bf16.msra.mxu0 0
    %2676 = vmatprep.subr.bf16.mxu0 0
    %2677 = vmatpush1.bf16.msra.mxu0 0
    %2678 = vmatprep.subr.bf16.mxu0 0
    %2679 = vmatpush1.bf16.msra.mxu0 0
    %2680 = vmatprep.subr.bf16.mxu0 0
    %2681 = vmatpush1.bf16.msra.mxu0 0
    %2682 = vmatprep.subr.bf16.mxu0 0
    %2683 = vmatpush1.bf16.msra.mxu0 0
    %2684 = vmatprep.subr.bf16.mxu0 0
    %2685 = vmatpush1.bf16.msra.mxu0 0
    %2686 = vmatprep.subr.bf16.mxu0 0
    %2687 = vmatpush1.bf16.msra.mxu0 0
    %2688 = vmatprep.subr.bf16.mxu0 0
    %2689 = vmatpush1.bf16.msra.mxu0 0
    %2690 = vmatprep.subr.bf16.mxu0 0
    %2691 = vmatpush1.bf16.msra.mxu0 0
    %2692 = vmatprep.subr.bf16.mxu0 0
    %2693 = vmatpush1.bf16.msra.mxu0 0
    %2694 = vmatprep.mubr.bf16.mxu0 0
    %2695 = vmatmul.mubr.bf16.gmra.mrb[0].mxu0 %v2657
    %v2696 = vpop.f32.mrb[0].mxu0
    %v2697 = vadd.f32 0.0, %v2696
    %v2698 = vpop.f32.mrb[0].mxu0
    %v2699 = vpop.f32.mrb[0].mxu0
    %v2700 = vpop.f32.mrb[0].mxu0
    %2701 = vdwg.mxu0
    %2702 = vrot.lane.b32.xlu0 %v624, 64
    %v2703 = vpop.permute.xlu0 %2702
    %v2705 = vsel %vm278, %v2340, 0
    %v2708 = vsel %vm2370, %v2703, 0
    %2710 = vmatprep.subr.bf16.mxu0 0
    %2711 = vmatpush1.bf16.msra.mxu0 %v2708
    %2712 = vmatprep.subr.bf16.mxu0 0
    %2713 = vmatpush1.bf16.msra.mxu0 0
    %2714 = vmatprep.subr.bf16.mxu0 0
    %2715 = vmatpush1.bf16.msra.mxu0 0
    %2716 = vmatprep.subr.bf16.mxu0 0
    %2717 = vmatpush1.bf16.msra.mxu0 0
    %2718 = vmatprep.subr.bf16.mxu0 0
    %2719 = vmatpush1.bf16.msra.mxu0 0
    %2720 = vmatprep.subr.bf16.mxu0 0
    %2721 = vmatpush1.bf16.msra.mxu0 0
    %2722 = vmatprep.subr.bf16.mxu0 0
    %2723 = vmatpush1.bf16.msra.mxu0 0
    %2724 = vmatprep.subr.bf16.mxu0 0
    %2725 = vmatpush1.bf16.msra.mxu0 0
    %2726 = vmatprep.subr.bf16.mxu0 0
    %2727 = vmatpush1.bf16.msra.mxu0 0
    %2728 = vmatprep.subr.bf16.mxu0 0
    %2729 = vmatpush1.bf16.msra.mxu0 0
    %2730 = vmatprep.subr.bf16.mxu0 0
    %2731 = vmatpush1.bf16.msra.mxu0 0
    %2732 = vmatprep.subr.bf16.mxu0 0
    %2733 = vmatpush1.bf16.msra.mxu0 0
    %2734 = vmatprep.subr.bf16.mxu0 0
    %2735 = vmatpush1.bf16.msra.mxu0 0
    %2736 = vmatprep.subr.bf16.mxu0 0
    %2737 = vmatpush1.bf16.msra.mxu0 0
    %2738 = vmatprep.subr.bf16.mxu0 0
    %2739 = vmatpush1.bf16.msra.mxu0 0
    %2740 = vmatprep.subr.bf16.mxu0 0
    %2741 = vmatpush1.bf16.msra.mxu0 0
    %2742 = vmatprep.mubr.bf16.mxu0 0
    %2743 = vmatmul.mubr.bf16.gmra.mrb[0].mxu0 %v2705
    %v2744 = vpop.f32.mrb[0].mxu0
    %v2745 = vadd.f32 0.0, %v2744
    %v2746 = vpop.f32.mrb[0].mxu0
    %v2747 = vpop.f32.mrb[0].mxu0
    %v2748 = vpop.f32.mrb[0].mxu0
    %2749 = vdwg.mxu0
    %2750 = vrot.lane.b32.xlu0 %v222, 64
    %v2751 = vpop.permute.xlu0 %2750
    %v2753 = vsel %vm278, %v2341, 0
    %v2756 = vsel %vm2370, %v2751, 0
    %2758 = vmatprep.subr.bf16.mxu0 0
    %2759 = vmatpush1.bf16.msra.mxu0 %v2756
    %2760 = vmatprep.subr.bf16.mxu0 0
    %2761 = vmatpush1.bf16.msra.mxu0 0
    %2762 = vmatprep.subr.bf16.mxu0 0
    %2763 = vmatpush1.bf16.msra.mxu0 0
    %2764 = vmatprep.subr.bf16.mxu0 0
    %2765 = vmatpush1.bf16.msra.mxu0 0
    %2766 = vmatprep.subr.bf16.mxu0 0
    %2767 = vmatpush1.bf16.msra.mxu0 0
    %2768 = vmatprep.subr.bf16.mxu0 0
    %2769 = vmatpush1.bf16.msra.mxu0 0
    %2770 = vmatprep.subr.bf16.mxu0 0
    %2771 = vmatpush1.bf16.msra.mxu0 0
    %2772 = vmatprep.subr.bf16.mxu0 0
    %2773 = vmatpush1.bf16.msra.mxu0 0
    %2774 = vmatprep.subr.bf16.mxu0 0
    %2775 = vmatpush1.bf16.msra.mxu0 0
    %2776 = vmatprep.subr.bf16.mxu0 0
    %2777 = vmatpush1.bf16.msra.mxu0 0
    %2778 = vmatprep.subr.bf16.mxu0 0
    %2779 = vmatpush1.bf16.msra.mxu0 0
    %2780 = vmatprep.subr.bf16.mxu0 0
    %2781 = vmatpush1.bf16.msra.mxu0 0
    %2782 = vmatprep.subr.bf16.mxu0 0
    %2783 = vmatpush1.bf16.msra.mxu0 0
    %2784 = vmatprep.subr.bf16.mxu0 0
    %2785 = vmatpush1.bf16.msra.mxu0 0
    %2786 = vmatprep.subr.bf16.mxu0 0
    %2787 = vmatpush1.bf16.msra.mxu0 0
    %2788 = vmatprep.subr.bf16.mxu0 0
    %2789 = vmatpush1.bf16.msra.mxu0 0
    %2790 = vmatprep.mubr.bf16.mxu0 0
    %2791 = vmatmul.mubr.bf16.gmra.mrb[0].mxu0 %v2753
    %v2792 = vpop.f32.mrb[0].mxu0
    %v2793 = vadd.f32 0.0, %v2792
    %v2794 = vpop.f32.mrb[0].mxu0
    %v2795 = vpop.f32.mrb[0].mxu0
    %v2796 = vpop.f32.mrb[0].mxu0
    %2797 = vdwg.mxu0
    %2798 = vrot.lane.b32.xlu0 %v722, 64
    %v2799 = vpop.permute.xlu0 %2798
    %v2801 = vsel %vm278, %v2342, 0
    %v2804 = vsel %vm2370, %v2799, 0
    %2806 = vmatprep.subr.bf16.mxu0 0
    %2807 = vmatpush1.bf16.msra.mxu0 %v2804
    %2808 = vmatprep.subr.bf16.mxu0 0
    %2809 = vmatpush1.bf16.msra.mxu0 0
    %2810 = vmatprep.subr.bf16.mxu0 0
    %2811 = vmatpush1.bf16.msra.mxu0 0
    %2812 = vmatprep.subr.bf16.mxu0 0
    %2813 = vmatpush1.bf16.msra.mxu0 0
    %2814 = vmatprep.subr.bf16.mxu0 0
    %2815 = vmatpush1.bf16.msra.mxu0 0
    %2816 = vmatprep.subr.bf16.mxu0 0
    %2817 = vmatpush1.bf16.msra.mxu0 0
    %2818 = vmatprep.subr.bf16.mxu0 0
    %2819 = vmatpush1.bf16.msra.mxu0 0
    %2820 = vmatprep.subr.bf16.mxu0 0
    %2821 = vmatpush1.bf16.msra.mxu0 0
    %2822 = vmatprep.subr.bf16.mxu0 0
    %2823 = vmatpush1.bf16.msra.mxu0 0
    %2824 = vmatprep.subr.bf16.mxu0 0
    %2825 = vmatpush1.bf16.msra.mxu0 0
    %2826 = vmatprep.subr.bf16.mxu0 0
    %2827 = vmatpush1.bf16.msra.mxu0 0
    %2828 = vmatprep.subr.bf16.mxu0 0
    %2829 = vmatpush1.bf16.msra.mxu0 0
    %2830 = vmatprep.subr.bf16.mxu0 0
    %2831 = vmatpush1.bf16.msra.mxu0 0
    %2832 = vmatprep.subr.bf16.mxu0 0
    %2833 = vmatpush1.bf16.msra.mxu0 0
    %2834 = vmatprep.subr.bf16.mxu0 0
    %2835 = vmatpush1.bf16.msra.mxu0 0
    %2836 = vmatprep.subr.bf16.mxu0 0
    %2837 = vmatpush1.bf16.msra.mxu0 0
    %2838 = vmatprep.mubr.bf16.mxu0 0
    %2839 = vmatmul.mubr.bf16.gmra.mrb[0].mxu0 %v2801
    %v2840 = vpop.f32.mrb[0].mxu0
    %v2841 = vadd.f32 0.0, %v2840
    %v2842 = vpop.f32.mrb[0].mxu0
    %v2843 = vpop.f32.mrb[0].mxu0
    %v2844 = vpop.f32.mrb[0].mxu0
    %2845 = vdwg.mxu0
    %2846 = vrot.lane.b32.xlu0 %v772, 64
    %v2847 = vpop.permute.xlu0 %2846
    %v2849 = vsel %vm278, %v2343, 0
    %v2852 = vsel %vm2370, %v2847, 0
    %2854 = vmatprep.subr.bf16.mxu0 0
    %2855 = vmatpush1.bf16.msra.mxu0 %v2852
    %2856 = vmatprep.subr.bf16.mxu0 0
    %2857 = vmatpush1.bf16.msra.mxu0 0
    %2858 = vmatprep.subr.bf16.mxu0 0
    %2859 = vmatpush1.bf16.msra.mxu0 0
    %2860 = vmatprep.subr.bf16.mxu0 0
    %2861 = vmatpush1.bf16.msra.mxu0 0
    %2862 = vmatprep.subr.bf16.mxu0 0
    %2863 = vmatpush1.bf16.msra.mxu0 0
    %2864 = vmatprep.subr.bf16.mxu0 0
    %2865 = vmatpush1.bf16.msra.mxu0 0
    %2866 = vmatprep.subr.bf16.mxu0 0
    %2867 = vmatpush1.bf16.msra.mxu0 0
    %2868 = vmatprep.subr.bf16.mxu0 0
    %2869 = vmatpush1.bf16.msra.mxu0 0
    %2870 = vmatprep.subr.bf16.mxu0 0
    %2871 = vmatpush1.bf16.msra.mxu0 0
    %2872 = vmatprep.subr.bf16.mxu0 0
    %2873 = vmatpush1.bf16.msra.mxu0 0
    %2874 = vmatprep.subr.bf16.mxu0 0
    %2875 = vmatpush1.bf16.msra.mxu0 0
    %2876 = vmatprep.subr.bf16.mxu0 0
    %2877 = vmatpush1.bf16.msra.mxu0 0
    %2878 = vmatprep.subr.bf16.mxu0 0
    %2879 = vmatpush1.bf16.msra.mxu0 0
    %2880 = vmatprep.subr.bf16.mxu0 0
    %2881 = vmatpush1.bf16.msra.mxu0 0
    %2882 = vmatprep.subr.bf16.mxu0 0
    %2883 = vmatpush1.bf16.msra.mxu0 0
    %2884 = vmatprep.subr.bf16.mxu0 0
    %2885 = vmatpush1.bf16.msra.mxu0 0
    %2886 = vmatprep.mubr.bf16.mxu0 0
    %2887 = vmatmul.mubr.bf16.gmra.mrb[0].mxu0 %v2849
    %v2888 = vpop.f32.mrb[0].mxu0
    %v2889 = vadd.f32 0.0, %v2888
    %v2890 = vpop.f32.mrb[0].mxu0
    %v2891 = vpop.f32.mrb[0].mxu0
    %v2892 = vpop.f32.mrb[0].mxu0
    %2893 = vdwg.mxu0
    %2894 = vrot.lane.b32.xlu0 %v822, 64
    %v2895 = vpop.permute.xlu0 %2894
    %v2897 = vsel %vm278, %v2344, 0
    %v2900 = vsel %vm2370, %v2895, 0
    %2902 = vmatprep.subr.bf16.mxu0 0
    %2903 = vmatpush1.bf16.msra.mxu0 %v2900
    %2904 = vmatprep.subr.bf16.mxu0 0
    %2905 = vmatpush1.bf16.msra.mxu0 0
    %2906 = vmatprep.subr.bf16.mxu0 0
    %2907 = vmatpush1.bf16.msra.mxu0 0
    %2908 = vmatprep.subr.bf16.mxu0 0
    %2909 = vmatpush1.bf16.msra.mxu0 0
    %2910 = vmatprep.subr.bf16.mxu0 0
    %2911 = vmatpush1.bf16.msra.mxu0 0
    %2912 = vmatprep.subr.bf16.mxu0 0
    %2913 = vmatpush1.bf16.msra.mxu0 0
    %2914 = vmatprep.subr.bf16.mxu0 0
    %2915 = vmatpush1.bf16.msra.mxu0 0
    %2916 = vmatprep.subr.bf16.mxu0 0
    %2917 = vmatpush1.bf16.msra.mxu0 0
    %2918 = vmatprep.subr.bf16.mxu0 0
    %2919 = vmatpush1.bf16.msra.mxu0 0
    %2920 = vmatprep.subr.bf16.mxu0 0
    %2921 = vmatpush1.bf16.msra.mxu0 0
    %2922 = vmatprep.subr.bf16.mxu0 0
    %2923 = vmatpush1.bf16.msra.mxu0 0
    %2924 = vmatprep.subr.bf16.mxu0 0
    %2925 = vmatpush1.bf16.msra.mxu0 0
    %2926 = vmatprep.subr.bf16.mxu0 0
    %2927 = vmatpush1.bf16.msra.mxu0 0
    %2928 = vmatprep.subr.bf16.mxu0 0
    %2929 = vmatpush1.bf16.msra.mxu0 0
    %2930 = vmatprep.subr.bf16.mxu0 0
    %2931 = vmatpush1.bf16.msra.mxu0 0
    %2932 = vmatprep.subr.bf16.mxu0 0
    %2933 = vmatpush1.bf16.msra.mxu0 0
    %2934 = vmatprep.mubr.bf16.mxu0 0
    %2935 = vmatmul.mubr.bf16.gmra.mrb[0].mxu0 %v2897
    %v2936 = vpop.f32.mrb[0].mxu0
    %v2937 = vadd.f32 0.0, %v2936
    %v2938 = vpop.f32.mrb[0].mxu0
    %v2939 = vpop.f32.mrb[0].mxu0
    %v2940 = vpop.f32.mrb[0].mxu0
    %2941 = vdwg.mxu0
    %2942 = vrot.lane.b32.xlu0 %v223, 64
    %v2943 = vpop.permute.xlu0 %2942
    %v2945 = vsel %vm278, %v2345, 0
    %v2948 = vsel %vm2370, %v2943, 0
    %2950 = vmatprep.subr.bf16.mxu0 0
    %2951 = vmatpush1.bf16.msra.mxu0 %v2948
    %2952 = vmatprep.subr.bf16.mxu0 0
    %2953 = vmatpush1.bf16.msra.mxu0 0
    %2954 = vmatprep.subr.bf16.mxu0 0
    %2955 = vmatpush1.bf16.msra.mxu0 0
    %2956 = vmatprep.subr.bf16.mxu0 0
    %2957 = vmatpush1.bf16.msra.mxu0 0
    %2958 = vmatprep.subr.bf16.mxu0 0
    %2959 = vmatpush1.bf16.msra.mxu0 0
    %2960 = vmatprep.subr.bf16.mxu0 0
    %2961 = vmatpush1.bf16.msra.mxu0 0
    %2962 = vmatprep.subr.bf16.mxu0 0
    %2963 = vmatpush1.bf16.msra.mxu0 0
    %2964 = vmatprep.subr.bf16.mxu0 0
    %2965 = vmatpush1.bf16.msra.mxu0 0
    %2966 = vmatprep.subr.bf16.mxu0 0
    %2967 = vmatpush1.bf16.msra.mxu0 0
    %2968 = vmatprep.subr.bf16.mxu0 0
    %2969 = vmatpush1.bf16.msra.mxu0 0
    %2970 = vmatprep.subr.bf16.mxu0 0
    %2971 = vmatpush1.bf16.msra.mxu0 0
    %2972 = vmatprep.subr.bf16.mxu0 0
    %2973 = vmatpush1.bf16.msra.mxu0 0
    %2974 = vmatprep.subr.bf16.mxu0 0
    %2975 = vmatpush1.bf16.msra.mxu0 0
    %2976 = vmatprep.subr.bf16.mxu0 0
    %2977 = vmatpush1.bf16.msra.mxu0 0
    %2978 = vmatprep.subr.bf16.mxu0 0
    %2979 = vmatpush1.bf16.msra.mxu0 0
    %2980 = vmatprep.subr.bf16.mxu0 0
    %2981 = vmatpush1.bf16.msra.mxu0 0
    %2982 = vmatprep.mubr.bf16.mxu0 0
    %2983 = vmatmul.mubr.bf16.gmra.mrb[0].mxu0 %v2945
    %v2984 = vpop.f32.mrb[0].mxu0
    %v2985 = vadd.f32 0.0, %v2984
    %v2986 = vpop.f32.mrb[0].mxu0
    %v2987 = vpop.f32.mrb[0].mxu0
    %v2988 = vpop.f32.mrb[0].mxu0
    %2989 = vdwg.mxu0
    %2990 = vrot.lane.b32.xlu0 %v920, 64
    %v2991 = vpop.permute.xlu0 %2990
    %v2993 = vsel %vm278, %v2346, 0
    %v2996 = vsel %vm2370, %v2991, 0
    %2998 = vmatprep.subr.bf16.mxu0 0
    %2999 = vmatpush1.bf16.msra.mxu0 %v2996
    %3000 = vmatprep.subr.bf16.mxu0 0
    %3001 = vmatpush1.bf16.msra.mxu0 0
    %3002 = vmatprep.subr.bf16.mxu0 0
    %3003 = vmatpush1.bf16.msra.mxu0 0
    %3004 = vmatprep.subr.bf16.mxu0 0
    %3005 = vmatpush1.bf16.msra.mxu0 0
    %3006 = vmatprep.subr.bf16.mxu0 0
    %3007 = vmatpush1.bf16.msra.mxu0 0
    %3008 = vmatprep.subr.bf16.mxu0 0
    %3009 = vmatpush1.bf16.msra.mxu0 0
    %3010 = vmatprep.subr.bf16.mxu0 0
    %3011 = vmatpush1.bf16.msra.mxu0 0
    %3012 = vmatprep.subr.bf16.mxu0 0
    %3013 = vmatpush1.bf16.msra.mxu0 0
    %3014 = vmatprep.subr.bf16.mxu0 0
    %3015 = vmatpush1.bf16.msra.mxu0 0
    %3016 = vmatprep.subr.bf16.mxu0 0
    %3017 = vmatpush1.bf16.msra.mxu0 0
    %3018 = vmatprep.subr.bf16.mxu0 0
    %3019 = vmatpush1.bf16.msra.mxu0 0
    %3020 = vmatprep.subr.bf16.mxu0 0
    %3021 = vmatpush1.bf16.msra.mxu0 0
    %3022 = vmatprep.subr.bf16.mxu0 0
    %3023 = vmatpush1.bf16.msra.mxu0 0
    %3024 = vmatprep.subr.bf16.mxu0 0
    %3025 = vmatpush1.bf16.msra.mxu0 0
    %3026 = vmatprep.subr.bf16.mxu0 0
    %3027 = vmatpush1.bf16.msra.mxu0 0
    %3028 = vmatprep.subr.bf16.mxu0 0
    %3029 = vmatpush1.bf16.msra.mxu0 0
    %3030 = vmatprep.mubr.bf16.mxu0 0
    %3031 = vmatmul.mubr.bf16.gmra.mrb[0].mxu0 %v2993
    %v3032 = vpop.f32.mrb[0].mxu0
    %v3033 = vadd.f32 0.0, %v3032
    %v3034 = vpop.f32.mrb[0].mxu0
    %v3035 = vpop.f32.mrb[0].mxu0
    %v3036 = vpop.f32.mrb[0].mxu0
    %3037 = vdwg.mxu0
    %3038 = vrot.lane.b32.xlu0 %v970, 64
    %v3039 = vpop.permute.xlu0 %3038
    %v3041 = vsel %vm278, %v2347, 0
    %v3044 = vsel %vm2370, %v3039, 0
    %3046 = vmatprep.subr.bf16.mxu0 0
    %3047 = vmatpush1.bf16.msra.mxu0 %v3044
    %3048 = vmatprep.subr.bf16.mxu0 0
    %3049 = vmatpush1.bf16.msra.mxu0 0
    %3050 = vmatprep.subr.bf16.mxu0 0
    %3051 = vmatpush1.bf16.msra.mxu0 0
    %3052 = vmatprep.subr.bf16.mxu0 0
    %3053 = vmatpush1.bf16.msra.mxu0 0
    %3054 = vmatprep.subr.bf16.mxu0 0
    %3055 = vmatpush1.bf16.msra.mxu0 0
    %3056 = vmatprep.subr.bf16.mxu0 0
    %3057 = vmatpush1.bf16.msra.mxu0 0
    %3058 = vmatprep.subr.bf16.mxu0 0
    %3059 = vmatpush1.bf16.msra.mxu0 0
    %3060 = vmatprep.subr.bf16.mxu0 0
    %3061 = vmatpush1.bf16.msra.mxu0 0
    %3062 = vmatprep.subr.bf16.mxu0 0
    %3063 = vmatpush1.bf16.msra.mxu0 0
    %3064 = vmatprep.subr.bf16.mxu0 0
    %3065 = vmatpush1.bf16.msra.mxu0 0
    %3066 = vmatprep.subr.bf16.mxu0 0
    %3067 = vmatpush1.bf16.msra.mxu0 0
    %3068 = vmatprep.subr.bf16.mxu0 0
    %3069 = vmatpush1.bf16.msra.mxu0 0
    %3070 = vmatprep.subr.bf16.mxu0 0
    %3071 = vmatpush1.bf16.msra.mxu0 0
    %3072 = vmatprep.subr.bf16.mxu0 0
    %3073 = vmatpush1.bf16.msra.mxu0 0
    %3074 = vmatprep.subr.bf16.mxu0 0
    %3075 = vmatpush1.bf16.msra.mxu0 0
    %3076 = vmatprep.subr.bf16.mxu0 0
    %3077 = vmatpush1.bf16.msra.mxu0 0
    %3078 = vmatprep.mubr.bf16.mxu0 0
    %3079 = vmatmul.mubr.bf16.gmra.mrb[0].mxu0 %v3041
    %v3080 = vpop.f32.mrb[0].mxu0
    %v3081 = vadd.f32 0.0, %v3080
    %v3082 = vpop.f32.mrb[0].mxu0
    %v3083 = vpop.f32.mrb[0].mxu0
    %v3084 = vpop.f32.mrb[0].mxu0
    %3085 = vdwg.mxu0
    %3086 = vrot.lane.b32.xlu0 %v1020, 64
    %v3087 = vpop.permute.xlu0 %3086
    %v3089 = vsel %vm278, %v2348, 0
    %v3092 = vsel %vm2370, %v3087, 0
    %3094 = vmatprep.subr.bf16.mxu0 0
    %3095 = vmatpush1.bf16.msra.mxu0 %v3092
    %3096 = vmatprep.subr.bf16.mxu0 0
    %3097 = vmatpush1.bf16.msra.mxu0 0
    %3098 = vmatprep.subr.bf16.mxu0 0
    %3099 = vmatpush1.bf16.msra.mxu0 0
    %3100 = vmatprep.subr.bf16.mxu0 0
    %3101 = vmatpush1.bf16.msra.mxu0 0
    %3102 = vmatprep.subr.bf16.mxu0 0
    %3103 = vmatpush1.bf16.msra.mxu0 0
    %3104 = vmatprep.subr.bf16.mxu0 0
    %3105 = vmatpush1.bf16.msra.mxu0 0
    %3106 = vmatprep.subr.bf16.mxu0 0
    %3107 = vmatpush1.bf16.msra.mxu0 0
    %3108 = vmatprep.subr.bf16.mxu0 0
    %3109 = vmatpush1.bf16.msra.mxu0 0
    %3110 = vmatprep.subr.bf16.mxu0 0
    %3111 = vmatpush1.bf16.msra.mxu0 0
    %3112 = vmatprep.subr.bf16.mxu0 0
    %3113 = vmatpush1.bf16.msra.mxu0 0
    %3114 = vmatprep.subr.bf16.mxu0 0
    %3115 = vmatpush1.bf16.msra.mxu0 0
    %3116 = vmatprep.subr.bf16.mxu0 0
    %3117 = vmatpush1.bf16.msra.mxu0 0
    %3118 = vmatprep.subr.bf16.mxu0 0
    %3119 = vmatpush1.bf16.msra.mxu0 0
    %3120 = vmatprep.subr.bf16.mxu0 0
    %3121 = vmatpush1.bf16.msra.mxu0 0
    %3122 = vmatprep.subr.bf16.mxu0 0
    %3123 = vmatpush1.bf16.msra.mxu0 0
    %3124 = vmatprep.subr.bf16.mxu0 0
    %3125 = vmatpush1.bf16.msra.mxu0 0
    %3126 = vmatprep.mubr.bf16.mxu0 0
    %3127 = vmatmul.mubr.bf16.gmra.mrb[0].mxu0 %v3089
    %v3128 = vpop.f32.mrb[0].mxu0
    %v3129 = vadd.f32 0.0, %v3128
    %v3130 = vpop.f32.mrb[0].mxu0
    %v3131 = vpop.f32.mrb[0].mxu0
    %v3132 = vpop.f32.mrb[0].mxu0
    %3133 = vdwg.mxu0
    %3134 = vrot.lane.b32.xlu0 %v224, 64
    %v3135 = vpop.permute.xlu0 %3134
    %v3137 = vsel %vm278, %v2349, 0
    %v3140 = vsel %vm2370, %v3135, 0
    %3142 = vmatprep.subr.bf16.mxu0 0
    %3143 = vmatpush1.bf16.msra.mxu0 %v3140
    %3144 = vmatprep.subr.bf16.mxu0 0
    %3145 = vmatpush1.bf16.msra.mxu0 0
    %3146 = vmatprep.subr.bf16.mxu0 0
    %3147 = vmatpush1.bf16.msra.mxu0 0
    %3148 = vmatprep.subr.bf16.mxu0 0
    %3149 = vmatpush1.bf16.msra.mxu0 0
    %3150 = vmatprep.subr.bf16.mxu0 0
    %3151 = vmatpush1.bf16.msra.mxu0 0
    %3152 = vmatprep.subr.bf16.mxu0 0
    %3153 = vmatpush1.bf16.msra.mxu0 0
    %3154 = vmatprep.subr.bf16.mxu0 0
    %3155 = vmatpush1.bf16.msra.mxu0 0
    %3156 = vmatprep.subr.bf16.mxu0 0
    %3157 = vmatpush1.bf16.msra.mxu0 0
    %3158 = vmatprep.subr.bf16.mxu0 0
    %3159 = vmatpush1.bf16.msra.mxu0 0
    %3160 = vmatprep.subr.bf16.mxu0 0
    %3161 = vmatpush1.bf16.msra.mxu0 0
    %3162 = vmatprep.subr.bf16.mxu0 0
    %3163 = vmatpush1.bf16.msra.mxu0 0
    %3164 = vmatprep.subr.bf16.mxu0 0
    %3165 = vmatpush1.bf16.msra.mxu0 0
    %3166 = vmatprep.subr.bf16.mxu0 0
    %3167 = vmatpush1.bf16.msra.mxu0 0
    %3168 = vmatprep.subr.bf16.mxu0 0
    %3169 = vmatpush1.bf16.msra.mxu0 0
    %3170 = vmatprep.subr.bf16.mxu0 0
    %3171 = vmatpush1.bf16.msra.mxu0 0
    %3172 = vmatprep.subr.bf16.mxu0 0
    %3173 = vmatpush1.bf16.msra.mxu0 0
    %3174 = vmatprep.mubr.bf16.mxu0 0
    %3175 = vmatmul.mubr.bf16.gmra.mrb[0].mxu0 %v3137
    %v3176 = vpop.f32.mrb[0].mxu0
    %v3177 = vadd.f32 0.0, %v3176
    %v3178 = vpop.f32.mrb[0].mxu0
    %v3179 = vpop.f32.mrb[0].mxu0
    %v3180 = vpop.f32.mrb[0].mxu0
    %3181 = vdwg.mxu0
    %3182 = vrot.lane.b32.xlu0 %v1118, 64
    %v3183 = vpop.permute.xlu0 %3182
    %v3185 = vsel %vm278, %v2350, 0
    %v3188 = vsel %vm2370, %v3183, 0
    %3190 = vmatprep.subr.bf16.mxu0 0
    %3191 = vmatpush1.bf16.msra.mxu0 %v3188
    %3192 = vmatprep.subr.bf16.mxu0 0
    %3193 = vmatpush1.bf16.msra.mxu0 0
    %3194 = vmatprep.subr.bf16.mxu0 0
    %3195 = vmatpush1.bf16.msra.mxu0 0
    %3196 = vmatprep.subr.bf16.mxu0 0
    %3197 = vmatpush1.bf16.msra.mxu0 0
    %3198 = vmatprep.subr.bf16.mxu0 0
    %3199 = vmatpush1.bf16.msra.mxu0 0
    %3200 = vmatprep.subr.bf16.mxu0 0
    %3201 = vmatpush1.bf16.msra.mxu0 0
    %3202 = vmatprep.subr.bf16.mxu0 0
    %3203 = vmatpush1.bf16.msra.mxu0 0
    %3204 = vmatprep.subr.bf16.mxu0 0
    %3205 = vmatpush1.bf16.msra.mxu0 0
    %3206 = vmatprep.subr.bf16.mxu0 0
    %3207 = vmatpush1.bf16.msra.mxu0 0
    %3208 = vmatprep.subr.bf16.mxu0 0
    %3209 = vmatpush1.bf16.msra.mxu0 0
    %3210 = vmatprep.subr.bf16.mxu0 0
    %3211 = vmatpush1.bf16.msra.mxu0 0
    %3212 = vmatprep.subr.bf16.mxu0 0
    %3213 = vmatpush1.bf16.msra.mxu0 0
    %3214 = vmatprep.subr.bf16.mxu0 0
    %3215 = vmatpush1.bf16.msra.mxu0 0
    %3216 = vmatprep.subr.bf16.mxu0 0
    %3217 = vmatpush1.bf16.msra.mxu0 0
    %3218 = vmatprep.subr.bf16.mxu0 0
    %3219 = vmatpush1.bf16.msra.mxu0 0
    %3220 = vmatprep.subr.bf16.mxu0 0
    %3221 = vmatpush1.bf16.msra.mxu0 0
    %3222 = vmatprep.mubr.bf16.mxu0 0
    %3223 = vmatmul.mubr.bf16.gmra.mrb[0].mxu0 %v3185
    %v3224 = vpop.f32.mrb[0].mxu0
    %v3225 = vadd.f32 0.0, %v3224
    %v3226 = vpop.f32.mrb[0].mxu0
    %v3227 = vpop.f32.mrb[0].mxu0
    %v3228 = vpop.f32.mrb[0].mxu0
    %3229 = vdwg.mxu0
    %3230 = vrot.lane.b32.xlu0 %v1168, 64
    %v3231 = vpop.permute.xlu0 %3230
    %v3233 = vsel %vm278, %v2351, 0
    %v3236 = vsel %vm2370, %v3231, 0
    %3238 = vmatprep.subr.bf16.mxu0 0
    %3239 = vmatpush1.bf16.msra.mxu0 %v3236
    %3240 = vmatprep.subr.bf16.mxu0 0
    %3241 = vmatpush1.bf16.msra.mxu0 0
    %3242 = vmatprep.subr.bf16.mxu0 0
    %3243 = vmatpush1.bf16.msra.mxu0 0
    %3244 = vmatprep.subr.bf16.mxu0 0
    %3245 = vmatpush1.bf16.msra.mxu0 0
    %3246 = vmatprep.subr.bf16.mxu0 0
    %3247 = vmatpush1.bf16.msra.mxu0 0
    %3248 = vmatprep.subr.bf16.mxu0 0
    %3249 = vmatpush1.bf16.msra.mxu0 0
    %3250 = vmatprep.subr.bf16.mxu0 0
    %3251 = vmatpush1.bf16.msra.mxu0 0
    %3252 = vmatprep.subr.bf16.mxu0 0
    %3253 = vmatpush1.bf16.msra.mxu0 0
    %3254 = vmatprep.subr.bf16.mxu0 0
    %3255 = vmatpush1.bf16.msra.mxu0 0
    %3256 = vmatprep.subr.bf16.mxu0 0
    %3257 = vmatpush1.bf16.msra.mxu0 0
    %3258 = vmatprep.subr.bf16.mxu0 0
    %3259 = vmatpush1.bf16.msra.mxu0 0
    %3260 = vmatprep.subr.bf16.mxu0 0
    %3261 = vmatpush1.bf16.msra.mxu0 0
    %3262 = vmatprep.subr.bf16.mxu0 0
    %3263 = vmatpush1.bf16.msra.mxu0 0
    %3264 = vmatprep.subr.bf16.mxu0 0
    %3265 = vmatpush1.bf16.msra.mxu0 0
    %3266 = vmatprep.subr.bf16.mxu0 0
    %3267 = vmatpush1.bf16.msra.mxu0 0
    %3268 = vmatprep.subr.bf16.mxu0 0
    %3269 = vmatpush1.bf16.msra.mxu0 0
    %3270 = vmatprep.mubr.bf16.mxu0 0
    %3271 = vmatmul.mubr.bf16.gmra.mrb[0].mxu0 %v3233
    %v3272 = vpop.f32.mrb[0].mxu0
    %v3273 = vadd.f32 0.0, %v3272
    %v3274 = vpop.f32.mrb[0].mxu0
    %v3275 = vpop.f32.mrb[0].mxu0
    %v3276 = vpop.f32.mrb[0].mxu0
    %3277 = vdwg.mxu0
    %3278 = vrot.lane.b32.xlu0 %v1218, 64
    %v3279 = vpop.permute.xlu0 %3278
    %v3281 = vsel %vm278, %v2352, 0
    %v3284 = vsel %vm2370, %v3279, 0
    %3286 = vmatprep.subr.bf16.mxu0 0
    %3287 = vmatpush1.bf16.msra.mxu0 %v3284
    %3288 = vmatprep.subr.bf16.mxu0 0
    %3289 = vmatpush1.bf16.msra.mxu0 0
    %3290 = vmatprep.subr.bf16.mxu0 0
    %3291 = vmatpush1.bf16.msra.mxu0 0
    %3292 = vmatprep.subr.bf16.mxu0 0
    %3293 = vmatpush1.bf16.msra.mxu0 0
    %3294 = vmatprep.subr.bf16.mxu0 0
    %3295 = vmatpush1.bf16.msra.mxu0 0
    %3296 = vmatprep.subr.bf16.mxu0 0
    %3297 = vmatpush1.bf16.msra.mxu0 0
    %3298 = vmatprep.subr.bf16.mxu0 0
    %3299 = vmatpush1.bf16.msra.mxu0 0
    %3300 = vmatprep.subr.bf16.mxu0 0
    %3301 = vmatpush1.bf16.msra.mxu0 0
    %3302 = vmatprep.subr.bf16.mxu0 0
    %3303 = vmatpush1.bf16.msra.mxu0 0
    %3304 = vmatprep.subr.bf16.mxu0 0
    %3305 = vmatpush1.bf16.msra.mxu0 0
    %3306 = vmatprep.subr.bf16.mxu0 0
    %3307 = vmatpush1.bf16.msra.mxu0 0
    %3308 = vmatprep.subr.bf16.mxu0 0
    %3309 = vmatpush1.bf16.msra.mxu0 0
    %3310 = vmatprep.subr.bf16.mxu0 0
    %3311 = vmatpush1.bf16.msra.mxu0 0
    %3312 = vmatprep.subr.bf16.mxu0 0
    %3313 = vmatpush1.bf16.msra.mxu0 0
    %3314 = vmatprep.subr.bf16.mxu0 0
    %3315 = vmatpush1.bf16.msra.mxu0 0
    %3316 = vmatprep.subr.bf16.mxu0 0
    %3317 = vmatpush1.bf16.msra.mxu0 0
    %3318 = vmatprep.mubr.bf16.mxu0 0
    %3319 = vmatmul.mubr.bf16.gmra.mrb[0].mxu0 %v3281
    %v3320 = vpop.f32.mrb[0].mxu0
    %v3321 = vadd.f32 0.0, %v3320
    %v3322 = vpop.f32.mrb[0].mxu0
    %v3323 = vpop.f32.mrb[0].mxu0
    %v3324 = vpop.f32.mrb[0].mxu0
    %3325 = vdwg.mxu0
    %3326 = vrot.lane.b32.xlu0 %v225, 64
    %v3327 = vpop.permute.xlu0 %3326
    %v3329 = vsel %vm278, %v2353, 0
    %v3332 = vsel %vm2370, %v3327, 0
    %3334 = vmatprep.subr.bf16.mxu0 0
    %3335 = vmatpush1.bf16.msra.mxu0 %v3332
    %3336 = vmatprep.subr.bf16.mxu0 0
    %3337 = vmatpush1.bf16.msra.mxu0 0
    %3338 = vmatprep.subr.bf16.mxu0 0
    %3339 = vmatpush1.bf16.msra.mxu0 0
    %3340 = vmatprep.subr.bf16.mxu0 0
    %3341 = vmatpush1.bf16.msra.mxu0 0
    %3342 = vmatprep.subr.bf16.mxu0 0
    %3343 = vmatpush1.bf16.msra.mxu0 0
    %3344 = vmatprep.subr.bf16.mxu0 0
    %3345 = vmatpush1.bf16.msra.mxu0 0
    %3346 = vmatprep.subr.bf16.mxu0 0
    %3347 = vmatpush1.bf16.msra.mxu0 0
    %3348 = vmatprep.subr.bf16.mxu0 0
    %3349 = vmatpush1.bf16.msra.mxu0 0
    %3350 = vmatprep.subr.bf16.mxu0 0
    %3351 = vmatpush1.bf16.msra.mxu0 0
    %3352 = vmatprep.subr.bf16.mxu0 0
    %3353 = vmatpush1.bf16.msra.mxu0 0
    %3354 = vmatprep.subr.bf16.mxu0 0
    %3355 = vmatpush1.bf16.msra.mxu0 0
    %3356 = vmatprep.subr.bf16.mxu0 0
    %3357 = vmatpush1.bf16.msra.mxu0 0
    %3358 = vmatprep.subr.bf16.mxu0 0
    %3359 = vmatpush1.bf16.msra.mxu0 0
    %3360 = vmatprep.subr.bf16.mxu0 0
    %3361 = vmatpush1.bf16.msra.mxu0 0
    %3362 = vmatprep.subr.bf16.mxu0 0
    %3363 = vmatpush1.bf16.msra.mxu0 0
    %3364 = vmatprep.subr.bf16.mxu0 0
    %3365 = vmatpush1.bf16.msra.mxu0 0
    %3366 = vmatprep.mubr.bf16.mxu0 0
    %3367 = vmatmul.mubr.bf16.gmra.mrb[0].mxu0 %v3329
    %v3368 = vpop.f32.mrb[0].mxu0
    %v3369 = vadd.f32 0.0, %v3368
    %v3370 = vpop.f32.mrb[0].mxu0
    %v3371 = vpop.f32.mrb[0].mxu0
    %v3372 = vpop.f32.mrb[0].mxu0
    %3373 = vdwg.mxu0
    %3374 = vrot.lane.b32.xlu0 %v1316, 64
    %v3375 = vpop.permute.xlu0 %3374
    %v3377 = vsel %vm278, %v2354, 0
    %v3380 = vsel %vm2370, %v3375, 0
    %3382 = vmatprep.subr.bf16.mxu0 0
    %3383 = vmatpush1.bf16.msra.mxu0 %v3380
    %3384 = vmatprep.subr.bf16.mxu0 0
    %3385 = vmatpush1.bf16.msra.mxu0 0
    %3386 = vmatprep.subr.bf16.mxu0 0
    %3387 = vmatpush1.bf16.msra.mxu0 0
    %3388 = vmatprep.subr.bf16.mxu0 0
    %3389 = vmatpush1.bf16.msra.mxu0 0
    %3390 = vmatprep.subr.bf16.mxu0 0
    %3391 = vmatpush1.bf16.msra.mxu0 0
    %3392 = vmatprep.subr.bf16.mxu0 0
    %3393 = vmatpush1.bf16.msra.mxu0 0
    %3394 = vmatprep.subr.bf16.mxu0 0
    %3395 = vmatpush1.bf16.msra.mxu0 0
    %3396 = vmatprep.subr.bf16.mxu0 0
    %3397 = vmatpush1.bf16.msra.mxu0 0
    %3398 = vmatprep.subr.bf16.mxu0 0
    %3399 = vmatpush1.bf16.msra.mxu0 0
    %3400 = vmatprep.subr.bf16.mxu0 0
    %3401 = vmatpush1.bf16.msra.mxu0 0
    %3402 = vmatprep.subr.bf16.mxu0 0
    %3403 = vmatpush1.bf16.msra.mxu0 0
    %3404 = vmatprep.subr.bf16.mxu0 0
    %3405 = vmatpush1.bf16.msra.mxu0 0
    %3406 = vmatprep.subr.bf16.mxu0 0
    %3407 = vmatpush1.bf16.msra.mxu0 0
    %3408 = vmatprep.subr.bf16.mxu0 0
    %3409 = vmatpush1.bf16.msra.mxu0 0
    %3410 = vmatprep.subr.bf16.mxu0 0
    %3411 = vmatpush1.bf16.msra.mxu0 0
    %3412 = vmatprep.subr.bf16.mxu0 0
    %3413 = vmatpush1.bf16.msra.mxu0 0
    %3414 = vmatprep.mubr.bf16.mxu0 0
    %3415 = vmatmul.mubr.bf16.gmra.mrb[0].mxu0 %v3377
    %v3416 = vpop.f32.mrb[0].mxu0
    %v3417 = vadd.f32 0.0, %v3416
    %v3418 = vpop.f32.mrb[0].mxu0
    %v3419 = vpop.f32.mrb[0].mxu0
    %v3420 = vpop.f32.mrb[0].mxu0
    %3421 = vdwg.mxu0
    %3422 = vrot.lane.b32.xlu0 %v1366, 64
    %v3423 = vpop.permute.xlu0 %3422
    %v3425 = vsel %vm278, %v2355, 0
    %v3428 = vsel %vm2370, %v3423, 0
    %3430 = vmatprep.subr.bf16.mxu0 0
    %3431 = vmatpush1.bf16.msra.mxu0 %v3428
    %3432 = vmatprep.subr.bf16.mxu0 0
    %3433 = vmatpush1.bf16.msra.mxu0 0
    %3434 = vmatprep.subr.bf16.mxu0 0
    %3435 = vmatpush1.bf16.msra.mxu0 0
    %3436 = vmatprep.subr.bf16.mxu0 0
    %3437 = vmatpush1.bf16.msra.mxu0 0
    %3438 = vmatprep.subr.bf16.mxu0 0
    %3439 = vmatpush1.bf16.msra.mxu0 0
    %3440 = vmatprep.subr.bf16.mxu0 0
    %3441 = vmatpush1.bf16.msra.mxu0 0
    %3442 = vmatprep.subr.bf16.mxu0 0
    %3443 = vmatpush1.bf16.msra.mxu0 0
    %3444 = vmatprep.subr.bf16.mxu0 0
    %3445 = vmatpush1.bf16.msra.mxu0 0
    %3446 = vmatprep.subr.bf16.mxu0 0
    %3447 = vmatpush1.bf16.msra.mxu0 0
    %3448 = vmatprep.subr.bf16.mxu0 0
    %3449 = vmatpush1.bf16.msra.mxu0 0
    %3450 = vmatprep.subr.bf16.mxu0 0
    %3451 = vmatpush1.bf16.msra.mxu0 0
    %3452 = vmatprep.subr.bf16.mxu0 0
    %3453 = vmatpush1.bf16.msra.mxu0 0
    %3454 = vmatprep.subr.bf16.mxu0 0
    %3455 = vmatpush1.bf16.msra.mxu0 0
    %3456 = vmatprep.subr.bf16.mxu0 0
    %3457 = vmatpush1.bf16.msra.mxu0 0
    %3458 = vmatprep.subr.bf16.mxu0 0
    %3459 = vmatpush1.bf16.msra.mxu0 0
    %3460 = vmatprep.subr.bf16.mxu0 0
    %3461 = vmatpush1.bf16.msra.mxu0 0
    %3462 = vmatprep.mubr.bf16.mxu0 0
    %3463 = vmatmul.mubr.bf16.gmra.mrb[0].mxu0 %v3425
    %v3464 = vpop.f32.mrb[0].mxu0
    %v3465 = vadd.f32 0.0, %v3464
    %v3466 = vpop.f32.mrb[0].mxu0
    %v3467 = vpop.f32.mrb[0].mxu0
    %v3468 = vpop.f32.mrb[0].mxu0
    %3469 = vdwg.mxu0
    %3470 = vrot.lane.b32.xlu0 %v1416, 64
    %v3471 = vpop.permute.xlu0 %3470
    %v3473 = vsel %vm278, %v2356, 0
    %v3476 = vsel %vm2370, %v3471, 0
    %3478 = vmatprep.subr.bf16.mxu0 0
    %3479 = vmatpush1.bf16.msra.mxu0 %v3476
    %3480 = vmatprep.subr.bf16.mxu0 0
    %3481 = vmatpush1.bf16.msra.mxu0 0
    %3482 = vmatprep.subr.bf16.mxu0 0
    %3483 = vmatpush1.bf16.msra.mxu0 0
    %3484 = vmatprep.subr.bf16.mxu0 0
    %3485 = vmatpush1.bf16.msra.mxu0 0
    %3486 = vmatprep.subr.bf16.mxu0 0
    %3487 = vmatpush1.bf16.msra.mxu0 0
    %3488 = vmatprep.subr.bf16.mxu0 0
    %3489 = vmatpush1.bf16.msra.mxu0 0
    %3490 = vmatprep.subr.bf16.mxu0 0
    %3491 = vmatpush1.bf16.msra.mxu0 0
    %3492 = vmatprep.subr.bf16.mxu0 0
    %3493 = vmatpush1.bf16.msra.mxu0 0
    %3494 = vmatprep.subr.bf16.mxu0 0
    %3495 = vmatpush1.bf16.msra.mxu0 0
    %3496 = vmatprep.subr.bf16.mxu0 0
    %3497 = vmatpush1.bf16.msra.mxu0 0
    %3498 = vmatprep.subr.bf16.mxu0 0
    %3499 = vmatpush1.bf16.msra.mxu0 0
    %3500 = vmatprep.subr.bf16.mxu0 0
    %3501 = vmatpush1.bf16.msra.mxu0 0
    %3502 = vmatprep.subr.bf16.mxu0 0
    %3503 = vmatpush1.bf16.msra.mxu0 0
    %3504 = vmatprep.subr.bf16.mxu0 0
    %3505 = vmatpush1.bf16.msra.mxu0 0
    %3506 = vmatprep.subr.bf16.mxu0 0
    %3507 = vmatpush1.bf16.msra.mxu0 0
    %3508 = vmatprep.subr.bf16.mxu0 0
    %3509 = vmatpush1.bf16.msra.mxu0 0
    %3510 = vmatprep.mubr.bf16.mxu0 0
    %3511 = vmatmul.mubr.bf16.gmra.mrb[0].mxu0 %v3473
    %v3512 = vpop.f32.mrb[0].mxu0
    %v3513 = vadd.f32 0.0, %v3512
    %v3514 = vpop.f32.mrb[0].mxu0
    %v3515 = vpop.f32.mrb[0].mxu0
    %v3516 = vpop.f32.mrb[0].mxu0
    %3517 = vdwg.mxu0
    %3518 = vrot.lane.b32.xlu0 %v226, 64
    %v3519 = vpop.permute.xlu0 %3518
    %v3521 = vsel %vm278, %v2357, 0
    %v3524 = vsel %vm2370, %v3519, 0
    %3526 = vmatprep.subr.bf16.mxu0 0
    %3527 = vmatpush1.bf16.msra.mxu0 %v3524
    %3528 = vmatprep.subr.bf16.mxu0 0
    %3529 = vmatpush1.bf16.msra.mxu0 0
    %3530 = vmatprep.subr.bf16.mxu0 0
    %3531 = vmatpush1.bf16.msra.mxu0 0
    %3532 = vmatprep.subr.bf16.mxu0 0
    %3533 = vmatpush1.bf16.msra.mxu0 0
    %3534 = vmatprep.subr.bf16.mxu0 0
    %3535 = vmatpush1.bf16.msra.mxu0 0
    %3536 = vmatprep.subr.bf16.mxu0 0
    %3537 = vmatpush1.bf16.msra.mxu0 0
    %3538 = vmatprep.subr.bf16.mxu0 0
    %3539 = vmatpush1.bf16.msra.mxu0 0
    %3540 = vmatprep.subr.bf16.mxu0 0
    %3541 = vmatpush1.bf16.msra.mxu0 0
    %3542 = vmatprep.subr.bf16.mxu0 0
    %3543 = vmatpush1.bf16.msra.mxu0 0
    %3544 = vmatprep.subr.bf16.mxu0 0
    %3545 = vmatpush1.bf16.msra.mxu0 0
    %3546 = vmatprep.subr.bf16.mxu0 0
    %3547 = vmatpush1.bf16.msra.mxu0 0
    %3548 = vmatprep.subr.bf16.mxu0 0
    %3549 = vmatpush1.bf16.msra.mxu0 0
    %3550 = vmatprep.subr.bf16.mxu0 0
    %3551 = vmatpush1.bf16.msra.mxu0 0
    %3552 = vmatprep.subr.bf16.mxu0 0
    %3553 = vmatpush1.bf16.msra.mxu0 0
    %3554 = vmatprep.subr.bf16.mxu0 0
    %3555 = vmatpush1.bf16.msra.mxu0 0
    %3556 = vmatprep.subr.bf16.mxu0 0
    %3557 = vmatpush1.bf16.msra.mxu0 0
    %3558 = vmatprep.mubr.bf16.mxu0 0
    %3559 = vmatmul.mubr.bf16.gmra.mrb[0].mxu0 %v3521
    %v3560 = vpop.f32.mrb[0].mxu0
    %v3561 = vadd.f32 0.0, %v3560
    %v3562 = vpop.f32.mrb[0].mxu0
    %v3563 = vpop.f32.mrb[0].mxu0
    %v3564 = vpop.f32.mrb[0].mxu0
    %3565 = vdwg.mxu0
    %3566 = vrot.lane.b32.xlu0 %v1514, 64
    %v3567 = vpop.permute.xlu0 %3566
    %v3569 = vsel %vm278, %v2358, 0
    %v3572 = vsel %vm2370, %v3567, 0
    %3574 = vmatprep.subr.bf16.mxu0 0
    %3575 = vmatpush1.bf16.msra.mxu0 %v3572
    %3576 = vmatprep.subr.bf16.mxu0 0
    %3577 = vmatpush1.bf16.msra.mxu0 0
    %3578 = vmatprep.subr.bf16.mxu0 0
    %3579 = vmatpush1.bf16.msra.mxu0 0
    %3580 = vmatprep.subr.bf16.mxu0 0
    %3581 = vmatpush1.bf16.msra.mxu0 0
    %3582 = vmatprep.subr.bf16.mxu0 0
    %3583 = vmatpush1.bf16.msra.mxu0 0
    %3584 = vmatprep.subr.bf16.mxu0 0
    %3585 = vmatpush1.bf16.msra.mxu0 0
    %3586 = vmatprep.subr.bf16.mxu0 0
    %3587 = vmatpush1.bf16.msra.mxu0 0
    %3588 = vmatprep.subr.bf16.mxu0 0
    %3589 = vmatpush1.bf16.msra.mxu0 0
    %3590 = vmatprep.subr.bf16.mxu0 0
    %3591 = vmatpush1.bf16.msra.mxu0 0
    %3592 = vmatprep.subr.bf16.mxu0 0
    %3593 = vmatpush1.bf16.msra.mxu0 0
    %3594 = vmatprep.subr.bf16.mxu0 0
    %3595 = vmatpush1.bf16.msra.mxu0 0
    %3596 = vmatprep.subr.bf16.mxu0 0
    %3597 = vmatpush1.bf16.msra.mxu0 0
    %3598 = vmatprep.subr.bf16.mxu0 0
    %3599 = vmatpush1.bf16.msra.mxu0 0
    %3600 = vmatprep.subr.bf16.mxu0 0
    %3601 = vmatpush1.bf16.msra.mxu0 0
    %3602 = vmatprep.subr.bf16.mxu0 0
    %3603 = vmatpush1.bf16.msra.mxu0 0
    %3604 = vmatprep.subr.bf16.mxu0 0
    %3605 = vmatpush1.bf16.msra.mxu0 0
    %3606 = vmatprep.mubr.bf16.mxu0 0
    %3607 = vmatmul.mubr.bf16.gmra.mrb[0].mxu0 %v3569
    %v3608 = vpop.f32.mrb[0].mxu0
    %v3609 = vadd.f32 0.0, %v3608
    %v3610 = vpop.f32.mrb[0].mxu0
    %v3611 = vpop.f32.mrb[0].mxu0
    %v3612 = vpop.f32.mrb[0].mxu0
    %3613 = vdwg.mxu0
    %3614 = vrot.lane.b32.xlu0 %v1564, 64
    %v3615 = vpop.permute.xlu0 %3614
    %v3617 = vsel %vm278, %v2359, 0
    %v3620 = vsel %vm2370, %v3615, 0
    %3622 = vmatprep.subr.bf16.mxu0 0
    %3623 = vmatpush1.bf16.msra.mxu0 %v3620
    %3624 = vmatprep.subr.bf16.mxu0 0
    %3625 = vmatpush1.bf16.msra.mxu0 0
    %3626 = vmatprep.subr.bf16.mxu0 0
    %3627 = vmatpush1.bf16.msra.mxu0 0
    %3628 = vmatprep.subr.bf16.mxu0 0
    %3629 = vmatpush1.bf16.msra.mxu0 0
    %3630 = vmatprep.subr.bf16.mxu0 0
    %3631 = vmatpush1.bf16.msra.mxu0 0
    %3632 = vmatprep.subr.bf16.mxu0 0
    %3633 = vmatpush1.bf16.msra.mxu0 0
    %3634 = vmatprep.subr.bf16.mxu0 0
    %3635 = vmatpush1.bf16.msra.mxu0 0
    %3636 = vmatprep.subr.bf16.mxu0 0
    %3637 = vmatpush1.bf16.msra.mxu0 0
    %3638 = vmatprep.subr.bf16.mxu0 0
    %3639 = vmatpush1.bf16.msra.mxu0 0
    %3640 = vmatprep.subr.bf16.mxu0 0
    %3641 = vmatpush1.bf16.msra.mxu0 0
    %3642 = vmatprep.subr.bf16.mxu0 0
    %3643 = vmatpush1.bf16.msra.mxu0 0
    %3644 = vmatprep.subr.bf16.mxu0 0
    %3645 = vmatpush1.bf16.msra.mxu0 0
    %3646 = vmatprep.subr.bf16.mxu0 0
    %3647 = vmatpush1.bf16.msra.mxu0 0
    %3648 = vmatprep.subr.bf16.mxu0 0
    %3649 = vmatpush1.bf16.msra.mxu0 0
    %3650 = vmatprep.subr.bf16.mxu0 0
    %3651 = vmatpush1.bf16.msra.mxu0 0
    %3652 = vmatprep.subr.bf16.mxu0 0
    %3653 = vmatpush1.bf16.msra.mxu0 0
    %3654 = vmatprep.mubr.bf16.mxu0 0
    %3655 = vmatmul.mubr.bf16.gmra.mrb[0].mxu0 %v3617
    %v3656 = vpop.f32.mrb[0].mxu0
    %v3657 = vadd.f32 0.0, %v3656
    %v3658 = vpop.f32.mrb[0].mxu0
    %v3659 = vpop.f32.mrb[0].mxu0
    %v3660 = vpop.f32.mrb[0].mxu0
    %3661 = vdwg.mxu0
    %3662 = vrot.lane.b32.xlu0 %v1614, 64
    %v3663 = vpop.permute.xlu0 %3662
    %v3665 = vsel %vm278, %v2360, 0
    %v3668 = vsel %vm2370, %v3663, 0
    %3670 = vmatprep.subr.bf16.mxu0 0
    %3671 = vmatpush1.bf16.msra.mxu0 %v3668
    %3672 = vmatprep.subr.bf16.mxu0 0
    %3673 = vmatpush1.bf16.msra.mxu0 0
    %3674 = vmatprep.subr.bf16.mxu0 0
    %3675 = vmatpush1.bf16.msra.mxu0 0
    %3676 = vmatprep.subr.bf16.mxu0 0
    %3677 = vmatpush1.bf16.msra.mxu0 0
    %3678 = vmatprep.subr.bf16.mxu0 0
    %3679 = vmatpush1.bf16.msra.mxu0 0
    %3680 = vmatprep.subr.bf16.mxu0 0
    %3681 = vmatpush1.bf16.msra.mxu0 0
    %3682 = vmatprep.subr.bf16.mxu0 0
    %3683 = vmatpush1.bf16.msra.mxu0 0
    %3684 = vmatprep.subr.bf16.mxu0 0
    %3685 = vmatpush1.bf16.msra.mxu0 0
    %3686 = vmatprep.subr.bf16.mxu0 0
    %3687 = vmatpush1.bf16.msra.mxu0 0
    %3688 = vmatprep.subr.bf16.mxu0 0
    %3689 = vmatpush1.bf16.msra.mxu0 0
    %3690 = vmatprep.subr.bf16.mxu0 0
    %3691 = vmatpush1.bf16.msra.mxu0 0
    %3692 = vmatprep.subr.bf16.mxu0 0
    %3693 = vmatpush1.bf16.msra.mxu0 0
    %3694 = vmatprep.subr.bf16.mxu0 0
    %3695 = vmatpush1.bf16.msra.mxu0 0
    %3696 = vmatprep.subr.bf16.mxu0 0
    %3697 = vmatpush1.bf16.msra.mxu0 0
    %3698 = vmatprep.subr.bf16.mxu0 0
    %3699 = vmatpush1.bf16.msra.mxu0 0
    %3700 = vmatprep.subr.bf16.mxu0 0
    %3701 = vmatpush1.bf16.msra.mxu0 0
    %3702 = vmatprep.mubr.bf16.mxu0 0
    %3703 = vmatmul.mubr.bf16.gmra.mrb[0].mxu0 %v3665
    %v3704 = vpop.f32.mrb[0].mxu0
    %v3705 = vadd.f32 0.0, %v3704
    %v3706 = vpop.f32.mrb[0].mxu0
    %v3707 = vpop.f32.mrb[0].mxu0
    %v3708 = vpop.f32.mrb[0].mxu0
    %3709 = vdwg.mxu0
    %3710 = vrot.lane.b32.xlu0 %v227, 64
    %v3711 = vpop.permute.xlu0 %3710
    %v3713 = vsel %vm278, %v2361, 0
    %v3716 = vsel %vm2370, %v3711, 0
    %3718 = vmatprep.subr.bf16.mxu0 0
    %3719 = vmatpush1.bf16.msra.mxu0 %v3716
    %3720 = vmatprep.subr.bf16.mxu0 0
    %3721 = vmatpush1.bf16.msra.mxu0 0
    %3722 = vmatprep.subr.bf16.mxu0 0
    %3723 = vmatpush1.bf16.msra.mxu0 0
    %3724 = vmatprep.subr.bf16.mxu0 0
    %3725 = vmatpush1.bf16.msra.mxu0 0
    %3726 = vmatprep.subr.bf16.mxu0 0
    %3727 = vmatpush1.bf16.msra.mxu0 0
    %3728 = vmatprep.subr.bf16.mxu0 0
    %3729 = vmatpush1.bf16.msra.mxu0 0
    %3730 = vmatprep.subr.bf16.mxu0 0
    %3731 = vmatpush1.bf16.msra.mxu0 0
    %3732 = vmatprep.subr.bf16.mxu0 0
    %3733 = vmatpush1.bf16.msra.mxu0 0
    %3734 = vmatprep.subr.bf16.mxu0 0
    %3735 = vmatpush1.bf16.msra.mxu0 0
    %3736 = vmatprep.subr.bf16.mxu0 0
    %3737 = vmatpush1.bf16.msra.mxu0 0
    %3738 = vmatprep.subr.bf16.mxu0 0
    %3739 = vmatpush1.bf16.msra.mxu0 0
    %3740 = vmatprep.subr.bf16.mxu0 0
    %3741 = vmatpush1.bf16.msra.mxu0 0
    %3742 = vmatprep.subr.bf16.mxu0 0
    %3743 = vmatpush1.bf16.msra.mxu0 0
    %3744 = vmatprep.subr.bf16.mxu0 0
    %3745 = vmatpush1.bf16.msra.mxu0 0
    %3746 = vmatprep.subr.bf16.mxu0 0
    %3747 = vmatpush1.bf16.msra.mxu0 0
    %3748 = vmatprep.subr.bf16.mxu0 0
    %3749 = vmatpush1.bf16.msra.mxu0 0
    %3750 = vmatprep.mubr.bf16.mxu0 0
    %3751 = vmatmul.mubr.bf16.gmra.mrb[0].mxu0 %v3713
    %v3752 = vpop.f32.mrb[0].mxu0
    %v3753 = vadd.f32 0.0, %v3752
    %v3754 = vpop.f32.mrb[0].mxu0
    %v3755 = vpop.f32.mrb[0].mxu0
    %v3756 = vpop.f32.mrb[0].mxu0
    %3757 = vdwg.mxu0
    %3758 = vrot.lane.b32.xlu0 %v1712, 64
    %v3759 = vpop.permute.xlu0 %3758
    %v3761 = vsel %vm278, %v2362, 0
    %v3764 = vsel %vm2370, %v3759, 0
    %3766 = vmatprep.subr.bf16.mxu0 0
    %3767 = vmatpush1.bf16.msra.mxu0 %v3764
    %3768 = vmatprep.subr.bf16.mxu0 0
    %3769 = vmatpush1.bf16.msra.mxu0 0
    %3770 = vmatprep.subr.bf16.mxu0 0
    %3771 = vmatpush1.bf16.msra.mxu0 0
    %3772 = vmatprep.subr.bf16.mxu0 0
    %3773 = vmatpush1.bf16.msra.mxu0 0
    %3774 = vmatprep.subr.bf16.mxu0 0
    %3775 = vmatpush1.bf16.msra.mxu0 0
    %3776 = vmatprep.subr.bf16.mxu0 0
    %3777 = vmatpush1.bf16.msra.mxu0 0
    %3778 = vmatprep.subr.bf16.mxu0 0
    %3779 = vmatpush1.bf16.msra.mxu0 0
    %3780 = vmatprep.subr.bf16.mxu0 0
    %3781 = vmatpush1.bf16.msra.mxu0 0
    %3782 = vmatprep.subr.bf16.mxu0 0
    %3783 = vmatpush1.bf16.msra.mxu0 0
    %3784 = vmatprep.subr.bf16.mxu0 0
    %3785 = vmatpush1.bf16.msra.mxu0 0
    %3786 = vmatprep.subr.bf16.mxu0 0
    %3787 = vmatpush1.bf16.msra.mxu0 0
    %3788 = vmatprep.subr.bf16.mxu0 0
    %3789 = vmatpush1.bf16.msra.mxu0 0
    %3790 = vmatprep.subr.bf16.mxu0 0
    %3791 = vmatpush1.bf16.msra.mxu0 0
    %3792 = vmatprep.subr.bf16.mxu0 0
    %3793 = vmatpush1.bf16.msra.mxu0 0
    %3794 = vmatprep.subr.bf16.mxu0 0
    %3795 = vmatpush1.bf16.msra.mxu0 0
    %3796 = vmatprep.subr.bf16.mxu0 0
    %3797 = vmatpush1.bf16.msra.mxu0 0
    %3798 = vmatprep.mubr.bf16.mxu0 0
    %3799 = vmatmul.mubr.bf16.gmra.mrb[0].mxu0 %v3761
    %v3800 = vpop.f32.mrb[0].mxu0
    %v3801 = vadd.f32 0.0, %v3800
    %v3802 = vpop.f32.mrb[0].mxu0
    %v3803 = vpop.f32.mrb[0].mxu0
    %v3804 = vpop.f32.mrb[0].mxu0
    %3805 = vdwg.mxu0
    %3806 = vrot.lane.b32.xlu0 %v1762, 64
    %v3807 = vpop.permute.xlu0 %3806
    %v3809 = vsel %vm278, %v2363, 0
    %v3812 = vsel %vm2370, %v3807, 0
    %3814 = vmatprep.subr.bf16.mxu0 0
    %3815 = vmatpush1.bf16.msra.mxu0 %v3812
    %3816 = vmatprep.subr.bf16.mxu0 0
    %3817 = vmatpush1.bf16.msra.mxu0 0
    %3818 = vmatprep.subr.bf16.mxu0 0
    %3819 = vmatpush1.bf16.msra.mxu0 0
    %3820 = vmatprep.subr.bf16.mxu0 0
    %3821 = vmatpush1.bf16.msra.mxu0 0
    %3822 = vmatprep.subr.bf16.mxu0 0
    %3823 = vmatpush1.bf16.msra.mxu0 0
    %3824 = vmatprep.subr.bf16.mxu0 0
    %3825 = vmatpush1.bf16.msra.mxu0 0
    %3826 = vmatprep.subr.bf16.mxu0 0
    %3827 = vmatpush1.bf16.msra.mxu0 0
    %3828 = vmatprep.subr.bf16.mxu0 0
    %3829 = vmatpush1.bf16.msra.mxu0 0
    %3830 = vmatprep.subr.bf16.mxu0 0
    %3831 = vmatpush1.bf16.msra.mxu0 0
    %3832 = vmatprep.subr.bf16.mxu0 0
    %3833 = vmatpush1.bf16.msra.mxu0 0
    %3834 = vmatprep.subr.bf16.mxu0 0
    %3835 = vmatpush1.bf16.msra.mxu0 0
    %3836 = vmatprep.subr.bf16.mxu0 0
    %3837 = vmatpush1.bf16.msra.mxu0 0
    %3838 = vmatprep.subr.bf16.mxu0 0
    %3839 = vmatpush1.bf16.msra.mxu0 0
    %3840 = vmatprep.subr.bf16.mxu0 0
    %3841 = vmatpush1.bf16.msra.mxu0 0
    %3842 = vmatprep.subr.bf16.mxu0 0
    %3843 = vmatpush1.bf16.msra.mxu0 0
    %3844 = vmatprep.subr.bf16.mxu0 0
    %3845 = vmatpush1.bf16.msra.mxu0 0
    %3846 = vmatprep.mubr.bf16.mxu0 0
    %3847 = vmatmul.mubr.bf16.gmra.mrb[0].mxu0 %v3809
    %v3848 = vpop.f32.mrb[0].mxu0
    %v3849 = vadd.f32 0.0, %v3848
    %v3850 = vpop.f32.mrb[0].mxu0
    %v3851 = vpop.f32.mrb[0].mxu0
    %v3852 = vpop.f32.mrb[0].mxu0
    %3853 = vdwg.mxu0
    %3854 = vrot.lane.b32.xlu0 %v1812, 64
    %v3855 = vpop.permute.xlu0 %3854
    %v3857 = vsel %vm278, %v2364, 0
    %v3860 = vsel %vm2370, %v3855, 0
    %3862 = vmatprep.subr.bf16.mxu0 0
    %3863 = vmatpush1.bf16.msra.mxu0 %v3860
    %3864 = vmatprep.subr.bf16.mxu0 0
    %3865 = vmatpush1.bf16.msra.mxu0 0
    %3866 = vmatprep.subr.bf16.mxu0 0
    %3867 = vmatpush1.bf16.msra.mxu0 0
    %3868 = vmatprep.subr.bf16.mxu0 0
    %3869 = vmatpush1.bf16.msra.mxu0 0
    %3870 = vmatprep.subr.bf16.mxu0 0
    %3871 = vmatpush1.bf16.msra.mxu0 0
    %3872 = vmatprep.subr.bf16.mxu0 0
    %3873 = vmatpush1.bf16.msra.mxu0 0
    %3874 = vmatprep.subr.bf16.mxu0 0
    %3875 = vmatpush1.bf16.msra.mxu0 0
    %3876 = vmatprep.subr.bf16.mxu0 0
    %3877 = vmatpush1.bf16.msra.mxu0 0
    %3878 = vmatprep.subr.bf16.mxu0 0
    %3879 = vmatpush1.bf16.msra.mxu0 0
    %3880 = vmatprep.subr.bf16.mxu0 0
    %3881 = vmatpush1.bf16.msra.mxu0 0
    %3882 = vmatprep.subr.bf16.mxu0 0
    %3883 = vmatpush1.bf16.msra.mxu0 0
    %3884 = vmatprep.subr.bf16.mxu0 0
    %3885 = vmatpush1.bf16.msra.mxu0 0
    %3886 = vmatprep.subr.bf16.mxu0 0
    %3887 = vmatpush1.bf16.msra.mxu0 0
    %3888 = vmatprep.subr.bf16.mxu0 0
    %3889 = vmatpush1.bf16.msra.mxu0 0
    %3890 = vmatprep.subr.bf16.mxu0 0
    %3891 = vmatpush1.bf16.msra.mxu0 0
    %3892 = vmatprep.subr.bf16.mxu0 0
    %3893 = vmatpush1.bf16.msra.mxu0 0
    %3894 = vmatprep.mubr.bf16.mxu0 0
    %3895 = vmatmul.mubr.bf16.gmra.mrb[0].mxu0 %v3857
    %v3896 = vpop.f32.mrb[0].mxu0
    %v3897 = vadd.f32 0.0, %v3896
    %v3898 = vpop.f32.mrb[0].mxu0
    %v3899 = vpop.f32.mrb[0].mxu0
    %v3900 = vpop.f32.mrb[0].mxu0
    %3901 = vdwg.mxu0
    %3910 = vrot.lane.b32.xlu0 %v2457, 8
    %v3911 = vpop.permute.xlu0 %3910
    %3912 = vrot.lane.b32.xlu0 %v2649, 8
    %v3913 = vpop.permute.xlu0 %3912
    %3914 = vrot.lane.b32.xlu0 %v2841, 8
    %v3915 = vpop.permute.xlu0 %3914
    %3916 = vrot.lane.b32.xlu0 %v3033, 8
    %v3917 = vpop.permute.xlu0 %3916
    %3918 = vrot.lane.b32.xlu0 %v3225, 8
    %v3919 = vpop.permute.xlu0 %3918
    %3920 = vrot.lane.b32.xlu0 %v3417, 8
    %v3921 = vpop.permute.xlu0 %3920
    %3922 = vrot.lane.b32.xlu0 %v3609, 8
    %v3923 = vpop.permute.xlu0 %3922
    %3924 = vrot.lane.b32.xlu0 %v3801, 8
    %v3925 = vpop.permute.xlu0 %3924
    %3942 = vrot.lane.b32.xlu0 %v2505, 16
    %v3943 = vpop.permute.xlu0 %3942
    %3944 = vrot.lane.b32.xlu0 %v2697, 16
    %v3945 = vpop.permute.xlu0 %3944
    %3946 = vrot.lane.b32.xlu0 %v2889, 16
    %v3947 = vpop.permute.xlu0 %3946
    %3948 = vrot.lane.b32.xlu0 %v3081, 16
    %v3949 = vpop.permute.xlu0 %3948
    %3950 = vrot.lane.b32.xlu0 %v3273, 16
    %v3951 = vpop.permute.xlu0 %3950
    %3952 = vrot.lane.b32.xlu0 %v3465, 16
    %v3953 = vpop.permute.xlu0 %3952
    %3954 = vrot.lane.b32.xlu0 %v3657, 16
    %v3955 = vpop.permute.xlu0 %3954
    %3956 = vrot.lane.b32.xlu0 %v3849, 16
    %v3957 = vpop.permute.xlu0 %3956
    %3974 = vrot.lane.b32.xlu0 %v2553, 24
    %v3975 = vpop.permute.xlu0 %3974
    %3976 = vrot.lane.b32.xlu0 %v2745, 24
    %v3977 = vpop.permute.xlu0 %3976
    %3978 = vrot.lane.b32.xlu0 %v2937, 24
    %v3979 = vpop.permute.xlu0 %3978
    %3980 = vrot.lane.b32.xlu0 %v3129, 24
    %v3981 = vpop.permute.xlu0 %3980
    %3982 = vrot.lane.b32.xlu0 %v3321, 24
    %v3983 = vpop.permute.xlu0 %3982
    %3984 = vrot.lane.b32.xlu0 %v3513, 24
    %v3985 = vpop.permute.xlu0 %3984
    %3986 = vrot.lane.b32.xlu0 %v3705, 24
    %v3987 = vpop.permute.xlu0 %3986
    %3988 = vrot.lane.b32.xlu0 %v3897, 24
    %v3989 = vpop.permute.xlu0 %3988
    %v3998 = vsel %vm278, %v2409, %v3911
    %v3999 = vsel %vm278, %v2601, %v3913
    %v4000 = vsel %vm278, %v2793, %v3915
    %v4001 = vsel %vm278, %v2985, %v3917
    %v4002 = vsel %vm278, %v3177, %v3919
    %v4003 = vsel %vm278, %v3369, %v3921
    %v4004 = vsel %vm278, %v3561, %v3923
    %v4005 = vsel %vm278, %v3753, %v3925
    %vm4006 = vcmask 130048
    %v4007 = vsel %vm4006, %v3998, %v3943
    %v4008 = vsel %vm4006, %v3999, %v3945
    %v4009 = vsel %vm4006, %v4000, %v3947
    %v4010 = vsel %vm4006, %v4001, %v3949
    %v4011 = vsel %vm4006, %v4002, %v3951
    %v4012 = vsel %vm4006, %v4003, %v3953
    %v4013 = vsel %vm4006, %v4004, %v3955
    %v4014 = vsel %vm4006, %v4005, %v3957
    %vm4015 = vcmask 195584
    %v4016 = vsel %vm4015, %v4007, %v3975
    %v4017 = vsel %vm4015, %v4008, %v3977
    %v4018 = vsel %vm4015, %v4009, %v3979
    %v4019 = vsel %vm4015, %v4010, %v3981
    %v4020 = vsel %vm4015, %v4011, %v3983
    %v4021 = vsel %vm4015, %v4012, %v3985
    %v4022 = vsel %vm4015, %v4013, %v3987
    %v4023 = vsel %vm4015, %v4014, %v3989
    %v4024 = vpack.c.bf16 %v4017, %v4016
    %v4025 = vpack.c.bf16 %v4019, %v4018
    %v4026 = vpack.c.bf16 %v4021, %v4020
    %v4027 = vpack.c.bf16 %v4023, %v4022
    %v4028 = vld [vmem:[#allocation8] sm:$0xf]
    %v4029 = vld [vmem:[#allocation8 + $0x4] sm:$0xf]
    %v4030 = vld [vmem:[#allocation8 + $0x8] sm:$0xf]
    %v4031 = vld [vmem:[#allocation8 + $0xc] sm:$0xf]
    %v4032 = vld [vmem:[%s5] sm:$0x1]
    %v4034 = vlaneseq
    %v4035 = vshrl.u32 %v4034, 7
    %v4036 = vsub.s32 0, %v4035
    %v4037 = vrot.slane %v4032, %v4036
    %v4043 = vunpack.c.l.b16 %v4028
    %v4044 = vunpack.c.l.b16 %v4029
    %v4045 = vunpack.c.l.b16 %v4030
    %v4046 = vunpack.c.l.b16 %v4031
    %v4047 = vpack.c.b16 %v4044, %v4043
    %v4048 = vpack.c.b16 %v4046, %v4045
    %v4052 = vsel %vm126, %v4024, 0
    %v4055 = vsel %vm126, %v4025, 0
    %v4058 = vsel %vm126, %v4026, 0
    %v4061 = vsel %vm126, %v4027, 0
    %4063 = vmatprep.subr.bf16.mxu0 0
    %4064 = vmatpush1.bf16.msra.mxu0 %v4047
    %4065 = vmatprep.subr.bf16.mxu0 0
    %4066 = vmatpush1.bf16.msra.mxu0 %v4048
    %4067 = vmatprep.subr.bf16.mxu0 0
    %4068 = vmatpush1.bf16.msra.mxu0 0
    %4069 = vmatprep.subr.bf16.mxu0 0
    %4070 = vmatpush1.bf16.msra.mxu0 0
    %4071 = vmatprep.subr.bf16.mxu0 0
    %4072 = vmatpush1.bf16.msra.mxu0 0
    %4073 = vmatprep.subr.bf16.mxu0 0
    %4074 = vmatpush1.bf16.msra.mxu0 0
    %4075 = vmatprep.subr.bf16.mxu0 0
    %4076 = vmatpush1.bf16.msra.mxu0 0
    %4077 = vmatprep.subr.bf16.mxu0 0
    %4078 = vmatpush1.bf16.msra.mxu0 0
    %4079 = vmatprep.subr.bf16.mxu0 0
    %4080 = vmatpush1.bf16.msra.mxu0 0
    %4081 = vmatprep.subr.bf16.mxu0 0
    %4082 = vmatpush1.bf16.msra.mxu0 0
    %4083 = vmatprep.subr.bf16.mxu0 0
    %4084 = vmatpush1.bf16.msra.mxu0 0
    %4085 = vmatprep.subr.bf16.mxu0 0
    %4086 = vmatpush1.bf16.msra.mxu0 0
    %4087 = vmatprep.subr.bf16.mxu0 0
    %4088 = vmatpush1.bf16.msra.mxu0 0
    %4089 = vmatprep.subr.bf16.mxu0 0
    %4090 = vmatpush1.bf16.msra.mxu0 0
    %4091 = vmatprep.subr.bf16.mxu0 0
    %4092 = vmatpush1.bf16.msra.mxu0 0
    %4093 = vmatprep.subr.bf16.mxu0 0
    %4094 = vmatpush1.bf16.msra.mxu0 0
    %4095 = vmatprep.mubr.bf16.mxu0 0
    %4096 = vmatmul.mubr.bf16.gmra.mrb[0].mxu0 %v4052
    %v4097 = vpop.f32.mrb[0].mxu0
    %v4098 = vadd.f32 %v4037, %v4097
    %v4099 = vpop.f32.mrb[0].mxu0
    %v4100 = vpop.f32.mrb[0].mxu0
    %v4101 = vadd.f32 %v4037, %v4100
    %v4102 = vpop.f32.mrb[0].mxu0
    %4103 = vmatprep.mubr.bf16.mxu0 0
    %4104 = vmatmul.mubr.bf16.gmra.mrb[0].mxu0 %v4055
    %v4105 = vpop.f32.mrb[0].mxu0
    %v4106 = vadd.f32 %v4037, %v4105
    %v4107 = vpop.f32.mrb[0].mxu0
    %v4108 = vpop.f32.mrb[0].mxu0
    %v4109 = vadd.f32 %v4037, %v4108
    %v4110 = vpop.f32.mrb[0].mxu0
    %4111 = vmatprep.mubr.bf16.mxu0 0
    %4112 = vmatmul.mubr.bf16.gmra.mrb[0].mxu0 %v4058
    %v4113 = vpop.f32.mrb[0].mxu0
    %v4114 = vadd.f32 %v4037, %v4113
    %v4115 = vpop.f32.mrb[0].mxu0
    %v4116 = vpop.f32.mrb[0].mxu0
    %v4117 = vadd.f32 %v4037, %v4116
    %v4118 = vpop.f32.mrb[0].mxu0
    %4119 = vmatprep.mubr.bf16.mxu0 0
    %4120 = vmatmul.mubr.bf16.gmra.mrb[0].mxu0 %v4061
    %v4121 = vpop.f32.mrb[0].mxu0
    %v4122 = vadd.f32 %v4037, %v4121
    %v4123 = vpop.f32.mrb[0].mxu0
    %v4124 = vpop.f32.mrb[0].mxu0
    %v4125 = vadd.f32 %v4037, %v4124
    %v4126 = vpop.f32.mrb[0].mxu0
    %4127 = vdwg.mxu0
    %v4128 = vadd.f32 %v4098, %v174
    %v4129 = vadd.f32 %v4101, %v177
    %v4130 = vadd.f32 %v4106, %v182
    %v4131 = vadd.f32 %v4109, %v185
    %v4132 = vadd.f32 %v4114, %v190
    %v4133 = vadd.f32 %v4117, %v193
    %v4134 = vadd.f32 %v4122, %v198
    %v4135 = vadd.f32 %v4125, %v201
    %v4136 = vsel %vm126, %v4128, 0.0
    %4137 = vadd.xlane.f32.xlu0 %v4136
    %v4138 = vpop.xlane.xlu0 %4137
    %v4139 = vsel %vm126, %v4129, 0.0
    %4140 = vadd.xlane.f32.xlu0 %v4139
    %v4141 = vpop.xlane.xlu0 %4140
    %v4142 = vsel %vm126, %v4130, 0.0
    %4143 = vadd.xlane.f32.xlu0 %v4142
    %v4144 = vpop.xlane.xlu0 %4143
    %v4145 = vsel %vm126, %v4131, 0.0
    %4146 = vadd.xlane.f32.xlu0 %v4145
    %v4147 = vpop.xlane.xlu0 %4146
    %v4148 = vsel %vm126, %v4132, 0.0
    %4149 = vadd.xlane.f32.xlu0 %v4148
    %v4150 = vpop.xlane.xlu0 %4149
    %v4151 = vsel %vm126, %v4133, 0.0
    %4152 = vadd.xlane.f32.xlu0 %v4151
    %v4153 = vpop.xlane.xlu0 %4152
    %v4154 = vsel %vm126, %v4134, 0.0
    %4155 = vadd.xlane.f32.xlu0 %v4154
    %v4156 = vpop.xlane.xlu0 %4155
    %v4157 = vsel %vm126, %v4135, 0.0
    %4158 = vadd.xlane.f32.xlu0 %v4157
    %v4159 = vpop.xlane.xlu0 %4158
    %v4160 = vrcp.pop 32.0
    %v4161 = vmul.f32 %v4138, %v4160
    %v4162 = vmul.f32 %v4141, %v4160
    %v4163 = vmul.f32 %v4144, %v4160
    %v4164 = vmul.f32 %v4147, %v4160
    %v4165 = vmul.f32 %v4150, %v4160
    %v4166 = vmul.f32 %v4153, %v4160
    %v4167 = vmul.f32 %v4156, %v4160
    %v4168 = vmul.f32 %v4159, %v4160
    %v4169 = vsub.f32 %v4128, %v4161
    %v4170 = vsub.f32 %v4129, %v4162
    %v4171 = vsub.f32 %v4130, %v4163
    %v4172 = vsub.f32 %v4131, %v4164
    %v4173 = vsub.f32 %v4132, %v4165
    %v4174 = vsub.f32 %v4133, %v4166
    %v4175 = vsub.f32 %v4134, %v4167
    %v4176 = vsub.f32 %v4135, %v4168
    %v4177 = vmul.f32 %v4169, %v4169
    %v4178 = vmul.f32 %v4170, %v4170
    %v4179 = vmul.f32 %v4171, %v4171
    %v4180 = vmul.f32 %v4172, %v4172
    %v4181 = vmul.f32 %v4173, %v4173
    %v4182 = vmul.f32 %v4174, %v4174
    %v4183 = vmul.f32 %v4175, %v4175
    %v4184 = vmul.f32 %v4176, %v4176
    %v4185 = vsel %vm126, %v4177, 0.0
    %4186 = vadd.xlane.f32.xlu0 %v4185
    %v4187 = vpop.xlane.xlu0 %4186
    %v4188 = vsel %vm126, %v4178, 0.0
    %4189 = vadd.xlane.f32.xlu0 %v4188
    %v4190 = vpop.xlane.xlu0 %4189
    %v4191 = vsel %vm126, %v4179, 0.0
    %4192 = vadd.xlane.f32.xlu0 %v4191
    %v4193 = vpop.xlane.xlu0 %4192
    %v4194 = vsel %vm126, %v4180, 0.0
    %4195 = vadd.xlane.f32.xlu0 %v4194
    %v4196 = vpop.xlane.xlu0 %4195
    %v4197 = vsel %vm126, %v4181, 0.0
    %4198 = vadd.xlane.f32.xlu0 %v4197
    %v4199 = vpop.xlane.xlu0 %4198
    %v4200 = vsel %vm126, %v4182, 0.0
    %4201 = vadd.xlane.f32.xlu0 %v4200
    %v4202 = vpop.xlane.xlu0 %4201
    %v4203 = vsel %vm126, %v4183, 0.0
    %4204 = vadd.xlane.f32.xlu0 %v4203
    %v4205 = vpop.xlane.xlu0 %4204
    %v4206 = vsel %vm126, %v4184, 0.0
    %4207 = vadd.xlane.f32.xlu0 %v4206
    %v4208 = vpop.xlane.xlu0 %4207
    %v4209 = vmul.f32 %v4187, %v4160
    %v4210 = vmul.f32 %v4190, %v4160
    %v4211 = vmul.f32 %v4193, %v4160
    %v4212 = vmul.f32 %v4196, %v4160
    %v4213 = vmul.f32 %v4199, %v4160
    %v4214 = vmul.f32 %v4202, %v4160
    %v4215 = vmul.f32 %v4205, %v4160
    %v4216 = vmul.f32 %v4208, %v4160
    %v4217 = vadd.f32 %v4209, 1e-05
    %v4218 = vadd.f32 %v4210, 1e-05
    %v4219 = vadd.f32 %v4211, 1e-05
    %v4220 = vadd.f32 %v4212, 1e-05
    %v4221 = vadd.f32 %v4213, 1e-05
    %v4222 = vadd.f32 %v4214, 1e-05
    %v4223 = vadd.f32 %v4215, 1e-05
    %v4224 = vadd.f32 %v4216, 1e-05
    %v4225 = vrsqrt.pop %v4217
    %v4226 = vrsqrt.pop %v4218
    %v4227 = vrsqrt.pop %v4219
    %v4228 = vrsqrt.pop %v4220
    %v4229 = vrsqrt.pop %v4221
    %v4230 = vrsqrt.pop %v4222
    %v4231 = vrsqrt.pop %v4223
    %v4232 = vrsqrt.pop %v4224
    %v4233 = vmul.f32 %v4169, %v4225
    %v4234 = vmul.f32 %v4170, %v4226
    %v4235 = vmul.f32 %v4171, %v4227
    %v4236 = vmul.f32 %v4172, %v4228
    %v4237 = vmul.f32 %v4173, %v4229
    %v4238 = vmul.f32 %v4174, %v4230
    %v4239 = vmul.f32 %v4175, %v4231
    %v4240 = vmul.f32 %v4176, %v4232
    %v4241 = vld [vmem:[%s6] sm:$0x1]
    %v4243 = vlaneseq
    %v4244 = vshrl.u32 %v4243, 7
    %v4245 = vsub.s32 0, %v4244
    %v4246 = vrot.slane %v4241, %v4245
    %v4248 = vmul.f32 %v4233, %v4246
    %v4249 = vmul.f32 %v4234, %v4246
    %v4250 = vmul.f32 %v4235, %v4246
    %v4251 = vmul.f32 %v4236, %v4246
    %v4252 = vmul.f32 %v4237, %v4246
    %v4253 = vmul.f32 %v4238, %v4246
    %v4254 = vmul.f32 %v4239, %v4246
    %v4255 = vmul.f32 %v4240, %v4246
    %v4256 = vld [vmem:[%s7] sm:$0x1]
    %v4258 = vlaneseq
    %v4259 = vshrl.u32 %v4258, 7
    %v4260 = vsub.s32 0, %v4259
    %v4261 = vrot.slane %v4256, %v4260
    %v4263 = vadd.f32 %v4248, %v4261
    %v4264 = vadd.f32 %v4249, %v4261
    %v4265 = vadd.f32 %v4250, %v4261
    %v4266 = vadd.f32 %v4251, %v4261
    %v4267 = vadd.f32 %v4252, %v4261
    %v4268 = vadd.f32 %v4253, %v4261
    %v4269 = vadd.f32 %v4254, %v4261
    %v4270 = vadd.f32 %v4255, %v4261
    %4271 = vst.msk [vmem:[#allocation10] sm:$0xff] %vm126, %v4263
    %4272 = vst.msk [vmem:[#allocation10 + $0x8] sm:$0xff] %vm126, %v4264
    %4273 = vst.msk [vmem:[#allocation10 + $0x10] sm:$0xff] %vm126, %v4265
    %4274 = vst.msk [vmem:[#allocation10 + $0x18] sm:$0xff] %vm126, %v4266
    %4275 = vst.msk [vmem:[#allocation10 + $0x20] sm:$0xff] %vm126, %v4267
    %4276 = vst.msk [vmem:[#allocation10 + $0x28] sm:$0xff] %vm126, %v4268
    %4277 = vst.msk [vmem:[#allocation10 + $0x30] sm:$0xff] %vm126, %v4269
    %4278 = vst.msk [vmem:[#allocation10 + $0x38] sm:$0xff] %vm126, %v4270
    // Predicated region
    $region50: #{tpu_custom_call.1} parent=1 // pred_check
      _
    $region51: #{tpu_custom_call.1} parent=1 // pred_check_branch
      %4280 = sbr.rel (0) target = $region53
    $region52: #{tpu_custom_call.1} parent=1 // pred_region
      %s4282 = ssub.s32 1024, 1024
      %4283 = vsyncadd [#allocation4], %s4282
      %s4284 = sshll.u32 [#allocation10], 4
      %s4285 = int_to_ptr.vmem [resolvable:$true] %s4284
      %4290 = dma.vmem_to_hbm [thread:$0]  %s4285, 1024, %s8, [#allocation4], 128, 128, 8
    $region53: #{tpu_custom_call.1} parent=1 // pred_fallthru
      _
    // Predicated region
    $region54: #{tpu_custom_call.1} parent=1 // pred_check
      _
    $region55: #{tpu_custom_call.1} parent=1 // pred_check_branch
      %4292 = sbr.rel (0) target = $region57
    $region56: #{tpu_custom_call.1} parent=1 // pred_region
      %s4294 = ssub.s32 4096, 4096
      %4295 = vsyncadd [#allocation12], %s4294
      %s4296 = sshll.u32 [#allocation11], 4
      %s4297 = int_to_ptr.vmem [resolvable:$true] %s4296
      %4302 = dma.vmem_to_hbm [thread:$0]  %s4297, 4096, %s9, [#allocation12], 128, 128, 8
    $region57: #{tpu_custom_call.1} parent=1 // pred_fallthru
      _
    // Predicated region
    $region58: #{tpu_custom_call.1} parent=1 // pred_check
      _
    $region59: #{tpu_custom_call.1} parent=1 // pred_check_branch
      %4304 = sbr.rel (0) target = $region61
    $region60: #{tpu_custom_call.1} parent=1 // pred_region
      %4305 = dma.done [#allocation4], 1024
    $region61: #{tpu_custom_call.1} parent=1 // pred_fallthru
      _
    // Predicated region
    $region62: #{tpu_custom_call.1} parent=1 // pred_check
      _
    $region63: #{tpu_custom_call.1} parent=1 // pred_check_branch
      %4307 = sbr.rel (0) target = $region65
    $region64: #{tpu_custom_call.1} parent=1 // pred_region
      %4308 = dma.done [#allocation12], 4096
    $region65: #{tpu_custom_call.1} parent=1 // pred_fallthru
      _
    %4309 = vsyncpa [#allocation3], 1
    %4310 = vsyncpa [#allocation6], 1
    %4311 = vsyncpa [#allocation9], 1
    %4312 = vsyncpa [#allocation4], 1
    %4313 = vsyncpa [#allocation12], 1

</llo_original>
